<compile_context>
chip_gen: v6e
topology: v6e:2x2x1
jax: 0.10.0
libtpu: 0.0.40
codegen_flags: <defaults>
</compile_context>

<pallas_src>
import jax
import jax.numpy as jnp
from jax.experimental import pallas as pl
from jax.experimental.pallas import tpu as pltpu

EPS = 1e-5


def bn_relu_conv1x1_kernel(x_ref, gamma_ref, beta_ref, w_ref, o_ref):
    # x_ref: (Cin, M) bf16, gamma/beta: (Cin, 1) f32, w_ref: (tile_cout, Cin) bf16
    x = x_ref[...].astype(jnp.float32)
    inv_m = 1.0 / x.shape[1]
    # Shifted two-pass batch statistics (biased variance, training-mode BatchNorm);
    # avoids catastrophic cancellation of the one-pass E[x^2]-E[x]^2 form.
    mean = jnp.sum(x, axis=1, keepdims=True) * inv_m          # (Cin, 1)
    d = x - mean                                              # (Cin, M)
    var = jnp.sum(d * d, axis=1, keepdims=True) * inv_m       # (Cin, 1)
    scale = jax.lax.rsqrt(var + EPS) * gamma_ref[...]         # (Cin, 1)
    act = jnp.maximum(d * scale + beta_ref[...], 0.0).astype(jnp.bfloat16)  # (Cin, M)
    # 1x1 conv == matmul on the MXU: (tile_cout, Cin) @ (Cin, M) -> (tile_cout, M)
    o_ref[...] = jnp.dot(
        w_ref[...], act, preferred_element_type=jnp.float32
    ).astype(o_ref.dtype)


def _default_n_tiles():
    """Split Cout across 2 tiles only on chips with 2 TensorCores (v7x / megacore).

    On single-TC chips (v5e, v6e) a 2-step grid is a sequential loop that would
    recompute BN+ReLU twice and pay per-step overhead for nothing.
    """
    try:
        kind = jax.devices()[0].device_kind.lower()
    except Exception:
        return 1
    single_tc = any(t in kind for t in ("v5e", "v6e", "lite"))
    return 1 if single_tc else 2


def bn_relu_conv1x1(x_nchw, gamma, beta, w_oi, *, n_tiles=None, out_dtype=jnp.bfloat16):
    """x_nchw: (N, Cin, H, W); gamma/beta: (Cin,); w_oi: (Cout, Cin[,1,1]) 1x1 conv weight.

    Pass x and w already in bf16 to keep the convert ops out of the hot path; any other
    dtype is cast here.  Output dtype defaults to bf16 (downstream-friendly, half the
    HBM writeback of f32).
    """
    N, Cin, H, W = x_nchw.shape
    Cout = w_oi.shape[0]
    M = N * H * W
    if n_tiles is None:
        n_tiles = _default_n_tiles()

    # NCHW -> (Cin, M).  For N == 1 this is a zero-cost reshape (no transpose).
    if N == 1:
        x2d = x_nchw.reshape(Cin, M)
    else:
        x2d = jnp.transpose(x_nchw, (1, 0, 2, 3)).reshape(Cin, M)
    x2d = x2d.astype(jnp.bfloat16)  # no-op if caller already provides bf16

    gamma2d = gamma.reshape(Cin, 1).astype(jnp.float32)
    beta2d = beta.reshape(Cin, 1).astype(jnp.float32)
    w_bf = w_oi.reshape(Cout, Cin).astype(jnp.bfloat16)  # no-op if pre-cast by caller

    assert Cout % n_tiles == 0
    tile_cout = Cout // n_tiles
    assert Cin % 128 == 0 and Cin % 8 == 0 and tile_cout % 8 == 0

    out_bytes = jnp.dtype(out_dtype).itemsize
    cost = pl.CostEstimate(
        flops=2 * M * Cin * Cout + 7 * M * Cin,
        transcendentals=Cin,
        bytes_accessed=M * Cin * 2 + Cout * Cin * 2 + Cout * M * out_bytes + 2 * Cin * 4,
    )

    out2d = pl.pallas_call(
        bn_relu_conv1x1_kernel,
        out_shape=jax.ShapeDtypeStruct((Cout, M), out_dtype),
        grid_spec=pltpu.PrefetchScalarGridSpec(
            num_scalar_prefetch=0,
            grid=(n_tiles,),
            in_specs=[
                pl.BlockSpec((Cin, M), lambda j: (0, 0)),
                pl.BlockSpec((Cin, 1), lambda j: (0, 0)),
                pl.BlockSpec((Cin, 1), lambda j: (0, 0)),
                pl.BlockSpec((tile_cout, Cin), lambda j: (j, 0)),
            ],
            out_specs=pl.BlockSpec((tile_cout, M), lambda j: (j, 0)),
        ),
        compiler_params=pltpu.CompilerParams(
            # No cross-step state -> each Cout tile maps to its own TensorCore on v7x.
            dimension_semantics=("parallel",),
            vmem_limit_bytes=32 * 1024 * 1024,
        ),
        cost_estimate=cost,
    )(x2d, gamma2d, beta2d, w_bf)

    # (Cout, M) is already NCHW order for N == 1.
    if N == 1:
        return out2d.reshape(1, Cout, H, W)
    return jnp.transpose(out2d.reshape(Cout, N, H, W), (1, 0, 2, 3))


def reference(x_nchw, gamma, beta, w_oi):
    x = x_nchw.astype(jnp.float32)
    mean = jnp.mean(x, axis=(0, 2, 3), keepdims=True)
    var = jnp.mean((x - mean) ** 2, axis=(0, 2, 3), keepdims=True)
    y = (x - mean) * jax.lax.rsqrt(var + EPS)
    y = y * gamma.reshape(1, -1, 1, 1) + beta.reshape(1, -1, 1, 1)
    y = jnp.maximum(y, 0.0)
    return jnp.einsum("nchw,oc->nohw", y, w_oi.reshape(w_oi.shape[0], -1).astype(jnp.float32))


if __name__ == "__main__":
    # Shapes implied by the module: x136 = randn(1, 256, 28, 28),
    # BatchNorm2d(256), Conv2d(256 -> 1024, kernel 1x1, bias=False).
    # TODO(synk): running_mean/running_var update is a training-time side effect of
    # BatchNorm2d that does not affect the forward output; not modeled.
    N, Cin, H, W, Cout = 1, 256, 28, 28, 1024

    key = jax.random.PRNGKey(0)
    kx, kg, kb, kw = jax.random.split(key, 4)
    x = jax.random.normal(kx, (N, Cin, H, W), dtype=jnp.float32)
    gamma = 1.0 + 0.1 * jax.random.normal(kg, (Cin,), dtype=jnp.float32)
    beta = 0.1 * jax.random.normal(kb, (Cin,), dtype=jnp.float32)
    w = 0.05 * jax.random.normal(kw, (Cout, Cin), dtype=jnp.float32)

    # Hoist dtype conversions out of the hot path: cast once, reuse across calls.
    x_bf = jax.block_until_ready(x.astype(jnp.bfloat16))
    w_bf = jax.block_until_ready(w.astype(jnp.bfloat16))

    fused = jax.jit(bn_relu_conv1x1)
    out = jax.block_until_ready(fused(x_bf, gamma, beta, w_bf))
    assert out.shape == (N, Cout, H, W), out.shape
    assert out.dtype == jnp.bfloat16, out.dtype

    ref = reference(x, gamma, beta, w)
    out_f32 = out.astype(jnp.float32)
    # Tolerance sized for bf16 inputs / MXU operands / bf16 output with f32 accumulation
    # over K = 256.
    max_err = float(jnp.max(jnp.abs(out_f32 - ref)))
    assert jnp.allclose(out_f32, ref, atol=2e-2, rtol=2e-2), max_err

    print("KERNEL_OK")
</pallas_src>

<mosaic_0001>
module attributes {stable_mosaic.version = 11 : i64} {
  func.func @bn_relu_conv1x1_kernel(%arg0: i32, %arg1: memref<256x784xbf16, #tpu.memory_space<vmem>>, %arg2: memref<256x1xf32, #tpu.memory_space<vmem>>, %arg3: memref<256x1xf32, #tpu.memory_space<vmem>>, %arg4: memref<512x256xbf16, #tpu.memory_space<vmem>>, %arg5: memref<512x784xbf16, #tpu.memory_space<vmem>>) attributes {dimension_semantics = [#tpu.dimension_semantics<parallel>], iteration_bounds = array<i64: 2>, scalar_prefetch = 0 : i64, scratch_operands = 0 : i64, tpu.core_type = #tpu.core_type<tc>, window_params = [{pipeline_mode = #tpu.pipeline_mode<synchronous>, transform_indices = @transform_0, window_bounds = array<i64: 256, 784>}, {pipeline_mode = #tpu.pipeline_mode<synchronous>, transform_indices = @transform_1, window_bounds = array<i64: 256, 1>}, {pipeline_mode = #tpu.pipeline_mode<synchronous>, transform_indices = @transform_2, window_bounds = array<i64: 256, 1>}, {transform_indices = @transform_3, window_bounds = array<i64: 512, 256>}, {transform_indices = @transform_4, window_bounds = array<i64: 512, 784>}]} {
    %c0 = arith.constant 0 : index
    %c0_0 = arith.constant 0 : index
    %0 = vector.load %arg1[%c0, %c0_0] : memref<256x784xbf16, #tpu.memory_space<vmem>>, vector<256x784xbf16>
    %1 = arith.extf %0 : vector<256x784xbf16> to vector<256x784xf32>
    %cst = arith.constant dense<0.000000e+00> : vector<256xf32>
    %2 = vector.multi_reduction <add>, %1, %cst [1] : vector<256x784xf32> to vector<256xf32>
    %3 = vector.shape_cast %2 : vector<256xf32> to vector<256x1xf32>
    %cst_1 = arith.constant 0.00127551018 : f32
    %4 = vector.broadcast %cst_1 : f32 to vector<256x1xf32>
    %5 = arith.mulf %3, %4 : vector<256x1xf32>
    %6 = vector.broadcast %5 : vector<256x1xf32> to vector<256x784xf32>
    %7 = arith.subf %1, %6 : vector<256x784xf32>
    %8 = arith.mulf %7, %7 : vector<256x784xf32>
    %cst_2 = arith.constant dense<0.000000e+00> : vector<256xf32>
    %9 = vector.multi_reduction <add>, %8, %cst_2 [1] : vector<256x784xf32> to vector<256xf32>
    %10 = vector.shape_cast %9 : vector<256xf32> to vector<256x1xf32>
    %cst_3 = arith.constant 0.00127551018 : f32
    %11 = vector.broadcast %cst_3 : f32 to vector<256x1xf32>
    %12 = arith.mulf %10, %11 : vector<256x1xf32>
    %cst_4 = arith.constant 9.99999974E-6 : f32
    %13 = vector.broadcast %cst_4 : f32 to vector<256x1xf32>
    %14 = arith.addf %12, %13 : vector<256x1xf32>
    %15 = math.rsqrt %14 : vector<256x1xf32>
    %c0_5 = arith.constant 0 : index
    %c0_6 = arith.constant 0 : index
    %16 = vector.load %arg2[%c0_5, %c0_6] : memref<256x1xf32, #tpu.memory_space<vmem>>, vector<256x1xf32>
    %17 = arith.mulf %15, %16 : vector<256x1xf32>
    %18 = vector.broadcast %17 : vector<256x1xf32> to vector<256x784xf32>
    %19 = arith.mulf %7, %18 : vector<256x784xf32>
    %c0_7 = arith.constant 0 : index
    %c0_8 = arith.constant 0 : index
    %20 = vector.load %arg3[%c0_7, %c0_8] : memref<256x1xf32, #tpu.memory_space<vmem>>, vector<256x1xf32>
    %21 = vector.broadcast %20 : vector<256x1xf32> to vector<256x784xf32>
    %22 = arith.addf %19, %21 : vector<256x784xf32>
    %cst_9 = arith.constant 0.000000e+00 : f32
    %23 = vector.broadcast %cst_9 : f32 to vector<256x784xf32>
    %24 = arith.maximumf %22, %23 : vector<256x784xf32>
    %25 = arith.truncf %24 : vector<256x784xf32> to vector<256x784xbf16>
    %c0_10 = arith.constant 0 : index
    %c0_11 = arith.constant 0 : index
    %26 = vector.load %arg4[%c0_10, %c0_11] : memref<512x256xbf16, #tpu.memory_space<vmem>>, vector<512x256xbf16>
    %cst_12 = arith.constant dense<0.000000e+00> : vector<512x784xf32>
    %27 = tpu.matmul %26, %25, %cst_12 {dimension_numbers = #tpu.dot_dimension_numbers<[1], [0], [0], [1], [0, 0, 1, 1], [], []>} : vector<512x256xbf16>, vector<256x784xbf16>, vector<512x784xf32> -> vector<512x784xf32>
    %28 = arith.truncf %27 : vector<512x784xf32> to vector<512x784xbf16>
    %c0_13 = arith.constant 0 : index
    %c0_14 = arith.constant 0 : index
    %29 = vector.load %arg5[%c0_13, %c0_14] : memref<512x784xbf16, #tpu.memory_space<vmem>>, vector<512x784xbf16>
    tpu.vector_store %arg5[%c0_13, %c0_14], %28 {strides = array<i32>} : memref<512x784xbf16, #tpu.memory_space<vmem>>, vector<512x784xbf16>,
    return
  }
  func.func @transform_0(%arg0: i32) -> (i32, i32) {
    %c0_i32 = arith.constant 0 : i32
    %c0_i32_0 = arith.constant 0 : i32
    %c0_i32_1 = arith.constant 0 : i32
    return %c0_i32, %c0_i32_0 : i32, i32
  }
  func.func @transform_1(%arg0: i32) -> (i32, i32) {
    %c0_i32 = arith.constant 0 : i32
    %c0_i32_0 = arith.constant 0 : i32
    %c0_i32_1 = arith.constant 0 : i32
    return %c0_i32, %c0_i32_0 : i32, i32
  }
  func.func @transform_2(%arg0: i32) -> (i32, i32) {
    %c0_i32 = arith.constant 0 : i32
    %c0_i32_0 = arith.constant 0 : i32
    %c0_i32_1 = arith.constant 0 : i32
    return %c0_i32, %c0_i32_0 : i32, i32
  }
  func.func @transform_3(%arg0: i32) -> (i32, i32) {
    %c0_i32 = arith.constant 0 : i32
    %c0_i32_0 = arith.constant 0 : i32
    return %arg0, %c0_i32 : i32, i32
  }
  func.func @transform_4(%arg0: i32) -> (i32, i32) {
    %c0_i32 = arith.constant 0 : i32
    %c0_i32_0 = arith.constant 0 : i32
    return %arg0, %c0_i32 : i32, i32
  }
}

</mosaic_0001>

<llo_original>
// kernel: bn_relu_conv1x1.1
$region0: #{bn_relu_conv1x1.1}
  #allocation0 [shape = 'u32[]', space=smem, size = 0x4, offset = 0x4, fixed_abs, tag = 'smem constant byte address 0x4 - core index']
  #allocation1 [shape = 'u32[144,128]{1,0:T(1,128)}', space=vmem, size = 0x12000, scoped, tag = 'internal scratch']
  %s0 = inlined_call_operand.vmem [shape: bf16[256,784], index: 0, kind: input, shape index: {}]
  %s1 = inlined_call_operand.vmem [shape: f32[256,1], index: 1, kind: input, shape index: {}]
  %s2 = inlined_call_operand.vmem [shape: f32[256,1], index: 2, kind: input, shape index: {}]
  %s3 = inlined_call_operand.vmem [shape: bf16[1024,256], index: 3, kind: input, shape index: {}]
  %s4 = inlined_call_operand.vmem [shape: bf16[1024,784], index: 4, kind: output, shape index: {}]
  %s5 = sld [smem:[#allocation0]]
  $region49: #{bn_relu_conv1x1.1} parent=0
    _
  %s7 = ssub.s32 1, %s5
  %s8 = scalar_select 0, %s7, %s5
  loop: start=0, step=1, limit=4
  $region2: #{bn_relu_conv1x1.1} parent=0 // loop_pre_header
    _
  $region3: #{bn_relu_conv1x1.1} parent=0 // loop_header
    %s10 = sphi 0, %s14
    %p11 = scmp.ge.s32.totalorder %s10, 4
    %s18 = sphi 0, %s18
    %s20 = sphi 0, %s18
    %s21 = sphi 0, %s20
    %s35 = sphi 0, %s21
    %s39 = sphi 0, %s39
    %s41 = sphi 0, %s39
    %s42 = sphi 0, %s41
    %s56 = sphi 0, %s42
    %s60 = sphi 0, %s60
    %s62 = sphi 0, %s60
    %s63 = sphi 0, %s62
    %s77 = sphi 0, %s63
    %s83 = sphi 0, %s85
    %s86 = sphi 0, %s83
    %s87 = sphi 0, %s86
    %s103 = sphi 0, %s87
    %s109 = sphi 0, %s111
    %s112 = sphi 0, %s109
    %s113 = sphi 0, %s112
    %s129 = sphi 0, %s113
  $region4: #{bn_relu_conv1x1.1} parent=0 // loop_header_branch
    %13 = sbr.rel (%p11) target = $region8
  $region5: #{bn_relu_conv1x1.1} parent=0 // loop_body
    %s15 = ssub.s32 %s10, 1
    %s16 = ssub.s32 %s10, 2
    %s17 = sadd.s32 %s10, 1
    %s19 = sadd.s32 %s18, 1
    %p22 = scmp.eq.s32.totalorder %s10, 1
    %p23 = scmp.ne.s32.totalorder %s18, %s20
    %p24 = scmp.eq.s32.totalorder %s10, 0
    %p25 = por %p23, %p24
    %p26 = scmp.ne.s32.totalorder %s18, %s20
    %p27 = scmp.eq.s32.totalorder %s15, 1
    %p28 = por %p26, %p27
    %p29 = scmp.ne.s32.totalorder %s20, %s21
    %p30 = scmp.eq.s32.totalorder %s15, 0
    %p31 = por %p29, %p30
    %p32 = scmp.ne.s32.totalorder %s20, %s21
    %p33 = scmp.eq.s32.totalorder %s16, 1
    %p34 = por %p32, %p33
    %p36 = scmp.ne.s32.totalorder %s21, %s35
    %p37 = scmp.eq.s32.totalorder %s16, 0
    %p38 = por %p36, %p37
    %s40 = sadd.s32 %s39, 1
    %p43 = scmp.eq.s32.totalorder %s10, 1
    %p44 = scmp.ne.s32.totalorder %s39, %s41
    %p45 = scmp.eq.s32.totalorder %s10, 0
    %p46 = por %p44, %p45
    %p47 = scmp.ne.s32.totalorder %s39, %s41
    %p48 = scmp.eq.s32.totalorder %s15, 1
    %p49 = por %p47, %p48
    %p50 = scmp.ne.s32.totalorder %s41, %s42
    %p51 = scmp.eq.s32.totalorder %s15, 0
    %p52 = por %p50, %p51
    %p53 = scmp.ne.s32.totalorder %s41, %s42
    %p54 = scmp.eq.s32.totalorder %s16, 1
    %p55 = por %p53, %p54
    %p57 = scmp.ne.s32.totalorder %s42, %s56
    %p58 = scmp.eq.s32.totalorder %s16, 0
    %p59 = por %p57, %p58
    %s61 = sadd.s32 %s60, 1
    %p64 = scmp.eq.s32.totalorder %s10, 1
    %p65 = scmp.ne.s32.totalorder %s60, %s62
    %p66 = scmp.eq.s32.totalorder %s10, 0
    %p67 = por %p65, %p66
    %p68 = scmp.ne.s32.totalorder %s60, %s62
    %p69 = scmp.eq.s32.totalorder %s15, 1
    %p70 = por %p68, %p69
    %p71 = scmp.ne.s32.totalorder %s62, %s63
    %p72 = scmp.eq.s32.totalorder %s15, 0
    %p73 = por %p71, %p72
    %p74 = scmp.ne.s32.totalorder %s62, %s63
    %p75 = scmp.eq.s32.totalorder %s16, 1
    %p76 = por %p74, %p75
    %p78 = scmp.ne.s32.totalorder %s63, %s77
    %p79 = scmp.eq.s32.totalorder %s16, 0
    %p80 = por %p78, %p79
    %s81 = ssub.s32 %s10, %s17
    %p82 = scmp.eq.s32.totalorder %s81, 0
    %s84 = sadd.s32 %s83, 1
    %s85 = scalar_select %p82, %s83, %s84
    %p88 = pneg %p82
    %p89 = scmp.eq.s32.totalorder %s10, 1
    %p90 = por %p88, %p89
    %p91 = scmp.ne.s32.totalorder %s83, %s86
    %p92 = scmp.eq.s32.totalorder %s10, 0
    %p93 = por %p91, %p92
    %p94 = scmp.ne.s32.totalorder %s83, %s86
    %p95 = scmp.eq.s32.totalorder %s15, 1
    %p96 = por %p94, %p95
    %p97 = scmp.ne.s32.totalorder %s86, %s87
    %p98 = scmp.eq.s32.totalorder %s15, 0
    %p99 = por %p97, %p98
    %p100 = scmp.ne.s32.totalorder %s86, %s87
    %p101 = scmp.eq.s32.totalorder %s16, 1
    %p102 = por %p100, %p101
    %p104 = scmp.ne.s32.totalorder %s87, %s103
    %p105 = scmp.eq.s32.totalorder %s16, 0
    %p106 = por %p104, %p105
    %s107 = ssub.s32 %s10, %s17
    %p108 = scmp.eq.s32.totalorder %s107, 0
    %s110 = sadd.s32 %s109, 1
    %s111 = scalar_select %p108, %s109, %s110
    %p114 = pneg %p108
    %p115 = scmp.eq.s32.totalorder %s10, 1
    %p116 = por %p114, %p115
    %p117 = scmp.ne.s32.totalorder %s109, %s112
    %p118 = scmp.eq.s32.totalorder %s10, 0
    %p119 = por %p117, %p118
    %p120 = scmp.ne.s32.totalorder %s109, %s112
    %p121 = scmp.eq.s32.totalorder %s15, 1
    %p122 = por %p120, %p121
    %p123 = scmp.ne.s32.totalorder %s112, %s113
    %p124 = scmp.eq.s32.totalorder %s15, 0
    %p125 = por %p123, %p124
    %p126 = scmp.ne.s32.totalorder %s112, %s113
    %p127 = scmp.eq.s32.totalorder %s16, 1
    %p128 = por %p126, %p127
    %p130 = scmp.ne.s32.totalorder %s113, %s129
    %p131 = scmp.eq.s32.totalorder %s16, 0
    %p132 = por %p130, %p131
    %p133 = scmp.le.s32.totalorder 1, %s10
    %p134 = scmp.lt.s32.totalorder %s10, 3
    %p135 = pnand %p133, %p134
    %p136 = pneg %p135
    // Predicated region
    $region9: #{bn_relu_conv1x1.1} parent=5 // pred_check
      _
    $region10: #{bn_relu_conv1x1.1} parent=5 // pred_check_branch
      %138 = sbr.rel (%p135) target = $region12
    $region11: #{bn_relu_conv1x1.1} parent=5 // pred_region
      %s139 = ssub.s32 %s10, 1
      // Predicated region
      $region13: #{bn_relu_conv1x1.1} parent=11 // pred_check
        %p140 = pneg %p31
      $region14: #{bn_relu_conv1x1.1} parent=11 // pred_check_branch
        %142 = sbr.rel (%p140) target = $region16
      $region15: #{bn_relu_conv1x1.1} parent=11 // pred_region
        _
      $region16: #{bn_relu_conv1x1.1} parent=11 // pred_fallthru
        _
      // Predicated region
      $region17: #{bn_relu_conv1x1.1} parent=11 // pred_check
        %p143 = pneg %p52
      $region18: #{bn_relu_conv1x1.1} parent=11 // pred_check_branch
        %145 = sbr.rel (%p143) target = $region20
      $region19: #{bn_relu_conv1x1.1} parent=11 // pred_region
        _
      $region20: #{bn_relu_conv1x1.1} parent=11 // pred_fallthru
        _
      // Predicated region
      $region21: #{bn_relu_conv1x1.1} parent=11 // pred_check
        %p146 = pneg %p73
      $region22: #{bn_relu_conv1x1.1} parent=11 // pred_check_branch
        %148 = sbr.rel (%p146) target = $region24
      $region23: #{bn_relu_conv1x1.1} parent=11 // pred_region
        _
      $region24: #{bn_relu_conv1x1.1} parent=11 // pred_fallthru
        _
    $region12: #{bn_relu_conv1x1.1} parent=5 // pred_fallthru
      _
    %p149 = scmp.lt.s32.totalorder %s10, 2
    // Predicated region
    $region25: #{bn_relu_conv1x1.1} parent=5 // pred_check
      %p150 = pneg %p149
    $region26: #{bn_relu_conv1x1.1} parent=5 // pred_check_branch
      %152 = sbr.rel (%p150) target = $region28
    $region27: #{bn_relu_conv1x1.1} parent=5 // pred_region
      // Predicated region
      $region29: #{bn_relu_conv1x1.1} parent=27 // pred_check
        %p153 = pneg %p93
      $region30: #{bn_relu_conv1x1.1} parent=27 // pred_check_branch
        %155 = sbr.rel (%p153) target = $region32
      $region31: #{bn_relu_conv1x1.1} parent=27 // pred_region
        %s156 = smul.u32 64, %s10
        %p157 = scmp.lt.s32.totalorder %s156, 127
        %s158 = scalar_select %p157, %s156, 127
        %s159 = smul.addr %s158, 2
        %s160 = smul.addr %s159, 4
        %s161 = scalar_lea.vmem %s3, %s160
        %s162 = smul.u32 64, %s10
      $region32: #{bn_relu_conv1x1.1} parent=27 // pred_fallthru
        _
    $region28: #{bn_relu_conv1x1.1} parent=5 // pred_fallthru
      _
    %p163 = scmp.le.s32.totalorder 1, %s10
    %p164 = scmp.lt.s32.totalorder %s10, 3
    %p165 = pnand %p163, %p164
    %p166 = pneg %p165
    // Predicated region
    $region33: #{bn_relu_conv1x1.1} parent=5 // pred_check
      _
    $region34: #{bn_relu_conv1x1.1} parent=5 // pred_check_branch
      %168 = sbr.rel (%p165) target = $region36
    $region35: #{bn_relu_conv1x1.1} parent=5 // pred_region
      %s169 = ssub.s32 %s10, 1
      %p170 = pneg %p31
      %p171 = pneg %p28
      %p172 = pneg %p52
      %p173 = pneg %p49
      %p174 = pneg %p73
      %p175 = pneg %p70
      %s176 = smul.u32 64, %s15
      %p177 = scmp.lt.s32.totalorder %s176, 127
      %s178 = scalar_select %p177, %s176, 127
      %s179 = smul.addr %s178, 2
      %s180 = smul.addr %s179, 4
      %s181 = scalar_lea.vmem %s3, %s180
      %p182 = pneg %p99
      %p183 = pneg %p96
      %p184 = pneg %p125
      %p185 = pneg %p122
      %s186 = smul.u32 64, %s15
      %p187 = scmp.lt.s32.totalorder %s186, 127
      %s188 = scalar_select %p187, %s186, 127
      %s189 = smul.addr %s188, 7
      %s190 = smul.addr %s189, 4
      %s191 = scalar_lea.vmem %s4, %s190
      %s192 = smul.u32 64, %s15
      %p193 = scmp.lt.s32.totalorder %s192, 127
      %s194 = scalar_select %p193, %s192, 127
      %s195 = smul.addr %s194, 2
      %s196 = smul.addr %s195, 4
      %s197 = scalar_lea.vmem %s3, %s196
      %s198 = smul.u32 64, %s15
      %s199 = smul.u32 64, %s15
      %p200 = scmp.lt.s32.totalorder %s199, 127
      %s201 = scalar_select %p200, %s199, 127
      %s202 = smul.addr %s201, 7
      %s203 = smul.addr %s202, 4
      %s204 = scalar_lea.vmem %s4, %s203
      %s205 = smul.u32 64, %s15
      %v207 = vld [vmem:[%s0] sm:$0xff]
      %v208 = vld [vmem:[%s0 + $0x8] sm:$0xff]
      %v209 = vld [vmem:[%s0 + $0x10] sm:$0xff]
      %v210 = vld [vmem:[%s0 + $0x18] sm:$0xf]
      %v211 = vld [vmem:[%s0 + $0x1c] sm:$0xff]
      %v212 = vld [vmem:[%s0 + $0x24] sm:$0xff]
      %v213 = vld [vmem:[%s0 + $0x2c] sm:$0xff]
      %v214 = vld [vmem:[%s0 + $0x34] sm:$0xf]
      %v215 = vld [vmem:[%s0 + $0x38] sm:$0xff]
      %v216 = vld [vmem:[%s0 + $0x40] sm:$0xff]
      %v217 = vld [vmem:[%s0 + $0x48] sm:$0xff]
      %v218 = vld [vmem:[%s0 + $0x50] sm:$0xf]
      %v219 = vld [vmem:[%s0 + $0x54] sm:$0xff]
      %v220 = vld [vmem:[%s0 + $0x5c] sm:$0xff]
      %v221 = vld [vmem:[%s0 + $0x64] sm:$0xff]
      %v222 = vld [vmem:[%s0 + $0x6c] sm:$0xf]
      %v223 = vld [vmem:[%s0 + $0x70] sm:$0xff]
      %v224 = vld [vmem:[%s0 + $0x78] sm:$0xff]
      %v225 = vld [vmem:[%s0 + $0x80] sm:$0xff]
      %v226 = vld [vmem:[%s0 + $0x88] sm:$0xf]
      %v227 = vld [vmem:[%s0 + $0x8c] sm:$0xff]
      %v228 = vld [vmem:[%s0 + $0x94] sm:$0xff]
      %v229 = vld [vmem:[%s0 + $0x9c] sm:$0xff]
      %v230 = vld [vmem:[%s0 + $0xa4] sm:$0xf]
      %v231 = vld [vmem:[%s0 + $0xa8] sm:$0xff]
      %v232 = vld [vmem:[%s0 + $0xb0] sm:$0xff]
      %v233 = vld [vmem:[%s0 + $0xb8] sm:$0xff]
      %v234 = vld [vmem:[%s0 + $0xc0] sm:$0xf]
      %v235 = vld [vmem:[%s0 + $0xc4] sm:$0xff]
      %v236 = vld [vmem:[%s0 + $0xcc] sm:$0xff]
      %v237 = vld [vmem:[%s0 + $0xd4] sm:$0xff]
      %v238 = vld [vmem:[%s0 + $0xdc] sm:$0xf]
      %v239 = vld [vmem:[%s0 + $0xe0] sm:$0xff]
      %v240 = vld [vmem:[%s0 + $0xe8] sm:$0xff]
      %v241 = vld [vmem:[%s0 + $0xf0] sm:$0xff]
      %v242 = vld [vmem:[%s0 + $0xf8] sm:$0xf]
      %v243 = vld [vmem:[%s0 + $0xfc] sm:$0xff]
      %v244 = vld [vmem:[%s0 + $0x104] sm:$0xff]
      %v245 = vld [vmem:[%s0 + $0x10c] sm:$0xff]
      %v246 = vld [vmem:[%s0 + $0x114] sm:$0xf]
      %v247 = vld [vmem:[%s0 + $0x118] sm:$0xff]
      %v248 = vld [vmem:[%s0 + $0x120] sm:$0xff]
      %v249 = vld [vmem:[%s0 + $0x128] sm:$0xff]
      %v250 = vld [vmem:[%s0 + $0x130] sm:$0xf]
      %v251 = vld [vmem:[%s0 + $0x134] sm:$0xff]
      %v252 = vld [vmem:[%s0 + $0x13c] sm:$0xff]
      %v253 = vld [vmem:[%s0 + $0x144] sm:$0xff]
      %v254 = vld [vmem:[%s0 + $0x14c] sm:$0xf]
      %v255 = vld [vmem:[%s0 + $0x150] sm:$0xff]
      %v256 = vld [vmem:[%s0 + $0x158] sm:$0xff]
      %v257 = vld [vmem:[%s0 + $0x160] sm:$0xff]
      %v258 = vld [vmem:[%s0 + $0x168] sm:$0xf]
      %v259 = vld [vmem:[%s0 + $0x16c] sm:$0xff]
      %v260 = vld [vmem:[%s0 + $0x174] sm:$0xff]
      %v261 = vld [vmem:[%s0 + $0x17c] sm:$0xff]
      %v262 = vld [vmem:[%s0 + $0x184] sm:$0xf]
      %v263 = vld [vmem:[%s0 + $0x188] sm:$0xff]
      %v264 = vld [vmem:[%s0 + $0x190] sm:$0xff]
      %v265 = vld [vmem:[%s0 + $0x198] sm:$0xff]
      %v266 = vld [vmem:[%s0 + $0x1a0] sm:$0xf]
      %v267 = vld [vmem:[%s0 + $0x1a4] sm:$0xff]
      %v268 = vld [vmem:[%s0 + $0x1ac] sm:$0xff]
      %v269 = vld [vmem:[%s0 + $0x1b4] sm:$0xff]
      %v270 = vld [vmem:[%s0 + $0x1bc] sm:$0xf]
      %v271 = vld [vmem:[%s0 + $0x1c0] sm:$0xff]
      %v272 = vld [vmem:[%s0 + $0x1c8] sm:$0xff]
      %v273 = vld [vmem:[%s0 + $0x1d0] sm:$0xff]
      %v274 = vld [vmem:[%s0 + $0x1d8] sm:$0xf]
      %v275 = vld [vmem:[%s0 + $0x1dc] sm:$0xff]
      %v276 = vld [vmem:[%s0 + $0x1e4] sm:$0xff]
      %v277 = vld [vmem:[%s0 + $0x1ec] sm:$0xff]
      %v278 = vld [vmem:[%s0 + $0x1f4] sm:$0xf]
      %v279 = vld [vmem:[%s0 + $0x1f8] sm:$0xff]
      %v280 = vld [vmem:[%s0 + $0x200] sm:$0xff]
      %v281 = vld [vmem:[%s0 + $0x208] sm:$0xff]
      %v282 = vld [vmem:[%s0 + $0x210] sm:$0xf]
      %v283 = vld [vmem:[%s0 + $0x214] sm:$0xff]
      %v284 = vld [vmem:[%s0 + $0x21c] sm:$0xff]
      %v285 = vld [vmem:[%s0 + $0x224] sm:$0xff]
      %v286 = vld [vmem:[%s0 + $0x22c] sm:$0xf]
      %v287 = vld [vmem:[%s0 + $0x230] sm:$0xff]
      %v288 = vld [vmem:[%s0 + $0x238] sm:$0xff]
      %v289 = vld [vmem:[%s0 + $0x240] sm:$0xff]
      %v290 = vld [vmem:[%s0 + $0x248] sm:$0xf]
      %v291 = vld [vmem:[%s0 + $0x24c] sm:$0xff]
      %v292 = vld [vmem:[%s0 + $0x254] sm:$0xff]
      %v293 = vld [vmem:[%s0 + $0x25c] sm:$0xff]
      %v294 = vld [vmem:[%s0 + $0x264] sm:$0xf]
      %v295 = vld [vmem:[%s0 + $0x268] sm:$0xff]
      %v296 = vld [vmem:[%s0 + $0x270] sm:$0xff]
      %v297 = vld [vmem:[%s0 + $0x278] sm:$0xff]
      %v298 = vld [vmem:[%s0 + $0x280] sm:$0xf]
      %v299 = vld [vmem:[%s0 + $0x284] sm:$0xff]
      %v300 = vld [vmem:[%s0 + $0x28c] sm:$0xff]
      %v301 = vld [vmem:[%s0 + $0x294] sm:$0xff]
      %v302 = vld [vmem:[%s0 + $0x29c] sm:$0xf]
      %v303 = vld [vmem:[%s0 + $0x2a0] sm:$0xff]
      %v304 = vld [vmem:[%s0 + $0x2a8] sm:$0xff]
      %v305 = vld [vmem:[%s0 + $0x2b0] sm:$0xff]
      %v306 = vld [vmem:[%s0 + $0x2b8] sm:$0xf]
      %v307 = vld [vmem:[%s0 + $0x2bc] sm:$0xff]
      %v308 = vld [vmem:[%s0 + $0x2c4] sm:$0xff]
      %v309 = vld [vmem:[%s0 + $0x2cc] sm:$0xff]
      %v310 = vld [vmem:[%s0 + $0x2d4] sm:$0xf]
      %v311 = vld [vmem:[%s0 + $0x2d8] sm:$0xff]
      %v312 = vld [vmem:[%s0 + $0x2e0] sm:$0xff]
      %v313 = vld [vmem:[%s0 + $0x2e8] sm:$0xff]
      %v314 = vld [vmem:[%s0 + $0x2f0] sm:$0xf]
      %v315 = vld [vmem:[%s0 + $0x2f4] sm:$0xff]
      %v316 = vld [vmem:[%s0 + $0x2fc] sm:$0xff]
      %v317 = vld [vmem:[%s0 + $0x304] sm:$0xff]
      %v318 = vld [vmem:[%s0 + $0x30c] sm:$0xf]
      %v319 = vld [vmem:[%s0 + $0x310] sm:$0xff]
      %v320 = vld [vmem:[%s0 + $0x318] sm:$0xff]
      %v321 = vld [vmem:[%s0 + $0x320] sm:$0xff]
      %v322 = vld [vmem:[%s0 + $0x328] sm:$0xf]
      %v323 = vld [vmem:[%s0 + $0x32c] sm:$0xff]
      %v324 = vld [vmem:[%s0 + $0x334] sm:$0xff]
      %v325 = vld [vmem:[%s0 + $0x33c] sm:$0xff]
      %v326 = vld [vmem:[%s0 + $0x344] sm:$0xf]
      %v327 = vld [vmem:[%s0 + $0x348] sm:$0xff]
      %v328 = vld [vmem:[%s0 + $0x350] sm:$0xff]
      %v329 = vld [vmem:[%s0 + $0x358] sm:$0xff]
      %v330 = vld [vmem:[%s0 + $0x360] sm:$0xf]
      %v331 = vld [vmem:[%s0 + $0x364] sm:$0xff]
      %v332 = vld [vmem:[%s0 + $0x36c] sm:$0xff]
      %v333 = vld [vmem:[%s0 + $0x374] sm:$0xff]
      %v334 = vld [vmem:[%s0 + $0x37c] sm:$0xf]
      %v335 = vunpack.c.l.bf16 %v207
      %v336 = vunpack.c.h.bf16 %v207
      %v337 = vunpack.c.l.bf16 %v208
      %v338 = vunpack.c.h.bf16 %v208
      %v339 = vunpack.c.l.bf16 %v209
      %v340 = vunpack.c.h.bf16 %v209
      %v341 = vunpack.c.l.bf16 %v210
      %v342 = vunpack.c.l.bf16 %v211
      %v343 = vunpack.c.h.bf16 %v211
      %v344 = vunpack.c.l.bf16 %v212
      %v345 = vunpack.c.h.bf16 %v212
      %v346 = vunpack.c.l.bf16 %v213
      %v347 = vunpack.c.h.bf16 %v213
      %v348 = vunpack.c.l.bf16 %v214
      %v349 = vunpack.c.l.bf16 %v215
      %v350 = vunpack.c.h.bf16 %v215
      %v351 = vunpack.c.l.bf16 %v216
      %v352 = vunpack.c.h.bf16 %v216
      %v353 = vunpack.c.l.bf16 %v217
      %v354 = vunpack.c.h.bf16 %v217
      %v355 = vunpack.c.l.bf16 %v218
      %v356 = vunpack.c.l.bf16 %v219
      %v357 = vunpack.c.h.bf16 %v219
      %v358 = vunpack.c.l.bf16 %v220
      %v359 = vunpack.c.h.bf16 %v220
      %v360 = vunpack.c.l.bf16 %v221
      %v361 = vunpack.c.h.bf16 %v221
      %v362 = vunpack.c.l.bf16 %v222
      %v363 = vunpack.c.l.bf16 %v223
      %v364 = vunpack.c.h.bf16 %v223
      %v365 = vunpack.c.l.bf16 %v224
      %v366 = vunpack.c.h.bf16 %v224
      %v367 = vunpack.c.l.bf16 %v225
      %v368 = vunpack.c.h.bf16 %v225
      %v369 = vunpack.c.l.bf16 %v226
      %v370 = vunpack.c.l.bf16 %v227
      %v371 = vunpack.c.h.bf16 %v227
      %v372 = vunpack.c.l.bf16 %v228
      %v373 = vunpack.c.h.bf16 %v228
      %v374 = vunpack.c.l.bf16 %v229
      %v375 = vunpack.c.h.bf16 %v229
      %v376 = vunpack.c.l.bf16 %v230
      %v377 = vunpack.c.l.bf16 %v231
      %v378 = vunpack.c.h.bf16 %v231
      %v379 = vunpack.c.l.bf16 %v232
      %v380 = vunpack.c.h.bf16 %v232
      %v381 = vunpack.c.l.bf16 %v233
      %v382 = vunpack.c.h.bf16 %v233
      %v383 = vunpack.c.l.bf16 %v234
      %v384 = vunpack.c.l.bf16 %v235
      %v385 = vunpack.c.h.bf16 %v235
      %v386 = vunpack.c.l.bf16 %v236
      %v387 = vunpack.c.h.bf16 %v236
      %v388 = vunpack.c.l.bf16 %v237
      %v389 = vunpack.c.h.bf16 %v237
      %v390 = vunpack.c.l.bf16 %v238
      %v391 = vunpack.c.l.bf16 %v239
      %v392 = vunpack.c.h.bf16 %v239
      %v393 = vunpack.c.l.bf16 %v240
      %v394 = vunpack.c.h.bf16 %v240
      %v395 = vunpack.c.l.bf16 %v241
      %v396 = vunpack.c.h.bf16 %v241
      %v397 = vunpack.c.l.bf16 %v242
      %v398 = vunpack.c.l.bf16 %v243
      %v399 = vunpack.c.h.bf16 %v243
      %v400 = vunpack.c.l.bf16 %v244
      %v401 = vunpack.c.h.bf16 %v244
      %v402 = vunpack.c.l.bf16 %v245
      %v403 = vunpack.c.h.bf16 %v245
      %v404 = vunpack.c.l.bf16 %v246
      %v405 = vunpack.c.l.bf16 %v247
      %v406 = vunpack.c.h.bf16 %v247
      %v407 = vunpack.c.l.bf16 %v248
      %v408 = vunpack.c.h.bf16 %v248
      %v409 = vunpack.c.l.bf16 %v249
      %v410 = vunpack.c.h.bf16 %v249
      %v411 = vunpack.c.l.bf16 %v250
      %v412 = vunpack.c.l.bf16 %v251
      %v413 = vunpack.c.h.bf16 %v251
      %v414 = vunpack.c.l.bf16 %v252
      %v415 = vunpack.c.h.bf16 %v252
      %v416 = vunpack.c.l.bf16 %v253
      %v417 = vunpack.c.h.bf16 %v253
      %v418 = vunpack.c.l.bf16 %v254
      %v419 = vunpack.c.l.bf16 %v255
      %v420 = vunpack.c.h.bf16 %v255
      %v421 = vunpack.c.l.bf16 %v256
      %v422 = vunpack.c.h.bf16 %v256
      %v423 = vunpack.c.l.bf16 %v257
      %v424 = vunpack.c.h.bf16 %v257
      %v425 = vunpack.c.l.bf16 %v258
      %v426 = vunpack.c.l.bf16 %v259
      %v427 = vunpack.c.h.bf16 %v259
      %v428 = vunpack.c.l.bf16 %v260
      %v429 = vunpack.c.h.bf16 %v260
      %v430 = vunpack.c.l.bf16 %v261
      %v431 = vunpack.c.h.bf16 %v261
      %v432 = vunpack.c.l.bf16 %v262
      %v433 = vunpack.c.l.bf16 %v263
      %v434 = vunpack.c.h.bf16 %v263
      %v435 = vunpack.c.l.bf16 %v264
      %v436 = vunpack.c.h.bf16 %v264
      %v437 = vunpack.c.l.bf16 %v265
      %v438 = vunpack.c.h.bf16 %v265
      %v439 = vunpack.c.l.bf16 %v266
      %v440 = vunpack.c.l.bf16 %v267
      %v441 = vunpack.c.h.bf16 %v267
      %v442 = vunpack.c.l.bf16 %v268
      %v443 = vunpack.c.h.bf16 %v268
      %v444 = vunpack.c.l.bf16 %v269
      %v445 = vunpack.c.h.bf16 %v269
      %v446 = vunpack.c.l.bf16 %v270
      %v447 = vunpack.c.l.bf16 %v271
      %v448 = vunpack.c.h.bf16 %v271
      %v449 = vunpack.c.l.bf16 %v272
      %v450 = vunpack.c.h.bf16 %v272
      %v451 = vunpack.c.l.bf16 %v273
      %v452 = vunpack.c.h.bf16 %v273
      %v453 = vunpack.c.l.bf16 %v274
      %v454 = vunpack.c.l.bf16 %v275
      %v455 = vunpack.c.h.bf16 %v275
      %v456 = vunpack.c.l.bf16 %v276
      %v457 = vunpack.c.h.bf16 %v276
      %v458 = vunpack.c.l.bf16 %v277
      %v459 = vunpack.c.h.bf16 %v277
      %v460 = vunpack.c.l.bf16 %v278
      %v461 = vunpack.c.l.bf16 %v279
      %v462 = vunpack.c.h.bf16 %v279
      %v463 = vunpack.c.l.bf16 %v280
      %v464 = vunpack.c.h.bf16 %v280
      %v465 = vunpack.c.l.bf16 %v281
      %v466 = vunpack.c.h.bf16 %v281
      %v467 = vunpack.c.l.bf16 %v282
      %v468 = vunpack.c.l.bf16 %v283
      %v469 = vunpack.c.h.bf16 %v283
      %v470 = vunpack.c.l.bf16 %v284
      %v471 = vunpack.c.h.bf16 %v284
      %v472 = vunpack.c.l.bf16 %v285
      %v473 = vunpack.c.h.bf16 %v285
      %v474 = vunpack.c.l.bf16 %v286
      %v475 = vunpack.c.l.bf16 %v287
      %v476 = vunpack.c.h.bf16 %v287
      %v477 = vunpack.c.l.bf16 %v288
      %v478 = vunpack.c.h.bf16 %v288
      %v479 = vunpack.c.l.bf16 %v289
      %v480 = vunpack.c.h.bf16 %v289
      %v481 = vunpack.c.l.bf16 %v290
      %v482 = vunpack.c.l.bf16 %v291
      %v483 = vunpack.c.h.bf16 %v291
      %v484 = vunpack.c.l.bf16 %v292
      %v485 = vunpack.c.h.bf16 %v292
      %v486 = vunpack.c.l.bf16 %v293
      %v487 = vunpack.c.h.bf16 %v293
      %v488 = vunpack.c.l.bf16 %v294
      %v489 = vunpack.c.l.bf16 %v295
      %v490 = vunpack.c.h.bf16 %v295
      %v491 = vunpack.c.l.bf16 %v296
      %v492 = vunpack.c.h.bf16 %v296
      %v493 = vunpack.c.l.bf16 %v297
      %v494 = vunpack.c.h.bf16 %v297
      %v495 = vunpack.c.l.bf16 %v298
      %v496 = vunpack.c.l.bf16 %v299
      %v497 = vunpack.c.h.bf16 %v299
      %v498 = vunpack.c.l.bf16 %v300
      %v499 = vunpack.c.h.bf16 %v300
      %v500 = vunpack.c.l.bf16 %v301
      %v501 = vunpack.c.h.bf16 %v301
      %v502 = vunpack.c.l.bf16 %v302
      %v503 = vunpack.c.l.bf16 %v303
      %v504 = vunpack.c.h.bf16 %v303
      %v505 = vunpack.c.l.bf16 %v304
      %v506 = vunpack.c.h.bf16 %v304
      %v507 = vunpack.c.l.bf16 %v305
      %v508 = vunpack.c.h.bf16 %v305
      %v509 = vunpack.c.l.bf16 %v306
      %v510 = vunpack.c.l.bf16 %v307
      %v511 = vunpack.c.h.bf16 %v307
      %v512 = vunpack.c.l.bf16 %v308
      %v513 = vunpack.c.h.bf16 %v308
      %v514 = vunpack.c.l.bf16 %v309
      %v515 = vunpack.c.h.bf16 %v309
      %v516 = vunpack.c.l.bf16 %v310
      %v517 = vunpack.c.l.bf16 %v311
      %v518 = vunpack.c.h.bf16 %v311
      %v519 = vunpack.c.l.bf16 %v312
      %v520 = vunpack.c.h.bf16 %v312
      %v521 = vunpack.c.l.bf16 %v313
      %v522 = vunpack.c.h.bf16 %v313
      %v523 = vunpack.c.l.bf16 %v314
      %v524 = vunpack.c.l.bf16 %v315
      %v525 = vunpack.c.h.bf16 %v315
      %v526 = vunpack.c.l.bf16 %v316
      %v527 = vunpack.c.h.bf16 %v316
      %v528 = vunpack.c.l.bf16 %v317
      %v529 = vunpack.c.h.bf16 %v317
      %v530 = vunpack.c.l.bf16 %v318
      %v531 = vunpack.c.l.bf16 %v319
      %v532 = vunpack.c.h.bf16 %v319
      %v533 = vunpack.c.l.bf16 %v320
      %v534 = vunpack.c.h.bf16 %v320
      %v535 = vunpack.c.l.bf16 %v321
      %v536 = vunpack.c.h.bf16 %v321
      %v537 = vunpack.c.l.bf16 %v322
      %v538 = vunpack.c.l.bf16 %v323
      %v539 = vunpack.c.h.bf16 %v323
      %v540 = vunpack.c.l.bf16 %v324
      %v541 = vunpack.c.h.bf16 %v324
      %v542 = vunpack.c.l.bf16 %v325
      %v543 = vunpack.c.h.bf16 %v325
      %v544 = vunpack.c.l.bf16 %v326
      %v545 = vunpack.c.l.bf16 %v327
      %v546 = vunpack.c.h.bf16 %v327
      %v547 = vunpack.c.l.bf16 %v328
      %v548 = vunpack.c.h.bf16 %v328
      %v549 = vunpack.c.l.bf16 %v329
      %v550 = vunpack.c.h.bf16 %v329
      %v551 = vunpack.c.l.bf16 %v330
      %v552 = vunpack.c.l.bf16 %v331
      %v553 = vunpack.c.h.bf16 %v331
      %v554 = vunpack.c.l.bf16 %v332
      %v555 = vunpack.c.h.bf16 %v332
      %v556 = vunpack.c.l.bf16 %v333
      %v557 = vunpack.c.h.bf16 %v333
      %v558 = vunpack.c.l.bf16 %v334
      %v559 = vadd.f32 %v335, %v336
      %v560 = vadd.f32 %v559, %v337
      %v561 = vadd.f32 %v560, %v338
      %v562 = vadd.f32 %v561, %v339
      %v563 = vadd.f32 %v562, %v340
      %vm564 = vcmask 130048
      %v565 = vsel %vm564, %v341, 0.0
      %v566 = vadd.f32 %v563, %v565
      %567 = vadd.xlane.f32.xlu0 %v566
      %v568 = vpop.xlane.xlu0 %567
      %v569 = vadd.f32 %v342, %v343
      %v570 = vadd.f32 %v569, %v344
      %v571 = vadd.f32 %v570, %v345
      %v572 = vadd.f32 %v571, %v346
      %v573 = vadd.f32 %v572, %v347
      %v574 = vsel %vm564, %v348, 0.0
      %v575 = vadd.f32 %v573, %v574
      %576 = vadd.xlane.f32.xlu0 %v575
      %v577 = vpop.xlane.xlu0 %576
      %v578 = vadd.f32 %v349, %v350
      %v579 = vadd.f32 %v578, %v351
      %v580 = vadd.f32 %v579, %v352
      %v581 = vadd.f32 %v580, %v353
      %v582 = vadd.f32 %v581, %v354
      %v583 = vsel %vm564, %v355, 0.0
      %v584 = vadd.f32 %v582, %v583
      %585 = vadd.xlane.f32.xlu0 %v584
      %v586 = vpop.xlane.xlu0 %585
      %v587 = vadd.f32 %v356, %v357
      %v588 = vadd.f32 %v587, %v358
      %v589 = vadd.f32 %v588, %v359
      %v590 = vadd.f32 %v589, %v360
      %v591 = vadd.f32 %v590, %v361
      %v592 = vsel %vm564, %v362, 0.0
      %v593 = vadd.f32 %v591, %v592
      %594 = vadd.xlane.f32.xlu0 %v593
      %v595 = vpop.xlane.xlu0 %594
      %v596 = vadd.f32 %v363, %v364
      %v597 = vadd.f32 %v596, %v365
      %v598 = vadd.f32 %v597, %v366
      %v599 = vadd.f32 %v598, %v367
      %v600 = vadd.f32 %v599, %v368
      %v601 = vsel %vm564, %v369, 0.0
      %v602 = vadd.f32 %v600, %v601
      %603 = vadd.xlane.f32.xlu0 %v602
      %v604 = vpop.xlane.xlu0 %603
      %v605 = vadd.f32 %v370, %v371
      %v606 = vadd.f32 %v605, %v372
      %v607 = vadd.f32 %v606, %v373
      %v608 = vadd.f32 %v607, %v374
      %v609 = vadd.f32 %v608, %v375
      %v610 = vsel %vm564, %v376, 0.0
      %v611 = vadd.f32 %v609, %v610
      %612 = vadd.xlane.f32.xlu0 %v611
      %v613 = vpop.xlane.xlu0 %612
      %v614 = vadd.f32 %v377, %v378
      %v615 = vadd.f32 %v614, %v379
      %v616 = vadd.f32 %v615, %v380
      %v617 = vadd.f32 %v616, %v381
      %v618 = vadd.f32 %v617, %v382
      %v619 = vsel %vm564, %v383, 0.0
      %v620 = vadd.f32 %v618, %v619
      %621 = vadd.xlane.f32.xlu0 %v620
      %v622 = vpop.xlane.xlu0 %621
      %v623 = vadd.f32 %v384, %v385
      %v624 = vadd.f32 %v623, %v386
      %v625 = vadd.f32 %v624, %v387
      %v626 = vadd.f32 %v625, %v388
      %v627 = vadd.f32 %v626, %v389
      %v628 = vsel %vm564, %v390, 0.0
      %v629 = vadd.f32 %v627, %v628
      %630 = vadd.xlane.f32.xlu0 %v629
      %v631 = vpop.xlane.xlu0 %630
      %v632 = vadd.f32 %v391, %v392
      %v633 = vadd.f32 %v632, %v393
      %v634 = vadd.f32 %v633, %v394
      %v635 = vadd.f32 %v634, %v395
      %v636 = vadd.f32 %v635, %v396
      %v637 = vsel %vm564, %v397, 0.0
      %v638 = vadd.f32 %v636, %v637
      %639 = vadd.xlane.f32.xlu0 %v638
      %v640 = vpop.xlane.xlu0 %639
      %v641 = vadd.f32 %v398, %v399
      %v642 = vadd.f32 %v641, %v400
      %v643 = vadd.f32 %v642, %v401
      %v644 = vadd.f32 %v643, %v402
      %v645 = vadd.f32 %v644, %v403
      %v646 = vsel %vm564, %v404, 0.0
      %v647 = vadd.f32 %v645, %v646
      %648 = vadd.xlane.f32.xlu0 %v647
      %v649 = vpop.xlane.xlu0 %648
      %v650 = vadd.f32 %v405, %v406
      %v651 = vadd.f32 %v650, %v407
      %v652 = vadd.f32 %v651, %v408
      %v653 = vadd.f32 %v652, %v409
      %v654 = vadd.f32 %v653, %v410
      %v655 = vsel %vm564, %v411, 0.0
      %v656 = vadd.f32 %v654, %v655
      %657 = vadd.xlane.f32.xlu0 %v656
      %v658 = vpop.xlane.xlu0 %657
      %v659 = vadd.f32 %v412, %v413
      %v660 = vadd.f32 %v659, %v414
      %v661 = vadd.f32 %v660, %v415
      %v662 = vadd.f32 %v661, %v416
      %v663 = vadd.f32 %v662, %v417
      %v664 = vsel %vm564, %v418, 0.0
      %v665 = vadd.f32 %v663, %v664
      %666 = vadd.xlane.f32.xlu0 %v665
      %v667 = vpop.xlane.xlu0 %666
      %v668 = vadd.f32 %v419, %v420
      %v669 = vadd.f32 %v668, %v421
      %v670 = vadd.f32 %v669, %v422
      %v671 = vadd.f32 %v670, %v423
      %v672 = vadd.f32 %v671, %v424
      %v673 = vsel %vm564, %v425, 0.0
      %v674 = vadd.f32 %v672, %v673
      %675 = vadd.xlane.f32.xlu0 %v674
      %v676 = vpop.xlane.xlu0 %675
      %v677 = vadd.f32 %v426, %v427
      %v678 = vadd.f32 %v677, %v428
      %v679 = vadd.f32 %v678, %v429
      %v680 = vadd.f32 %v679, %v430
      %v681 = vadd.f32 %v680, %v431
      %v682 = vsel %vm564, %v432, 0.0
      %v683 = vadd.f32 %v681, %v682
      %684 = vadd.xlane.f32.xlu0 %v683
      %v685 = vpop.xlane.xlu0 %684
      %v686 = vadd.f32 %v433, %v434
      %v687 = vadd.f32 %v686, %v435
      %v688 = vadd.f32 %v687, %v436
      %v689 = vadd.f32 %v688, %v437
      %v690 = vadd.f32 %v689, %v438
      %v691 = vsel %vm564, %v439, 0.0
      %v692 = vadd.f32 %v690, %v691
      %693 = vadd.xlane.f32.xlu0 %v692
      %v694 = vpop.xlane.xlu0 %693
      %v695 = vadd.f32 %v440, %v441
      %v696 = vadd.f32 %v695, %v442
      %v697 = vadd.f32 %v696, %v443
      %v698 = vadd.f32 %v697, %v444
      %v699 = vadd.f32 %v698, %v445
      %v700 = vsel %vm564, %v446, 0.0
      %v701 = vadd.f32 %v699, %v700
      %702 = vadd.xlane.f32.xlu0 %v701
      %v703 = vpop.xlane.xlu0 %702
      %v704 = vadd.f32 %v447, %v448
      %v705 = vadd.f32 %v704, %v449
      %v706 = vadd.f32 %v705, %v450
      %v707 = vadd.f32 %v706, %v451
      %v708 = vadd.f32 %v707, %v452
      %v709 = vsel %vm564, %v453, 0.0
      %v710 = vadd.f32 %v708, %v709
      %711 = vadd.xlane.f32.xlu0 %v710
      %v712 = vpop.xlane.xlu0 %711
      %v713 = vadd.f32 %v454, %v455
      %v714 = vadd.f32 %v713, %v456
      %v715 = vadd.f32 %v714, %v457
      %v716 = vadd.f32 %v715, %v458
      %v717 = vadd.f32 %v716, %v459
      %v718 = vsel %vm564, %v460, 0.0
      %v719 = vadd.f32 %v717, %v718
      %720 = vadd.xlane.f32.xlu0 %v719
      %v721 = vpop.xlane.xlu0 %720
      %v722 = vadd.f32 %v461, %v462
      %v723 = vadd.f32 %v722, %v463
      %v724 = vadd.f32 %v723, %v464
      %v725 = vadd.f32 %v724, %v465
      %v726 = vadd.f32 %v725, %v466
      %v727 = vsel %vm564, %v467, 0.0
      %v728 = vadd.f32 %v726, %v727
      %729 = vadd.xlane.f32.xlu0 %v728
      %v730 = vpop.xlane.xlu0 %729
      %v731 = vadd.f32 %v468, %v469
      %v732 = vadd.f32 %v731, %v470
      %v733 = vadd.f32 %v732, %v471
      %v734 = vadd.f32 %v733, %v472
      %v735 = vadd.f32 %v734, %v473
      %v736 = vsel %vm564, %v474, 0.0
      %v737 = vadd.f32 %v735, %v736
      %738 = vadd.xlane.f32.xlu0 %v737
      %v739 = vpop.xlane.xlu0 %738
      %v740 = vadd.f32 %v475, %v476
      %v741 = vadd.f32 %v740, %v477
      %v742 = vadd.f32 %v741, %v478
      %v743 = vadd.f32 %v742, %v479
      %v744 = vadd.f32 %v743, %v480
      %v745 = vsel %vm564, %v481, 0.0
      %v746 = vadd.f32 %v744, %v745
      %747 = vadd.xlane.f32.xlu0 %v746
      %v748 = vpop.xlane.xlu0 %747
      %v749 = vadd.f32 %v482, %v483
      %v750 = vadd.f32 %v749, %v484
      %v751 = vadd.f32 %v750, %v485
      %v752 = vadd.f32 %v751, %v486
      %v753 = vadd.f32 %v752, %v487
      %v754 = vsel %vm564, %v488, 0.0
      %v755 = vadd.f32 %v753, %v754
      %756 = vadd.xlane.f32.xlu0 %v755
      %v757 = vpop.xlane.xlu0 %756
      %v758 = vadd.f32 %v489, %v490
      %v759 = vadd.f32 %v758, %v491
      %v760 = vadd.f32 %v759, %v492
      %v761 = vadd.f32 %v760, %v493
      %v762 = vadd.f32 %v761, %v494
      %v763 = vsel %vm564, %v495, 0.0
      %v764 = vadd.f32 %v762, %v763
      %765 = vadd.xlane.f32.xlu0 %v764
      %v766 = vpop.xlane.xlu0 %765
      %v767 = vadd.f32 %v496, %v497
      %v768 = vadd.f32 %v767, %v498
      %v769 = vadd.f32 %v768, %v499
      %v770 = vadd.f32 %v769, %v500
      %v771 = vadd.f32 %v770, %v501
      %v772 = vsel %vm564, %v502, 0.0
      %v773 = vadd.f32 %v771, %v772
      %774 = vadd.xlane.f32.xlu0 %v773
      %v775 = vpop.xlane.xlu0 %774
      %v776 = vadd.f32 %v503, %v504
      %v777 = vadd.f32 %v776, %v505
      %v778 = vadd.f32 %v777, %v506
      %v779 = vadd.f32 %v778, %v507
      %v780 = vadd.f32 %v779, %v508
      %v781 = vsel %vm564, %v509, 0.0
      %v782 = vadd.f32 %v780, %v781
      %783 = vadd.xlane.f32.xlu0 %v782
      %v784 = vpop.xlane.xlu0 %783
      %v785 = vadd.f32 %v510, %v511
      %v786 = vadd.f32 %v785, %v512
      %v787 = vadd.f32 %v786, %v513
      %v788 = vadd.f32 %v787, %v514
      %v789 = vadd.f32 %v788, %v515
      %v790 = vsel %vm564, %v516, 0.0
      %v791 = vadd.f32 %v789, %v790
      %792 = vadd.xlane.f32.xlu0 %v791
      %v793 = vpop.xlane.xlu0 %792
      %v794 = vadd.f32 %v517, %v518
      %v795 = vadd.f32 %v794, %v519
      %v796 = vadd.f32 %v795, %v520
      %v797 = vadd.f32 %v796, %v521
      %v798 = vadd.f32 %v797, %v522
      %v799 = vsel %vm564, %v523, 0.0
      %v800 = vadd.f32 %v798, %v799
      %801 = vadd.xlane.f32.xlu0 %v800
      %v802 = vpop.xlane.xlu0 %801
      %v803 = vadd.f32 %v524, %v525
      %v804 = vadd.f32 %v803, %v526
      %v805 = vadd.f32 %v804, %v527
      %v806 = vadd.f32 %v805, %v528
      %v807 = vadd.f32 %v806, %v529
      %v808 = vsel %vm564, %v530, 0.0
      %v809 = vadd.f32 %v807, %v808
      %810 = vadd.xlane.f32.xlu0 %v809
      %v811 = vpop.xlane.xlu0 %810
      %v812 = vadd.f32 %v531, %v532
      %v813 = vadd.f32 %v812, %v533
      %v814 = vadd.f32 %v813, %v534
      %v815 = vadd.f32 %v814, %v535
      %v816 = vadd.f32 %v815, %v536
      %v817 = vsel %vm564, %v537, 0.0
      %v818 = vadd.f32 %v816, %v817
      %819 = vadd.xlane.f32.xlu0 %v818
      %v820 = vpop.xlane.xlu0 %819
      %v821 = vadd.f32 %v538, %v539
      %v822 = vadd.f32 %v821, %v540
      %v823 = vadd.f32 %v822, %v541
      %v824 = vadd.f32 %v823, %v542
      %v825 = vadd.f32 %v824, %v543
      %v826 = vsel %vm564, %v544, 0.0
      %v827 = vadd.f32 %v825, %v826
      %828 = vadd.xlane.f32.xlu0 %v827
      %v829 = vpop.xlane.xlu0 %828
      %v830 = vadd.f32 %v545, %v546
      %v831 = vadd.f32 %v830, %v547
      %v832 = vadd.f32 %v831, %v548
      %v833 = vadd.f32 %v832, %v549
      %v834 = vadd.f32 %v833, %v550
      %v835 = vsel %vm564, %v551, 0.0
      %v836 = vadd.f32 %v834, %v835
      %837 = vadd.xlane.f32.xlu0 %v836
      %v838 = vpop.xlane.xlu0 %837
      %v839 = vadd.f32 %v552, %v553
      %v840 = vadd.f32 %v839, %v554
      %v841 = vadd.f32 %v840, %v555
      %v842 = vadd.f32 %v841, %v556
      %v843 = vadd.f32 %v842, %v557
      %v844 = vsel %vm564, %v558, 0.0
      %v845 = vadd.f32 %v843, %v844
      %846 = vadd.xlane.f32.xlu0 %v845
      %v847 = vpop.xlane.xlu0 %846
      %v848 = vmul.f32 %v568, 0.0012755102
      %v849 = vmul.f32 %v577, 0.0012755102
      %v850 = vmul.f32 %v586, 0.0012755102
      %v851 = vmul.f32 %v595, 0.0012755102
      %v852 = vmul.f32 %v604, 0.0012755102
      %v853 = vmul.f32 %v613, 0.0012755102
      %v854 = vmul.f32 %v622, 0.0012755102
      %v855 = vmul.f32 %v631, 0.0012755102
      %v856 = vmul.f32 %v640, 0.0012755102
      %v857 = vmul.f32 %v649, 0.0012755102
      %v858 = vmul.f32 %v658, 0.0012755102
      %v859 = vmul.f32 %v667, 0.0012755102
      %v860 = vmul.f32 %v676, 0.0012755102
      %v861 = vmul.f32 %v685, 0.0012755102
      %v862 = vmul.f32 %v694, 0.0012755102
      %v863 = vmul.f32 %v703, 0.0012755102
      %v864 = vmul.f32 %v712, 0.0012755102
      %v865 = vmul.f32 %v721, 0.0012755102
      %v866 = vmul.f32 %v730, 0.0012755102
      %v867 = vmul.f32 %v739, 0.0012755102
      %v868 = vmul.f32 %v748, 0.0012755102
      %v869 = vmul.f32 %v757, 0.0012755102
      %v870 = vmul.f32 %v766, 0.0012755102
      %v871 = vmul.f32 %v775, 0.0012755102
      %v872 = vmul.f32 %v784, 0.0012755102
      %v873 = vmul.f32 %v793, 0.0012755102
      %v874 = vmul.f32 %v802, 0.0012755102
      %v875 = vmul.f32 %v811, 0.0012755102
      %v876 = vmul.f32 %v820, 0.0012755102
      %v877 = vmul.f32 %v829, 0.0012755102
      %v878 = vmul.f32 %v838, 0.0012755102
      %v879 = vmul.f32 %v847, 0.0012755102
      %v880 = vsub.f32 %v335, %v848
      %v881 = vsub.f32 %v336, %v848
      %v882 = vsub.f32 %v337, %v848
      %v883 = vsub.f32 %v338, %v848
      %v884 = vsub.f32 %v339, %v848
      %v885 = vsub.f32 %v340, %v848
      %v886 = vsub.f32 %v341, %v848
      %v887 = vsub.f32 %v342, %v849
      %v888 = vsub.f32 %v343, %v849
      %v889 = vsub.f32 %v344, %v849
      %v890 = vsub.f32 %v345, %v849
      %v891 = vsub.f32 %v346, %v849
      %v892 = vsub.f32 %v347, %v849
      %v893 = vsub.f32 %v348, %v849
      %v894 = vsub.f32 %v349, %v850
      %v895 = vsub.f32 %v350, %v850
      %v896 = vsub.f32 %v351, %v850
      %v897 = vsub.f32 %v352, %v850
      %v898 = vsub.f32 %v353, %v850
      %v899 = vsub.f32 %v354, %v850
      %v900 = vsub.f32 %v355, %v850
      %v901 = vsub.f32 %v356, %v851
      %v902 = vsub.f32 %v357, %v851
      %v903 = vsub.f32 %v358, %v851
      %v904 = vsub.f32 %v359, %v851
      %v905 = vsub.f32 %v360, %v851
      %v906 = vsub.f32 %v361, %v851
      %v907 = vsub.f32 %v362, %v851
      %v908 = vsub.f32 %v363, %v852
      %v909 = vsub.f32 %v364, %v852
      %v910 = vsub.f32 %v365, %v852
      %v911 = vsub.f32 %v366, %v852
      %v912 = vsub.f32 %v367, %v852
      %v913 = vsub.f32 %v368, %v852
      %v914 = vsub.f32 %v369, %v852
      %v915 = vsub.f32 %v370, %v853
      %v916 = vsub.f32 %v371, %v853
      %v917 = vsub.f32 %v372, %v853
      %v918 = vsub.f32 %v373, %v853
      %v919 = vsub.f32 %v374, %v853
      %v920 = vsub.f32 %v375, %v853
      %v921 = vsub.f32 %v376, %v853
      %v922 = vsub.f32 %v377, %v854
      %v923 = vsub.f32 %v378, %v854
      %v924 = vsub.f32 %v379, %v854
      %v925 = vsub.f32 %v380, %v854
      %v926 = vsub.f32 %v381, %v854
      %v927 = vsub.f32 %v382, %v854
      %v928 = vsub.f32 %v383, %v854
      %v929 = vsub.f32 %v384, %v855
      %v930 = vsub.f32 %v385, %v855
      %v931 = vsub.f32 %v386, %v855
      %v932 = vsub.f32 %v387, %v855
      %v933 = vsub.f32 %v388, %v855
      %v934 = vsub.f32 %v389, %v855
      %v935 = vsub.f32 %v390, %v855
      %v936 = vsub.f32 %v391, %v856
      %v937 = vsub.f32 %v392, %v856
      %v938 = vsub.f32 %v393, %v856
      %v939 = vsub.f32 %v394, %v856
      %v940 = vsub.f32 %v395, %v856
      %v941 = vsub.f32 %v396, %v856
      %v942 = vsub.f32 %v397, %v856
      %v943 = vsub.f32 %v398, %v857
      %v944 = vsub.f32 %v399, %v857
      %v945 = vsub.f32 %v400, %v857
      %v946 = vsub.f32 %v401, %v857
      %v947 = vsub.f32 %v402, %v857
      %v948 = vsub.f32 %v403, %v857
      %v949 = vsub.f32 %v404, %v857
      %v950 = vsub.f32 %v405, %v858
      %v951 = vsub.f32 %v406, %v858
      %v952 = vsub.f32 %v407, %v858
      %v953 = vsub.f32 %v408, %v858
      %v954 = vsub.f32 %v409, %v858
      %v955 = vsub.f32 %v410, %v858
      %v956 = vsub.f32 %v411, %v858
      %v957 = vsub.f32 %v412, %v859
      %v958 = vsub.f32 %v413, %v859
      %v959 = vsub.f32 %v414, %v859
      %v960 = vsub.f32 %v415, %v859
      %v961 = vsub.f32 %v416, %v859
      %v962 = vsub.f32 %v417, %v859
      %v963 = vsub.f32 %v418, %v859
      %v964 = vsub.f32 %v419, %v860
      %v965 = vsub.f32 %v420, %v860
      %v966 = vsub.f32 %v421, %v860
      %v967 = vsub.f32 %v422, %v860
      %v968 = vsub.f32 %v423, %v860
      %v969 = vsub.f32 %v424, %v860
      %v970 = vsub.f32 %v425, %v860
      %v971 = vsub.f32 %v426, %v861
      %v972 = vsub.f32 %v427, %v861
      %v973 = vsub.f32 %v428, %v861
      %v974 = vsub.f32 %v429, %v861
      %v975 = vsub.f32 %v430, %v861
      %v976 = vsub.f32 %v431, %v861
      %v977 = vsub.f32 %v432, %v861
      %v978 = vsub.f32 %v433, %v862
      %v979 = vsub.f32 %v434, %v862
      %v980 = vsub.f32 %v435, %v862
      %v981 = vsub.f32 %v436, %v862
      %v982 = vsub.f32 %v437, %v862
      %v983 = vsub.f32 %v438, %v862
      %v984 = vsub.f32 %v439, %v862
      %v985 = vsub.f32 %v440, %v863
      %v986 = vsub.f32 %v441, %v863
      %v987 = vsub.f32 %v442, %v863
      %v988 = vsub.f32 %v443, %v863
      %v989 = vsub.f32 %v444, %v863
      %v990 = vsub.f32 %v445, %v863
      %v991 = vsub.f32 %v446, %v863
      %v992 = vsub.f32 %v447, %v864
      %v993 = vsub.f32 %v448, %v864
      %v994 = vsub.f32 %v449, %v864
      %v995 = vsub.f32 %v450, %v864
      %v996 = vsub.f32 %v451, %v864
      %v997 = vsub.f32 %v452, %v864
      %v998 = vsub.f32 %v453, %v864
      %v999 = vsub.f32 %v454, %v865
      %v1000 = vsub.f32 %v455, %v865
      %v1001 = vsub.f32 %v456, %v865
      %v1002 = vsub.f32 %v457, %v865
      %v1003 = vsub.f32 %v458, %v865
      %v1004 = vsub.f32 %v459, %v865
      %v1005 = vsub.f32 %v460, %v865
      %v1006 = vsub.f32 %v461, %v866
      %v1007 = vsub.f32 %v462, %v866
      %v1008 = vsub.f32 %v463, %v866
      %v1009 = vsub.f32 %v464, %v866
      %v1010 = vsub.f32 %v465, %v866
      %v1011 = vsub.f32 %v466, %v866
      %v1012 = vsub.f32 %v467, %v866
      %v1013 = vsub.f32 %v468, %v867
      %v1014 = vsub.f32 %v469, %v867
      %v1015 = vsub.f32 %v470, %v867
      %v1016 = vsub.f32 %v471, %v867
      %v1017 = vsub.f32 %v472, %v867
      %v1018 = vsub.f32 %v473, %v867
      %v1019 = vsub.f32 %v474, %v867
      %v1020 = vsub.f32 %v475, %v868
      %v1021 = vsub.f32 %v476, %v868
      %v1022 = vsub.f32 %v477, %v868
      %v1023 = vsub.f32 %v478, %v868
      %v1024 = vsub.f32 %v479, %v868
      %v1025 = vsub.f32 %v480, %v868
      %v1026 = vsub.f32 %v481, %v868
      %v1027 = vsub.f32 %v482, %v869
      %v1028 = vsub.f32 %v483, %v869
      %v1029 = vsub.f32 %v484, %v869
      %v1030 = vsub.f32 %v485, %v869
      %v1031 = vsub.f32 %v486, %v869
      %v1032 = vsub.f32 %v487, %v869
      %v1033 = vsub.f32 %v488, %v869
      %v1034 = vsub.f32 %v489, %v870
      %v1035 = vsub.f32 %v490, %v870
      %v1036 = vsub.f32 %v491, %v870
      %v1037 = vsub.f32 %v492, %v870
      %v1038 = vsub.f32 %v493, %v870
      %v1039 = vsub.f32 %v494, %v870
      %v1040 = vsub.f32 %v495, %v870
      %v1041 = vsub.f32 %v496, %v871
      %v1042 = vsub.f32 %v497, %v871
      %v1043 = vsub.f32 %v498, %v871
      %v1044 = vsub.f32 %v499, %v871
      %v1045 = vsub.f32 %v500, %v871
      %v1046 = vsub.f32 %v501, %v871
      %v1047 = vsub.f32 %v502, %v871
      %v1048 = vsub.f32 %v503, %v872
      %v1049 = vsub.f32 %v504, %v872
      %v1050 = vsub.f32 %v505, %v872
      %v1051 = vsub.f32 %v506, %v872
      %v1052 = vsub.f32 %v507, %v872
      %v1053 = vsub.f32 %v508, %v872
      %v1054 = vsub.f32 %v509, %v872
      %v1055 = vsub.f32 %v510, %v873
      %v1056 = vsub.f32 %v511, %v873
      %v1057 = vsub.f32 %v512, %v873
      %v1058 = vsub.f32 %v513, %v873
      %v1059 = vsub.f32 %v514, %v873
      %v1060 = vsub.f32 %v515, %v873
      %v1061 = vsub.f32 %v516, %v873
      %v1062 = vsub.f32 %v517, %v874
      %v1063 = vsub.f32 %v518, %v874
      %v1064 = vsub.f32 %v519, %v874
      %v1065 = vsub.f32 %v520, %v874
      %v1066 = vsub.f32 %v521, %v874
      %v1067 = vsub.f32 %v522, %v874
      %v1068 = vsub.f32 %v523, %v874
      %v1069 = vsub.f32 %v524, %v875
      %v1070 = vsub.f32 %v525, %v875
      %v1071 = vsub.f32 %v526, %v875
      %v1072 = vsub.f32 %v527, %v875
      %v1073 = vsub.f32 %v528, %v875
      %v1074 = vsub.f32 %v529, %v875
      %v1075 = vsub.f32 %v530, %v875
      %v1076 = vsub.f32 %v531, %v876
      %v1077 = vsub.f32 %v532, %v876
      %v1078 = vsub.f32 %v533, %v876
      %v1079 = vsub.f32 %v534, %v876
      %v1080 = vsub.f32 %v535, %v876
      %v1081 = vsub.f32 %v536, %v876
      %v1082 = vsub.f32 %v537, %v876
      %v1083 = vsub.f32 %v538, %v877
      %v1084 = vsub.f32 %v539, %v877
      %v1085 = vsub.f32 %v540, %v877
      %v1086 = vsub.f32 %v541, %v877
      %v1087 = vsub.f32 %v542, %v877
      %v1088 = vsub.f32 %v543, %v877
      %v1089 = vsub.f32 %v544, %v877
      %v1090 = vsub.f32 %v545, %v878
      %v1091 = vsub.f32 %v546, %v878
      %v1092 = vsub.f32 %v547, %v878
      %v1093 = vsub.f32 %v548, %v878
      %v1094 = vsub.f32 %v549, %v878
      %v1095 = vsub.f32 %v550, %v878
      %v1096 = vsub.f32 %v551, %v878
      %v1097 = vsub.f32 %v552, %v879
      %v1098 = vsub.f32 %v553, %v879
      %v1099 = vsub.f32 %v554, %v879
      %v1100 = vsub.f32 %v555, %v879
      %v1101 = vsub.f32 %v556, %v879
      %v1102 = vsub.f32 %v557, %v879
      %v1103 = vsub.f32 %v558, %v879
      %v1104 = vmul.f32 %v880, %v880
      %v1105 = vmul.f32 %v881, %v881
      %v1106 = vmul.f32 %v882, %v882
      %v1107 = vmul.f32 %v883, %v883
      %v1108 = vmul.f32 %v884, %v884
      %v1109 = vmul.f32 %v885, %v885
      %v1110 = vmul.f32 %v886, %v886
      %v1111 = vmul.f32 %v887, %v887
      %v1112 = vmul.f32 %v888, %v888
      %v1113 = vmul.f32 %v889, %v889
      %v1114 = vmul.f32 %v890, %v890
      %v1115 = vmul.f32 %v891, %v891
      %v1116 = vmul.f32 %v892, %v892
      %v1117 = vmul.f32 %v893, %v893
      %v1118 = vmul.f32 %v894, %v894
      %v1119 = vmul.f32 %v895, %v895
      %v1120 = vmul.f32 %v896, %v896
      %v1121 = vmul.f32 %v897, %v897
      %v1122 = vmul.f32 %v898, %v898
      %v1123 = vmul.f32 %v899, %v899
      %v1124 = vmul.f32 %v900, %v900
      %v1125 = vmul.f32 %v901, %v901
      %v1126 = vmul.f32 %v902, %v902
      %v1127 = vmul.f32 %v903, %v903
      %v1128 = vmul.f32 %v904, %v904
      %v1129 = vmul.f32 %v905, %v905
      %v1130 = vmul.f32 %v906, %v906
      %v1131 = vmul.f32 %v907, %v907
      %v1132 = vmul.f32 %v908, %v908
      %v1133 = vmul.f32 %v909, %v909
      %v1134 = vmul.f32 %v910, %v910
      %v1135 = vmul.f32 %v911, %v911
      %v1136 = vmul.f32 %v912, %v912
      %v1137 = vmul.f32 %v913, %v913
      %v1138 = vmul.f32 %v914, %v914
      %v1139 = vmul.f32 %v915, %v915
      %v1140 = vmul.f32 %v916, %v916
      %v1141 = vmul.f32 %v917, %v917
      %v1142 = vmul.f32 %v918, %v918
      %v1143 = vmul.f32 %v919, %v919
      %v1144 = vmul.f32 %v920, %v920
      %v1145 = vmul.f32 %v921, %v921
      %v1146 = vmul.f32 %v922, %v922
      %v1147 = vmul.f32 %v923, %v923
      %v1148 = vmul.f32 %v924, %v924
      %v1149 = vmul.f32 %v925, %v925
      %v1150 = vmul.f32 %v926, %v926
      %v1151 = vmul.f32 %v927, %v927
      %v1152 = vmul.f32 %v928, %v928
      %v1153 = vmul.f32 %v929, %v929
      %v1154 = vmul.f32 %v930, %v930
      %v1155 = vmul.f32 %v931, %v931
      %v1156 = vmul.f32 %v932, %v932
      %v1157 = vmul.f32 %v933, %v933
      %v1158 = vmul.f32 %v934, %v934
      %v1159 = vmul.f32 %v935, %v935
      %v1160 = vmul.f32 %v936, %v936
      %v1161 = vmul.f32 %v937, %v937
      %v1162 = vmul.f32 %v938, %v938
      %v1163 = vmul.f32 %v939, %v939
      %v1164 = vmul.f32 %v940, %v940
      %v1165 = vmul.f32 %v941, %v941
      %v1166 = vmul.f32 %v942, %v942
      %v1167 = vmul.f32 %v943, %v943
      %v1168 = vmul.f32 %v944, %v944
      %v1169 = vmul.f32 %v945, %v945
      %v1170 = vmul.f32 %v946, %v946
      %v1171 = vmul.f32 %v947, %v947
      %v1172 = vmul.f32 %v948, %v948
      %v1173 = vmul.f32 %v949, %v949
      %v1174 = vmul.f32 %v950, %v950
      %v1175 = vmul.f32 %v951, %v951
      %v1176 = vmul.f32 %v952, %v952
      %v1177 = vmul.f32 %v953, %v953
      %v1178 = vmul.f32 %v954, %v954
      %v1179 = vmul.f32 %v955, %v955
      %v1180 = vmul.f32 %v956, %v956
      %v1181 = vmul.f32 %v957, %v957
      %v1182 = vmul.f32 %v958, %v958
      %v1183 = vmul.f32 %v959, %v959
      %v1184 = vmul.f32 %v960, %v960
      %v1185 = vmul.f32 %v961, %v961
      %v1186 = vmul.f32 %v962, %v962
      %v1187 = vmul.f32 %v963, %v963
      %v1188 = vmul.f32 %v964, %v964
      %v1189 = vmul.f32 %v965, %v965
      %v1190 = vmul.f32 %v966, %v966
      %v1191 = vmul.f32 %v967, %v967
      %v1192 = vmul.f32 %v968, %v968
      %v1193 = vmul.f32 %v969, %v969
      %v1194 = vmul.f32 %v970, %v970
      %v1195 = vmul.f32 %v971, %v971
      %v1196 = vmul.f32 %v972, %v972
      %v1197 = vmul.f32 %v973, %v973
      %v1198 = vmul.f32 %v974, %v974
      %v1199 = vmul.f32 %v975, %v975
      %v1200 = vmul.f32 %v976, %v976
      %v1201 = vmul.f32 %v977, %v977
      %v1202 = vmul.f32 %v978, %v978
      %v1203 = vmul.f32 %v979, %v979
      %v1204 = vmul.f32 %v980, %v980
      %v1205 = vmul.f32 %v981, %v981
      %v1206 = vmul.f32 %v982, %v982
      %v1207 = vmul.f32 %v983, %v983
      %v1208 = vmul.f32 %v984, %v984
      %v1209 = vmul.f32 %v985, %v985
      %v1210 = vmul.f32 %v986, %v986
      %v1211 = vmul.f32 %v987, %v987
      %v1212 = vmul.f32 %v988, %v988
      %v1213 = vmul.f32 %v989, %v989
      %v1214 = vmul.f32 %v990, %v990
      %v1215 = vmul.f32 %v991, %v991
      %v1216 = vmul.f32 %v992, %v992
      %v1217 = vmul.f32 %v993, %v993
      %v1218 = vmul.f32 %v994, %v994
      %v1219 = vmul.f32 %v995, %v995
      %v1220 = vmul.f32 %v996, %v996
      %v1221 = vmul.f32 %v997, %v997
      %v1222 = vmul.f32 %v998, %v998
      %v1223 = vmul.f32 %v999, %v999
      %v1224 = vmul.f32 %v1000, %v1000
      %v1225 = vmul.f32 %v1001, %v1001
      %v1226 = vmul.f32 %v1002, %v1002
      %v1227 = vmul.f32 %v1003, %v1003
      %v1228 = vmul.f32 %v1004, %v1004
      %v1229 = vmul.f32 %v1005, %v1005
      %v1230 = vmul.f32 %v1006, %v1006
      %v1231 = vmul.f32 %v1007, %v1007
      %v1232 = vmul.f32 %v1008, %v1008
      %v1233 = vmul.f32 %v1009, %v1009
      %v1234 = vmul.f32 %v1010, %v1010
      %v1235 = vmul.f32 %v1011, %v1011
      %v1236 = vmul.f32 %v1012, %v1012
      %v1237 = vmul.f32 %v1013, %v1013
      %v1238 = vmul.f32 %v1014, %v1014
      %v1239 = vmul.f32 %v1015, %v1015
      %v1240 = vmul.f32 %v1016, %v1016
      %v1241 = vmul.f32 %v1017, %v1017
      %v1242 = vmul.f32 %v1018, %v1018
      %v1243 = vmul.f32 %v1019, %v1019
      %v1244 = vmul.f32 %v1020, %v1020
      %v1245 = vmul.f32 %v1021, %v1021
      %v1246 = vmul.f32 %v1022, %v1022
      %v1247 = vmul.f32 %v1023, %v1023
      %v1248 = vmul.f32 %v1024, %v1024
      %v1249 = vmul.f32 %v1025, %v1025
      %v1250 = vmul.f32 %v1026, %v1026
      %v1251 = vmul.f32 %v1027, %v1027
      %v1252 = vmul.f32 %v1028, %v1028
      %v1253 = vmul.f32 %v1029, %v1029
      %v1254 = vmul.f32 %v1030, %v1030
      %v1255 = vmul.f32 %v1031, %v1031
      %v1256 = vmul.f32 %v1032, %v1032
      %v1257 = vmul.f32 %v1033, %v1033
      %v1258 = vmul.f32 %v1034, %v1034
      %v1259 = vmul.f32 %v1035, %v1035
      %v1260 = vmul.f32 %v1036, %v1036
      %v1261 = vmul.f32 %v1037, %v1037
      %v1262 = vmul.f32 %v1038, %v1038
      %v1263 = vmul.f32 %v1039, %v1039
      %v1264 = vmul.f32 %v1040, %v1040
      %v1265 = vmul.f32 %v1041, %v1041
      %v1266 = vmul.f32 %v1042, %v1042
      %v1267 = vmul.f32 %v1043, %v1043
      %v1268 = vmul.f32 %v1044, %v1044
      %v1269 = vmul.f32 %v1045, %v1045
      %v1270 = vmul.f32 %v1046, %v1046
      %v1271 = vmul.f32 %v1047, %v1047
      %v1272 = vmul.f32 %v1048, %v1048
      %v1273 = vmul.f32 %v1049, %v1049
      %v1274 = vmul.f32 %v1050, %v1050
      %v1275 = vmul.f32 %v1051, %v1051
      %v1276 = vmul.f32 %v1052, %v1052
      %v1277 = vmul.f32 %v1053, %v1053
      %v1278 = vmul.f32 %v1054, %v1054
      %v1279 = vmul.f32 %v1055, %v1055
      %v1280 = vmul.f32 %v1056, %v1056
      %v1281 = vmul.f32 %v1057, %v1057
      %v1282 = vmul.f32 %v1058, %v1058
      %v1283 = vmul.f32 %v1059, %v1059
      %v1284 = vmul.f32 %v1060, %v1060
      %v1285 = vmul.f32 %v1061, %v1061
      %v1286 = vmul.f32 %v1062, %v1062
      %v1287 = vmul.f32 %v1063, %v1063
      %v1288 = vmul.f32 %v1064, %v1064
      %v1289 = vmul.f32 %v1065, %v1065
      %v1290 = vmul.f32 %v1066, %v1066
      %v1291 = vmul.f32 %v1067, %v1067
      %v1292 = vmul.f32 %v1068, %v1068
      %v1293 = vmul.f32 %v1069, %v1069
      %v1294 = vmul.f32 %v1070, %v1070
      %v1295 = vmul.f32 %v1071, %v1071
      %v1296 = vmul.f32 %v1072, %v1072
      %v1297 = vmul.f32 %v1073, %v1073
      %v1298 = vmul.f32 %v1074, %v1074
      %v1299 = vmul.f32 %v1075, %v1075
      %v1300 = vmul.f32 %v1076, %v1076
      %v1301 = vmul.f32 %v1077, %v1077
      %v1302 = vmul.f32 %v1078, %v1078
      %v1303 = vmul.f32 %v1079, %v1079
      %v1304 = vmul.f32 %v1080, %v1080
      %v1305 = vmul.f32 %v1081, %v1081
      %v1306 = vmul.f32 %v1082, %v1082
      %v1307 = vmul.f32 %v1083, %v1083
      %v1308 = vmul.f32 %v1084, %v1084
      %v1309 = vmul.f32 %v1085, %v1085
      %v1310 = vmul.f32 %v1086, %v1086
      %v1311 = vmul.f32 %v1087, %v1087
      %v1312 = vmul.f32 %v1088, %v1088
      %v1313 = vmul.f32 %v1089, %v1089
      %v1314 = vmul.f32 %v1090, %v1090
      %v1315 = vmul.f32 %v1091, %v1091
      %v1316 = vmul.f32 %v1092, %v1092
      %v1317 = vmul.f32 %v1093, %v1093
      %v1318 = vmul.f32 %v1094, %v1094
      %v1319 = vmul.f32 %v1095, %v1095
      %v1320 = vmul.f32 %v1096, %v1096
      %v1321 = vmul.f32 %v1097, %v1097
      %v1322 = vmul.f32 %v1098, %v1098
      %v1323 = vmul.f32 %v1099, %v1099
      %v1324 = vmul.f32 %v1100, %v1100
      %v1325 = vmul.f32 %v1101, %v1101
      %v1326 = vmul.f32 %v1102, %v1102
      %v1327 = vmul.f32 %v1103, %v1103
      %v1328 = vadd.f32 %v1104, %v1105
      %v1329 = vadd.f32 %v1328, %v1106
      %v1330 = vadd.f32 %v1329, %v1107
      %v1331 = vadd.f32 %v1330, %v1108
      %v1332 = vadd.f32 %v1331, %v1109
      %v1333 = vsel %vm564, %v1110, 0.0
      %v1334 = vadd.f32 %v1332, %v1333
      %1335 = vadd.xlane.f32.xlu0 %v1334
      %v1336 = vpop.xlane.xlu0 %1335
      %v1337 = vadd.f32 %v1111, %v1112
      %v1338 = vadd.f32 %v1337, %v1113
      %v1339 = vadd.f32 %v1338, %v1114
      %v1340 = vadd.f32 %v1339, %v1115
      %v1341 = vadd.f32 %v1340, %v1116
      %v1342 = vsel %vm564, %v1117, 0.0
      %v1343 = vadd.f32 %v1341, %v1342
      %1344 = vadd.xlane.f32.xlu0 %v1343
      %v1345 = vpop.xlane.xlu0 %1344
      %v1346 = vadd.f32 %v1118, %v1119
      %v1347 = vadd.f32 %v1346, %v1120
      %v1348 = vadd.f32 %v1347, %v1121
      %v1349 = vadd.f32 %v1348, %v1122
      %v1350 = vadd.f32 %v1349, %v1123
      %v1351 = vsel %vm564, %v1124, 0.0
      %v1352 = vadd.f32 %v1350, %v1351
      %1353 = vadd.xlane.f32.xlu0 %v1352
      %v1354 = vpop.xlane.xlu0 %1353
      %v1355 = vadd.f32 %v1125, %v1126
      %v1356 = vadd.f32 %v1355, %v1127
      %v1357 = vadd.f32 %v1356, %v1128
      %v1358 = vadd.f32 %v1357, %v1129
      %v1359 = vadd.f32 %v1358, %v1130
      %v1360 = vsel %vm564, %v1131, 0.0
      %v1361 = vadd.f32 %v1359, %v1360
      %1362 = vadd.xlane.f32.xlu0 %v1361
      %v1363 = vpop.xlane.xlu0 %1362
      %v1364 = vadd.f32 %v1132, %v1133
      %v1365 = vadd.f32 %v1364, %v1134
      %v1366 = vadd.f32 %v1365, %v1135
      %v1367 = vadd.f32 %v1366, %v1136
      %v1368 = vadd.f32 %v1367, %v1137
      %v1369 = vsel %vm564, %v1138, 0.0
      %v1370 = vadd.f32 %v1368, %v1369
      %1371 = vadd.xlane.f32.xlu0 %v1370
      %v1372 = vpop.xlane.xlu0 %1371
      %v1373 = vadd.f32 %v1139, %v1140
      %v1374 = vadd.f32 %v1373, %v1141
      %v1375 = vadd.f32 %v1374, %v1142
      %v1376 = vadd.f32 %v1375, %v1143
      %v1377 = vadd.f32 %v1376, %v1144
      %v1378 = vsel %vm564, %v1145, 0.0
      %v1379 = vadd.f32 %v1377, %v1378
      %1380 = vadd.xlane.f32.xlu0 %v1379
      %v1381 = vpop.xlane.xlu0 %1380
      %v1382 = vadd.f32 %v1146, %v1147
      %v1383 = vadd.f32 %v1382, %v1148
      %v1384 = vadd.f32 %v1383, %v1149
      %v1385 = vadd.f32 %v1384, %v1150
      %v1386 = vadd.f32 %v1385, %v1151
      %v1387 = vsel %vm564, %v1152, 0.0
      %v1388 = vadd.f32 %v1386, %v1387
      %1389 = vadd.xlane.f32.xlu0 %v1388
      %v1390 = vpop.xlane.xlu0 %1389
      %v1391 = vadd.f32 %v1153, %v1154
      %v1392 = vadd.f32 %v1391, %v1155
      %v1393 = vadd.f32 %v1392, %v1156
      %v1394 = vadd.f32 %v1393, %v1157
      %v1395 = vadd.f32 %v1394, %v1158
      %v1396 = vsel %vm564, %v1159, 0.0
      %v1397 = vadd.f32 %v1395, %v1396
      %1398 = vadd.xlane.f32.xlu0 %v1397
      %v1399 = vpop.xlane.xlu0 %1398
      %v1400 = vadd.f32 %v1160, %v1161
      %v1401 = vadd.f32 %v1400, %v1162
      %v1402 = vadd.f32 %v1401, %v1163
      %v1403 = vadd.f32 %v1402, %v1164
      %v1404 = vadd.f32 %v1403, %v1165
      %v1405 = vsel %vm564, %v1166, 0.0
      %v1406 = vadd.f32 %v1404, %v1405
      %1407 = vadd.xlane.f32.xlu0 %v1406
      %v1408 = vpop.xlane.xlu0 %1407
      %v1409 = vadd.f32 %v1167, %v1168
      %v1410 = vadd.f32 %v1409, %v1169
      %v1411 = vadd.f32 %v1410, %v1170
      %v1412 = vadd.f32 %v1411, %v1171
      %v1413 = vadd.f32 %v1412, %v1172
      %v1414 = vsel %vm564, %v1173, 0.0
      %v1415 = vadd.f32 %v1413, %v1414
      %1416 = vadd.xlane.f32.xlu0 %v1415
      %v1417 = vpop.xlane.xlu0 %1416
      %v1418 = vadd.f32 %v1174, %v1175
      %v1419 = vadd.f32 %v1418, %v1176
      %v1420 = vadd.f32 %v1419, %v1177
      %v1421 = vadd.f32 %v1420, %v1178
      %v1422 = vadd.f32 %v1421, %v1179
      %v1423 = vsel %vm564, %v1180, 0.0
      %v1424 = vadd.f32 %v1422, %v1423
      %1425 = vadd.xlane.f32.xlu0 %v1424
      %v1426 = vpop.xlane.xlu0 %1425
      %v1427 = vadd.f32 %v1181, %v1182
      %v1428 = vadd.f32 %v1427, %v1183
      %v1429 = vadd.f32 %v1428, %v1184
      %v1430 = vadd.f32 %v1429, %v1185
      %v1431 = vadd.f32 %v1430, %v1186
      %v1432 = vsel %vm564, %v1187, 0.0
      %v1433 = vadd.f32 %v1431, %v1432
      %1434 = vadd.xlane.f32.xlu0 %v1433
      %v1435 = vpop.xlane.xlu0 %1434
      %v1436 = vadd.f32 %v1188, %v1189
      %v1437 = vadd.f32 %v1436, %v1190
      %v1438 = vadd.f32 %v1437, %v1191
      %v1439 = vadd.f32 %v1438, %v1192
      %v1440 = vadd.f32 %v1439, %v1193
      %v1441 = vsel %vm564, %v1194, 0.0
      %v1442 = vadd.f32 %v1440, %v1441
      %1443 = vadd.xlane.f32.xlu0 %v1442
      %v1444 = vpop.xlane.xlu0 %1443
      %v1445 = vadd.f32 %v1195, %v1196
      %v1446 = vadd.f32 %v1445, %v1197
      %v1447 = vadd.f32 %v1446, %v1198
      %v1448 = vadd.f32 %v1447, %v1199
      %v1449 = vadd.f32 %v1448, %v1200
      %v1450 = vsel %vm564, %v1201, 0.0
      %v1451 = vadd.f32 %v1449, %v1450
      %1452 = vadd.xlane.f32.xlu0 %v1451
      %v1453 = vpop.xlane.xlu0 %1452
      %v1454 = vadd.f32 %v1202, %v1203
      %v1455 = vadd.f32 %v1454, %v1204
      %v1456 = vadd.f32 %v1455, %v1205
      %v1457 = vadd.f32 %v1456, %v1206
      %v1458 = vadd.f32 %v1457, %v1207
      %v1459 = vsel %vm564, %v1208, 0.0
      %v1460 = vadd.f32 %v1458, %v1459
      %1461 = vadd.xlane.f32.xlu0 %v1460
      %v1462 = vpop.xlane.xlu0 %1461
      %v1463 = vadd.f32 %v1209, %v1210
      %v1464 = vadd.f32 %v1463, %v1211
      %v1465 = vadd.f32 %v1464, %v1212
      %v1466 = vadd.f32 %v1465, %v1213
      %v1467 = vadd.f32 %v1466, %v1214
      %v1468 = vsel %vm564, %v1215, 0.0
      %v1469 = vadd.f32 %v1467, %v1468
      %1470 = vadd.xlane.f32.xlu0 %v1469
      %v1471 = vpop.xlane.xlu0 %1470
      %v1472 = vadd.f32 %v1216, %v1217
      %v1473 = vadd.f32 %v1472, %v1218
      %v1474 = vadd.f32 %v1473, %v1219
      %v1475 = vadd.f32 %v1474, %v1220
      %v1476 = vadd.f32 %v1475, %v1221
      %v1477 = vsel %vm564, %v1222, 0.0
      %v1478 = vadd.f32 %v1476, %v1477
      %1479 = vadd.xlane.f32.xlu0 %v1478
      %v1480 = vpop.xlane.xlu0 %1479
      %v1481 = vadd.f32 %v1223, %v1224
      %v1482 = vadd.f32 %v1481, %v1225
      %v1483 = vadd.f32 %v1482, %v1226
      %v1484 = vadd.f32 %v1483, %v1227
      %v1485 = vadd.f32 %v1484, %v1228
      %v1486 = vsel %vm564, %v1229, 0.0
      %v1487 = vadd.f32 %v1485, %v1486
      %1488 = vadd.xlane.f32.xlu0 %v1487
      %v1489 = vpop.xlane.xlu0 %1488
      %v1490 = vadd.f32 %v1230, %v1231
      %v1491 = vadd.f32 %v1490, %v1232
      %v1492 = vadd.f32 %v1491, %v1233
      %v1493 = vadd.f32 %v1492, %v1234
      %v1494 = vadd.f32 %v1493, %v1235
      %v1495 = vsel %vm564, %v1236, 0.0
      %v1496 = vadd.f32 %v1494, %v1495
      %1497 = vadd.xlane.f32.xlu0 %v1496
      %v1498 = vpop.xlane.xlu0 %1497
      %v1499 = vadd.f32 %v1237, %v1238
      %v1500 = vadd.f32 %v1499, %v1239
      %v1501 = vadd.f32 %v1500, %v1240
      %v1502 = vadd.f32 %v1501, %v1241
      %v1503 = vadd.f32 %v1502, %v1242
      %v1504 = vsel %vm564, %v1243, 0.0
      %v1505 = vadd.f32 %v1503, %v1504
      %1506 = vadd.xlane.f32.xlu0 %v1505
      %v1507 = vpop.xlane.xlu0 %1506
      %v1508 = vadd.f32 %v1244, %v1245
      %v1509 = vadd.f32 %v1508, %v1246
      %v1510 = vadd.f32 %v1509, %v1247
      %v1511 = vadd.f32 %v1510, %v1248
      %v1512 = vadd.f32 %v1511, %v1249
      %v1513 = vsel %vm564, %v1250, 0.0
      %v1514 = vadd.f32 %v1512, %v1513
      %1515 = vadd.xlane.f32.xlu0 %v1514
      %v1516 = vpop.xlane.xlu0 %1515
      %v1517 = vadd.f32 %v1251, %v1252
      %v1518 = vadd.f32 %v1517, %v1253
      %v1519 = vadd.f32 %v1518, %v1254
      %v1520 = vadd.f32 %v1519, %v1255
      %v1521 = vadd.f32 %v1520, %v1256
      %v1522 = vsel %vm564, %v1257, 0.0
      %v1523 = vadd.f32 %v1521, %v1522
      %1524 = vadd.xlane.f32.xlu0 %v1523
      %v1525 = vpop.xlane.xlu0 %1524
      %v1526 = vadd.f32 %v1258, %v1259
      %v1527 = vadd.f32 %v1526, %v1260
      %v1528 = vadd.f32 %v1527, %v1261
      %v1529 = vadd.f32 %v1528, %v1262
      %v1530 = vadd.f32 %v1529, %v1263
      %v1531 = vsel %vm564, %v1264, 0.0
      %v1532 = vadd.f32 %v1530, %v1531
      %1533 = vadd.xlane.f32.xlu0 %v1532
      %v1534 = vpop.xlane.xlu0 %1533
      %v1535 = vadd.f32 %v1265, %v1266
      %v1536 = vadd.f32 %v1535, %v1267
      %v1537 = vadd.f32 %v1536, %v1268
      %v1538 = vadd.f32 %v1537, %v1269
      %v1539 = vadd.f32 %v1538, %v1270
      %v1540 = vsel %vm564, %v1271, 0.0
      %v1541 = vadd.f32 %v1539, %v1540
      %1542 = vadd.xlane.f32.xlu0 %v1541
      %v1543 = vpop.xlane.xlu0 %1542
      %v1544 = vadd.f32 %v1272, %v1273
      %v1545 = vadd.f32 %v1544, %v1274
      %v1546 = vadd.f32 %v1545, %v1275
      %v1547 = vadd.f32 %v1546, %v1276
      %v1548 = vadd.f32 %v1547, %v1277
      %v1549 = vsel %vm564, %v1278, 0.0
      %v1550 = vadd.f32 %v1548, %v1549
      %1551 = vadd.xlane.f32.xlu0 %v1550
      %v1552 = vpop.xlane.xlu0 %1551
      %v1553 = vadd.f32 %v1279, %v1280
      %v1554 = vadd.f32 %v1553, %v1281
      %v1555 = vadd.f32 %v1554, %v1282
      %v1556 = vadd.f32 %v1555, %v1283
      %v1557 = vadd.f32 %v1556, %v1284
      %v1558 = vsel %vm564, %v1285, 0.0
      %v1559 = vadd.f32 %v1557, %v1558
      %1560 = vadd.xlane.f32.xlu0 %v1559
      %v1561 = vpop.xlane.xlu0 %1560
      %v1562 = vadd.f32 %v1286, %v1287
      %v1563 = vadd.f32 %v1562, %v1288
      %v1564 = vadd.f32 %v1563, %v1289
      %v1565 = vadd.f32 %v1564, %v1290
      %v1566 = vadd.f32 %v1565, %v1291
      %v1567 = vsel %vm564, %v1292, 0.0
      %v1568 = vadd.f32 %v1566, %v1567
      %1569 = vadd.xlane.f32.xlu0 %v1568
      %v1570 = vpop.xlane.xlu0 %1569
      %v1571 = vadd.f32 %v1293, %v1294
      %v1572 = vadd.f32 %v1571, %v1295
      %v1573 = vadd.f32 %v1572, %v1296
      %v1574 = vadd.f32 %v1573, %v1297
      %v1575 = vadd.f32 %v1574, %v1298
      %v1576 = vsel %vm564, %v1299, 0.0
      %v1577 = vadd.f32 %v1575, %v1576
      %1578 = vadd.xlane.f32.xlu0 %v1577
      %v1579 = vpop.xlane.xlu0 %1578
      %v1580 = vadd.f32 %v1300, %v1301
      %v1581 = vadd.f32 %v1580, %v1302
      %v1582 = vadd.f32 %v1581, %v1303
      %v1583 = vadd.f32 %v1582, %v1304
      %v1584 = vadd.f32 %v1583, %v1305
      %v1585 = vsel %vm564, %v1306, 0.0
      %v1586 = vadd.f32 %v1584, %v1585
      %1587 = vadd.xlane.f32.xlu0 %v1586
      %v1588 = vpop.xlane.xlu0 %1587
      %v1589 = vadd.f32 %v1307, %v1308
      %v1590 = vadd.f32 %v1589, %v1309
      %v1591 = vadd.f32 %v1590, %v1310
      %v1592 = vadd.f32 %v1591, %v1311
      %v1593 = vadd.f32 %v1592, %v1312
      %v1594 = vsel %vm564, %v1313, 0.0
      %v1595 = vadd.f32 %v1593, %v1594
      %1596 = vadd.xlane.f32.xlu0 %v1595
      %v1597 = vpop.xlane.xlu0 %1596
      %v1598 = vadd.f32 %v1314, %v1315
      %v1599 = vadd.f32 %v1598, %v1316
      %v1600 = vadd.f32 %v1599, %v1317
      %v1601 = vadd.f32 %v1600, %v1318
      %v1602 = vadd.f32 %v1601, %v1319
      %v1603 = vsel %vm564, %v1320, 0.0
      %v1604 = vadd.f32 %v1602, %v1603
      %1605 = vadd.xlane.f32.xlu0 %v1604
      %v1606 = vpop.xlane.xlu0 %1605
      %v1607 = vadd.f32 %v1321, %v1322
      %v1608 = vadd.f32 %v1607, %v1323
      %v1609 = vadd.f32 %v1608, %v1324
      %v1610 = vadd.f32 %v1609, %v1325
      %v1611 = vadd.f32 %v1610, %v1326
      %v1612 = vsel %vm564, %v1327, 0.0
      %v1613 = vadd.f32 %v1611, %v1612
      %1614 = vadd.xlane.f32.xlu0 %v1613
      %v1615 = vpop.xlane.xlu0 %1614
      %v1616 = vmul.f32 %v1336, 0.0012755102
      %v1617 = vmul.f32 %v1345, 0.0012755102
      %v1618 = vmul.f32 %v1354, 0.0012755102
      %v1619 = vmul.f32 %v1363, 0.0012755102
      %v1620 = vmul.f32 %v1372, 0.0012755102
      %v1621 = vmul.f32 %v1381, 0.0012755102
      %v1622 = vmul.f32 %v1390, 0.0012755102
      %v1623 = vmul.f32 %v1399, 0.0012755102
      %v1624 = vmul.f32 %v1408, 0.0012755102
      %v1625 = vmul.f32 %v1417, 0.0012755102
      %v1626 = vmul.f32 %v1426, 0.0012755102
      %v1627 = vmul.f32 %v1435, 0.0012755102
      %v1628 = vmul.f32 %v1444, 0.0012755102
      %v1629 = vmul.f32 %v1453, 0.0012755102
      %v1630 = vmul.f32 %v1462, 0.0012755102
      %v1631 = vmul.f32 %v1471, 0.0012755102
      %v1632 = vmul.f32 %v1480, 0.0012755102
      %v1633 = vmul.f32 %v1489, 0.0012755102
      %v1634 = vmul.f32 %v1498, 0.0012755102
      %v1635 = vmul.f32 %v1507, 0.0012755102
      %v1636 = vmul.f32 %v1516, 0.0012755102
      %v1637 = vmul.f32 %v1525, 0.0012755102
      %v1638 = vmul.f32 %v1534, 0.0012755102
      %v1639 = vmul.f32 %v1543, 0.0012755102
      %v1640 = vmul.f32 %v1552, 0.0012755102
      %v1641 = vmul.f32 %v1561, 0.0012755102
      %v1642 = vmul.f32 %v1570, 0.0012755102
      %v1643 = vmul.f32 %v1579, 0.0012755102
      %v1644 = vmul.f32 %v1588, 0.0012755102
      %v1645 = vmul.f32 %v1597, 0.0012755102
      %v1646 = vmul.f32 %v1606, 0.0012755102
      %v1647 = vmul.f32 %v1615, 0.0012755102
      %v1648 = vadd.f32 %v1616, 1e-05
      %v1649 = vadd.f32 %v1617, 1e-05
      %v1650 = vadd.f32 %v1618, 1e-05
      %v1651 = vadd.f32 %v1619, 1e-05
      %v1652 = vadd.f32 %v1620, 1e-05
      %v1653 = vadd.f32 %v1621, 1e-05
      %v1654 = vadd.f32 %v1622, 1e-05
      %v1655 = vadd.f32 %v1623, 1e-05
      %v1656 = vadd.f32 %v1624, 1e-05
      %v1657 = vadd.f32 %v1625, 1e-05
      %v1658 = vadd.f32 %v1626, 1e-05
      %v1659 = vadd.f32 %v1627, 1e-05
      %v1660 = vadd.f32 %v1628, 1e-05
      %v1661 = vadd.f32 %v1629, 1e-05
      %v1662 = vadd.f32 %v1630, 1e-05
      %v1663 = vadd.f32 %v1631, 1e-05
      %v1664 = vadd.f32 %v1632, 1e-05
      %v1665 = vadd.f32 %v1633, 1e-05
      %v1666 = vadd.f32 %v1634, 1e-05
      %v1667 = vadd.f32 %v1635, 1e-05
      %v1668 = vadd.f32 %v1636, 1e-05
      %v1669 = vadd.f32 %v1637, 1e-05
      %v1670 = vadd.f32 %v1638, 1e-05
      %v1671 = vadd.f32 %v1639, 1e-05
      %v1672 = vadd.f32 %v1640, 1e-05
      %v1673 = vadd.f32 %v1641, 1e-05
      %v1674 = vadd.f32 %v1642, 1e-05
      %v1675 = vadd.f32 %v1643, 1e-05
      %v1676 = vadd.f32 %v1644, 1e-05
      %v1677 = vadd.f32 %v1645, 1e-05
      %v1678 = vadd.f32 %v1646, 1e-05
      %v1679 = vadd.f32 %v1647, 1e-05
      %v1680 = vrsqrt.pop %v1648
      %v1681 = vrsqrt.pop %v1649
      %v1682 = vrsqrt.pop %v1650
      %v1683 = vrsqrt.pop %v1651
      %v1684 = vrsqrt.pop %v1652
      %v1685 = vrsqrt.pop %v1653
      %v1686 = vrsqrt.pop %v1654
      %v1687 = vrsqrt.pop %v1655
      %v1688 = vrsqrt.pop %v1656
      %v1689 = vrsqrt.pop %v1657
      %v1690 = vrsqrt.pop %v1658
      %v1691 = vrsqrt.pop %v1659
      %v1692 = vrsqrt.pop %v1660
      %v1693 = vrsqrt.pop %v1661
      %v1694 = vrsqrt.pop %v1662
      %v1695 = vrsqrt.pop %v1663
      %v1696 = vrsqrt.pop %v1664
      %v1697 = vrsqrt.pop %v1665
      %v1698 = vrsqrt.pop %v1666
      %v1699 = vrsqrt.pop %v1667
      %v1700 = vrsqrt.pop %v1668
      %v1701 = vrsqrt.pop %v1669
      %v1702 = vrsqrt.pop %v1670
      %v1703 = vrsqrt.pop %v1671
      %v1704 = vrsqrt.pop %v1672
      %v1705 = vrsqrt.pop %v1673
      %v1706 = vrsqrt.pop %v1674
      %v1707 = vrsqrt.pop %v1675
      %v1708 = vrsqrt.pop %v1676
      %v1709 = vrsqrt.pop %v1677
      %v1710 = vrsqrt.pop %v1678
      %v1711 = vrsqrt.pop %v1679
      %v1712 = vld [vmem:[%s1] sm:$0xff]
      %v1713 = vld [vmem:[%s1 + $0x8] sm:$0xff]
      %v1714 = vld [vmem:[%s1 + $0x10] sm:$0xff]
      %v1715 = vld [vmem:[%s1 + $0x18] sm:$0xff]
      %v1716 = vld [vmem:[%s1 + $0x20] sm:$0xff]
      %v1717 = vld [vmem:[%s1 + $0x28] sm:$0xff]
      %v1718 = vld [vmem:[%s1 + $0x30] sm:$0xff]
      %v1719 = vld [vmem:[%s1 + $0x38] sm:$0xff]
      %v1720 = vld [vmem:[%s1 + $0x40] sm:$0xff]
      %v1721 = vld [vmem:[%s1 + $0x48] sm:$0xff]
      %v1722 = vld [vmem:[%s1 + $0x50] sm:$0xff]
      %v1723 = vld [vmem:[%s1 + $0x58] sm:$0xff]
      %v1724 = vld [vmem:[%s1 + $0x60] sm:$0xff]
      %v1725 = vld [vmem:[%s1 + $0x68] sm:$0xff]
      %v1726 = vld [vmem:[%s1 + $0x70] sm:$0xff]
      %v1727 = vld [vmem:[%s1 + $0x78] sm:$0xff]
      %v1728 = vld [vmem:[%s1 + $0x80] sm:$0xff]
      %v1729 = vld [vmem:[%s1 + $0x88] sm:$0xff]
      %v1730 = vld [vmem:[%s1 + $0x90] sm:$0xff]
      %v1731 = vld [vmem:[%s1 + $0x98] sm:$0xff]
      %v1732 = vld [vmem:[%s1 + $0xa0] sm:$0xff]
      %v1733 = vld [vmem:[%s1 + $0xa8] sm:$0xff]
      %v1734 = vld [vmem:[%s1 + $0xb0] sm:$0xff]
      %v1735 = vld [vmem:[%s1 + $0xb8] sm:$0xff]
      %v1736 = vld [vmem:[%s1 + $0xc0] sm:$0xff]
      %v1737 = vld [vmem:[%s1 + $0xc8] sm:$0xff]
      %v1738 = vld [vmem:[%s1 + $0xd0] sm:$0xff]
      %v1739 = vld [vmem:[%s1 + $0xd8] sm:$0xff]
      %v1740 = vld [vmem:[%s1 + $0xe0] sm:$0xff]
      %v1741 = vld [vmem:[%s1 + $0xe8] sm:$0xff]
      %v1742 = vld [vmem:[%s1 + $0xf0] sm:$0xff]
      %v1743 = vld [vmem:[%s1 + $0xf8] sm:$0xff]
      %v1744 = vmul.f32 %v1680, %v1712
      %v1745 = vmul.f32 %v1681, %v1713
      %v1746 = vmul.f32 %v1682, %v1714
      %v1747 = vmul.f32 %v1683, %v1715
      %v1748 = vmul.f32 %v1684, %v1716
      %v1749 = vmul.f32 %v1685, %v1717
      %v1750 = vmul.f32 %v1686, %v1718
      %v1751 = vmul.f32 %v1687, %v1719
      %v1752 = vmul.f32 %v1688, %v1720
      %v1753 = vmul.f32 %v1689, %v1721
      %v1754 = vmul.f32 %v1690, %v1722
      %v1755 = vmul.f32 %v1691, %v1723
      %v1756 = vmul.f32 %v1692, %v1724
      %v1757 = vmul.f32 %v1693, %v1725
      %v1758 = vmul.f32 %v1694, %v1726
      %v1759 = vmul.f32 %v1695, %v1727
      %v1760 = vmul.f32 %v1696, %v1728
      %v1761 = vmul.f32 %v1697, %v1729
      %v1762 = vmul.f32 %v1698, %v1730
      %v1763 = vmul.f32 %v1699, %v1731
      %v1764 = vmul.f32 %v1700, %v1732
      %v1765 = vmul.f32 %v1701, %v1733
      %v1766 = vmul.f32 %v1702, %v1734
      %v1767 = vmul.f32 %v1703, %v1735
      %v1768 = vmul.f32 %v1704, %v1736
      %v1769 = vmul.f32 %v1705, %v1737
      %v1770 = vmul.f32 %v1706, %v1738
      %v1771 = vmul.f32 %v1707, %v1739
      %v1772 = vmul.f32 %v1708, %v1740
      %v1773 = vmul.f32 %v1709, %v1741
      %v1774 = vmul.f32 %v1710, %v1742
      %v1775 = vmul.f32 %v1711, %v1743
      %1777 = vset.pattern.permute.xlu0 0
      %1778 = vperm.xlu0 %1777, %v1744
      %v1779 = vpop.permute.xlu0 %1778
      %1782 = vset.pattern.permute.xlu0 0
      %1783 = vperm.xlu0 %1782, %v1745
      %v1784 = vpop.permute.xlu0 %1783
      %1787 = vset.pattern.permute.xlu0 0
      %1788 = vperm.xlu0 %1787, %v1746
      %v1789 = vpop.permute.xlu0 %1788
      %1792 = vset.pattern.permute.xlu0 0
      %1793 = vperm.xlu0 %1792, %v1747
      %v1794 = vpop.permute.xlu0 %1793
      %1797 = vset.pattern.permute.xlu0 0
      %1798 = vperm.xlu0 %1797, %v1748
      %v1799 = vpop.permute.xlu0 %1798
      %1802 = vset.pattern.permute.xlu0 0
      %1803 = vperm.xlu0 %1802, %v1749
      %v1804 = vpop.permute.xlu0 %1803
      %1807 = vset.pattern.permute.xlu0 0
      %1808 = vperm.xlu0 %1807, %v1750
      %v1809 = vpop.permute.xlu0 %1808
      %1812 = vset.pattern.permute.xlu0 0
      %1813 = vperm.xlu0 %1812, %v1751
      %v1814 = vpop.permute.xlu0 %1813
      %1817 = vset.pattern.permute.xlu0 0
      %1818 = vperm.xlu0 %1817, %v1752
      %v1819 = vpop.permute.xlu0 %1818
      %1822 = vset.pattern.permute.xlu0 0
      %1823 = vperm.xlu0 %1822, %v1753
      %v1824 = vpop.permute.xlu0 %1823
      %1827 = vset.pattern.permute.xlu0 0
      %1828 = vperm.xlu0 %1827, %v1754
      %v1829 = vpop.permute.xlu0 %1828
      %1832 = vset.pattern.permute.xlu0 0
      %1833 = vperm.xlu0 %1832, %v1755
      %v1834 = vpop.permute.xlu0 %1833
      %1837 = vset.pattern.permute.xlu0 0
      %1838 = vperm.xlu0 %1837, %v1756
      %v1839 = vpop.permute.xlu0 %1838
      %1842 = vset.pattern.permute.xlu0 0
      %1843 = vperm.xlu0 %1842, %v1757
      %v1844 = vpop.permute.xlu0 %1843
      %1847 = vset.pattern.permute.xlu0 0
      %1848 = vperm.xlu0 %1847, %v1758
      %v1849 = vpop.permute.xlu0 %1848
      %1852 = vset.pattern.permute.xlu0 0
      %1853 = vperm.xlu0 %1852, %v1759
      %v1854 = vpop.permute.xlu0 %1853
      %1857 = vset.pattern.permute.xlu0 0
      %1858 = vperm.xlu0 %1857, %v1760
      %v1859 = vpop.permute.xlu0 %1858
      %1862 = vset.pattern.permute.xlu0 0
      %1863 = vperm.xlu0 %1862, %v1761
      %v1864 = vpop.permute.xlu0 %1863
      %1867 = vset.pattern.permute.xlu0 0
      %1868 = vperm.xlu0 %1867, %v1762
      %v1869 = vpop.permute.xlu0 %1868
      %1872 = vset.pattern.permute.xlu0 0
      %1873 = vperm.xlu0 %1872, %v1763
      %v1874 = vpop.permute.xlu0 %1873
      %1877 = vset.pattern.permute.xlu0 0
      %1878 = vperm.xlu0 %1877, %v1764
      %v1879 = vpop.permute.xlu0 %1878
      %1882 = vset.pattern.permute.xlu0 0
      %1883 = vperm.xlu0 %1882, %v1765
      %v1884 = vpop.permute.xlu0 %1883
      %1887 = vset.pattern.permute.xlu0 0
      %1888 = vperm.xlu0 %1887, %v1766
      %v1889 = vpop.permute.xlu0 %1888
      %1892 = vset.pattern.permute.xlu0 0
      %1893 = vperm.xlu0 %1892, %v1767
      %v1894 = vpop.permute.xlu0 %1893
      %1897 = vset.pattern.permute.xlu0 0
      %1898 = vperm.xlu0 %1897, %v1768
      %v1899 = vpop.permute.xlu0 %1898
      %1902 = vset.pattern.permute.xlu0 0
      %1903 = vperm.xlu0 %1902, %v1769
      %v1904 = vpop.permute.xlu0 %1903
      %1907 = vset.pattern.permute.xlu0 0
      %1908 = vperm.xlu0 %1907, %v1770
      %v1909 = vpop.permute.xlu0 %1908
      %1912 = vset.pattern.permute.xlu0 0
      %1913 = vperm.xlu0 %1912, %v1771
      %v1914 = vpop.permute.xlu0 %1913
      %1917 = vset.pattern.permute.xlu0 0
      %1918 = vperm.xlu0 %1917, %v1772
      %v1919 = vpop.permute.xlu0 %1918
      %1922 = vset.pattern.permute.xlu0 0
      %1923 = vperm.xlu0 %1922, %v1773
      %v1924 = vpop.permute.xlu0 %1923
      %1927 = vset.pattern.permute.xlu0 0
      %1928 = vperm.xlu0 %1927, %v1774
      %v1929 = vpop.permute.xlu0 %1928
      %1932 = vset.pattern.permute.xlu0 0
      %1933 = vperm.xlu0 %1932, %v1775
      %v1934 = vpop.permute.xlu0 %1933
      %v1936 = vmul.f32 %v880, %v1779
      %v1937 = vmul.f32 %v881, %v1779
      %v1938 = vmul.f32 %v882, %v1779
      %v1939 = vmul.f32 %v883, %v1779
      %v1940 = vmul.f32 %v884, %v1779
      %v1941 = vmul.f32 %v885, %v1779
      %v1942 = vmul.f32 %v886, %v1779
      %v1943 = vmul.f32 %v887, %v1784
      %v1944 = vmul.f32 %v888, %v1784
      %v1945 = vmul.f32 %v889, %v1784
      %v1946 = vmul.f32 %v890, %v1784
      %v1947 = vmul.f32 %v891, %v1784
      %v1948 = vmul.f32 %v892, %v1784
      %v1949 = vmul.f32 %v893, %v1784
      %v1950 = vmul.f32 %v894, %v1789
      %v1951 = vmul.f32 %v895, %v1789
      %v1952 = vmul.f32 %v896, %v1789
      %v1953 = vmul.f32 %v897, %v1789
      %v1954 = vmul.f32 %v898, %v1789
      %v1955 = vmul.f32 %v899, %v1789
      %v1956 = vmul.f32 %v900, %v1789
      %v1957 = vmul.f32 %v901, %v1794
      %v1958 = vmul.f32 %v902, %v1794
      %v1959 = vmul.f32 %v903, %v1794
      %v1960 = vmul.f32 %v904, %v1794
      %v1961 = vmul.f32 %v905, %v1794
      %v1962 = vmul.f32 %v906, %v1794
      %v1963 = vmul.f32 %v907, %v1794
      %v1964 = vmul.f32 %v908, %v1799
      %v1965 = vmul.f32 %v909, %v1799
      %v1966 = vmul.f32 %v910, %v1799
      %v1967 = vmul.f32 %v911, %v1799
      %v1968 = vmul.f32 %v912, %v1799
      %v1969 = vmul.f32 %v913, %v1799
      %v1970 = vmul.f32 %v914, %v1799
      %v1971 = vmul.f32 %v915, %v1804
      %v1972 = vmul.f32 %v916, %v1804
      %v1973 = vmul.f32 %v917, %v1804
      %v1974 = vmul.f32 %v918, %v1804
      %v1975 = vmul.f32 %v919, %v1804
      %v1976 = vmul.f32 %v920, %v1804
      %v1977 = vmul.f32 %v921, %v1804
      %v1978 = vmul.f32 %v922, %v1809
      %v1979 = vmul.f32 %v923, %v1809
      %v1980 = vmul.f32 %v924, %v1809
      %v1981 = vmul.f32 %v925, %v1809
      %v1982 = vmul.f32 %v926, %v1809
      %v1983 = vmul.f32 %v927, %v1809
      %v1984 = vmul.f32 %v928, %v1809
      %v1985 = vmul.f32 %v929, %v1814
      %v1986 = vmul.f32 %v930, %v1814
      %v1987 = vmul.f32 %v931, %v1814
      %v1988 = vmul.f32 %v932, %v1814
      %v1989 = vmul.f32 %v933, %v1814
      %v1990 = vmul.f32 %v934, %v1814
      %v1991 = vmul.f32 %v935, %v1814
      %v1992 = vmul.f32 %v936, %v1819
      %v1993 = vmul.f32 %v937, %v1819
      %v1994 = vmul.f32 %v938, %v1819
      %v1995 = vmul.f32 %v939, %v1819
      %v1996 = vmul.f32 %v940, %v1819
      %v1997 = vmul.f32 %v941, %v1819
      %v1998 = vmul.f32 %v942, %v1819
      %v1999 = vmul.f32 %v943, %v1824
      %v2000 = vmul.f32 %v944, %v1824
      %v2001 = vmul.f32 %v945, %v1824
      %v2002 = vmul.f32 %v946, %v1824
      %v2003 = vmul.f32 %v947, %v1824
      %v2004 = vmul.f32 %v948, %v1824
      %v2005 = vmul.f32 %v949, %v1824
      %v2006 = vmul.f32 %v950, %v1829
      %v2007 = vmul.f32 %v951, %v1829
      %v2008 = vmul.f32 %v952, %v1829
      %v2009 = vmul.f32 %v953, %v1829
      %v2010 = vmul.f32 %v954, %v1829
      %v2011 = vmul.f32 %v955, %v1829
      %v2012 = vmul.f32 %v956, %v1829
      %v2013 = vmul.f32 %v957, %v1834
      %v2014 = vmul.f32 %v958, %v1834
      %v2015 = vmul.f32 %v959, %v1834
      %v2016 = vmul.f32 %v960, %v1834
      %v2017 = vmul.f32 %v961, %v1834
      %v2018 = vmul.f32 %v962, %v1834
      %v2019 = vmul.f32 %v963, %v1834
      %v2020 = vmul.f32 %v964, %v1839
      %v2021 = vmul.f32 %v965, %v1839
      %v2022 = vmul.f32 %v966, %v1839
      %v2023 = vmul.f32 %v967, %v1839
      %v2024 = vmul.f32 %v968, %v1839
      %v2025 = vmul.f32 %v969, %v1839
      %v2026 = vmul.f32 %v970, %v1839
      %v2027 = vmul.f32 %v971, %v1844
      %v2028 = vmul.f32 %v972, %v1844
      %v2029 = vmul.f32 %v973, %v1844
      %v2030 = vmul.f32 %v974, %v1844
      %v2031 = vmul.f32 %v975, %v1844
      %v2032 = vmul.f32 %v976, %v1844
      %v2033 = vmul.f32 %v977, %v1844
      %v2034 = vmul.f32 %v978, %v1849
      %v2035 = vmul.f32 %v979, %v1849
      %v2036 = vmul.f32 %v980, %v1849
      %v2037 = vmul.f32 %v981, %v1849
      %v2038 = vmul.f32 %v982, %v1849
      %v2039 = vmul.f32 %v983, %v1849
      %v2040 = vmul.f32 %v984, %v1849
      %v2041 = vmul.f32 %v985, %v1854
      %v2042 = vmul.f32 %v986, %v1854
      %v2043 = vmul.f32 %v987, %v1854
      %v2044 = vmul.f32 %v988, %v1854
      %v2045 = vmul.f32 %v989, %v1854
      %v2046 = vmul.f32 %v990, %v1854
      %v2047 = vmul.f32 %v991, %v1854
      %v2048 = vmul.f32 %v992, %v1859
      %v2049 = vmul.f32 %v993, %v1859
      %v2050 = vmul.f32 %v994, %v1859
      %v2051 = vmul.f32 %v995, %v1859
      %v2052 = vmul.f32 %v996, %v1859
      %v2053 = vmul.f32 %v997, %v1859
      %v2054 = vmul.f32 %v998, %v1859
      %v2055 = vmul.f32 %v999, %v1864
      %v2056 = vmul.f32 %v1000, %v1864
      %v2057 = vmul.f32 %v1001, %v1864
      %v2058 = vmul.f32 %v1002, %v1864
      %v2059 = vmul.f32 %v1003, %v1864
      %v2060 = vmul.f32 %v1004, %v1864
      %v2061 = vmul.f32 %v1005, %v1864
      %v2062 = vmul.f32 %v1006, %v1869
      %v2063 = vmul.f32 %v1007, %v1869
      %v2064 = vmul.f32 %v1008, %v1869
      %v2065 = vmul.f32 %v1009, %v1869
      %v2066 = vmul.f32 %v1010, %v1869
      %v2067 = vmul.f32 %v1011, %v1869
      %v2068 = vmul.f32 %v1012, %v1869
      %v2069 = vmul.f32 %v1013, %v1874
      %v2070 = vmul.f32 %v1014, %v1874
      %v2071 = vmul.f32 %v1015, %v1874
      %v2072 = vmul.f32 %v1016, %v1874
      %v2073 = vmul.f32 %v1017, %v1874
      %v2074 = vmul.f32 %v1018, %v1874
      %v2075 = vmul.f32 %v1019, %v1874
      %v2076 = vmul.f32 %v1020, %v1879
      %v2077 = vmul.f32 %v1021, %v1879
      %v2078 = vmul.f32 %v1022, %v1879
      %v2079 = vmul.f32 %v1023, %v1879
      %v2080 = vmul.f32 %v1024, %v1879
      %v2081 = vmul.f32 %v1025, %v1879
      %v2082 = vmul.f32 %v1026, %v1879
      %v2083 = vmul.f32 %v1027, %v1884
      %v2084 = vmul.f32 %v1028, %v1884
      %v2085 = vmul.f32 %v1029, %v1884
      %v2086 = vmul.f32 %v1030, %v1884
      %v2087 = vmul.f32 %v1031, %v1884
      %v2088 = vmul.f32 %v1032, %v1884
      %v2089 = vmul.f32 %v1033, %v1884
      %v2090 = vmul.f32 %v1034, %v1889
      %v2091 = vmul.f32 %v1035, %v1889
      %v2092 = vmul.f32 %v1036, %v1889
      %v2093 = vmul.f32 %v1037, %v1889
      %v2094 = vmul.f32 %v1038, %v1889
      %v2095 = vmul.f32 %v1039, %v1889
      %v2096 = vmul.f32 %v1040, %v1889
      %v2097 = vmul.f32 %v1041, %v1894
      %v2098 = vmul.f32 %v1042, %v1894
      %v2099 = vmul.f32 %v1043, %v1894
      %v2100 = vmul.f32 %v1044, %v1894
      %v2101 = vmul.f32 %v1045, %v1894
      %v2102 = vmul.f32 %v1046, %v1894
      %v2103 = vmul.f32 %v1047, %v1894
      %v2104 = vmul.f32 %v1048, %v1899
      %v2105 = vmul.f32 %v1049, %v1899
      %v2106 = vmul.f32 %v1050, %v1899
      %v2107 = vmul.f32 %v1051, %v1899
      %v2108 = vmul.f32 %v1052, %v1899
      %v2109 = vmul.f32 %v1053, %v1899
      %v2110 = vmul.f32 %v1054, %v1899
      %v2111 = vmul.f32 %v1055, %v1904
      %v2112 = vmul.f32 %v1056, %v1904
      %v2113 = vmul.f32 %v1057, %v1904
      %v2114 = vmul.f32 %v1058, %v1904
      %v2115 = vmul.f32 %v1059, %v1904
      %v2116 = vmul.f32 %v1060, %v1904
      %v2117 = vmul.f32 %v1061, %v1904
      %v2118 = vmul.f32 %v1062, %v1909
      %v2119 = vmul.f32 %v1063, %v1909
      %v2120 = vmul.f32 %v1064, %v1909
      %v2121 = vmul.f32 %v1065, %v1909
      %v2122 = vmul.f32 %v1066, %v1909
      %v2123 = vmul.f32 %v1067, %v1909
      %v2124 = vmul.f32 %v1068, %v1909
      %v2125 = vmul.f32 %v1069, %v1914
      %v2126 = vmul.f32 %v1070, %v1914
      %v2127 = vmul.f32 %v1071, %v1914
      %v2128 = vmul.f32 %v1072, %v1914
      %v2129 = vmul.f32 %v1073, %v1914
      %v2130 = vmul.f32 %v1074, %v1914
      %v2131 = vmul.f32 %v1075, %v1914
      %v2132 = vmul.f32 %v1076, %v1919
      %v2133 = vmul.f32 %v1077, %v1919
      %v2134 = vmul.f32 %v1078, %v1919
      %v2135 = vmul.f32 %v1079, %v1919
      %v2136 = vmul.f32 %v1080, %v1919
      %v2137 = vmul.f32 %v1081, %v1919
      %v2138 = vmul.f32 %v1082, %v1919
      %v2139 = vmul.f32 %v1083, %v1924
      %v2140 = vmul.f32 %v1084, %v1924
      %v2141 = vmul.f32 %v1085, %v1924
      %v2142 = vmul.f32 %v1086, %v1924
      %v2143 = vmul.f32 %v1087, %v1924
      %v2144 = vmul.f32 %v1088, %v1924
      %v2145 = vmul.f32 %v1089, %v1924
      %v2146 = vmul.f32 %v1090, %v1929
      %v2147 = vmul.f32 %v1091, %v1929
      %v2148 = vmul.f32 %v1092, %v1929
      %v2149 = vmul.f32 %v1093, %v1929
      %v2150 = vmul.f32 %v1094, %v1929
      %v2151 = vmul.f32 %v1095, %v1929
      %v2152 = vmul.f32 %v1096, %v1929
      %v2153 = vmul.f32 %v1097, %v1934
      %v2154 = vmul.f32 %v1098, %v1934
      %v2155 = vmul.f32 %v1099, %v1934
      %v2156 = vmul.f32 %v1100, %v1934
      %v2157 = vmul.f32 %v1101, %v1934
      %v2158 = vmul.f32 %v1102, %v1934
      %v2159 = vmul.f32 %v1103, %v1934
      %v2160 = vld [vmem:[%s2] sm:$0xff]
      %v2161 = vld [vmem:[%s2 + $0x8] sm:$0xff]
      %v2162 = vld [vmem:[%s2 + $0x10] sm:$0xff]
      %v2163 = vld [vmem:[%s2 + $0x18] sm:$0xff]
      %v2164 = vld [vmem:[%s2 + $0x20] sm:$0xff]
      %v2165 = vld [vmem:[%s2 + $0x28] sm:$0xff]
      %v2166 = vld [vmem:[%s2 + $0x30] sm:$0xff]
      %v2167 = vld [vmem:[%s2 + $0x38] sm:$0xff]
      %v2168 = vld [vmem:[%s2 + $0x40] sm:$0xff]
      %v2169 = vld [vmem:[%s2 + $0x48] sm:$0xff]
      %v2170 = vld [vmem:[%s2 + $0x50] sm:$0xff]
      %v2171 = vld [vmem:[%s2 + $0x58] sm:$0xff]
      %v2172 = vld [vmem:[%s2 + $0x60] sm:$0xff]
      %v2173 = vld [vmem:[%s2 + $0x68] sm:$0xff]
      %v2174 = vld [vmem:[%s2 + $0x70] sm:$0xff]
      %v2175 = vld [vmem:[%s2 + $0x78] sm:$0xff]
      %v2176 = vld [vmem:[%s2 + $0x80] sm:$0xff]
      %v2177 = vld [vmem:[%s2 + $0x88] sm:$0xff]
      %v2178 = vld [vmem:[%s2 + $0x90] sm:$0xff]
      %v2179 = vld [vmem:[%s2 + $0x98] sm:$0xff]
      %v2180 = vld [vmem:[%s2 + $0xa0] sm:$0xff]
      %v2181 = vld [vmem:[%s2 + $0xa8] sm:$0xff]
      %v2182 = vld [vmem:[%s2 + $0xb0] sm:$0xff]
      %v2183 = vld [vmem:[%s2 + $0xb8] sm:$0xff]
      %v2184 = vld [vmem:[%s2 + $0xc0] sm:$0xff]
      %v2185 = vld [vmem:[%s2 + $0xc8] sm:$0xff]
      %v2186 = vld [vmem:[%s2 + $0xd0] sm:$0xff]
      %v2187 = vld [vmem:[%s2 + $0xd8] sm:$0xff]
      %v2188 = vld [vmem:[%s2 + $0xe0] sm:$0xff]
      %v2189 = vld [vmem:[%s2 + $0xe8] sm:$0xff]
      %v2190 = vld [vmem:[%s2 + $0xf0] sm:$0xff]
      %v2191 = vld [vmem:[%s2 + $0xf8] sm:$0xff]
      %2193 = vset.pattern.permute.xlu0 0
      %2194 = vperm.xlu0 %2193, %v2160
      %v2195 = vpop.permute.xlu0 %2194
      %2198 = vset.pattern.permute.xlu0 0
      %2199 = vperm.xlu0 %2198, %v2161
      %v2200 = vpop.permute.xlu0 %2199
      %2203 = vset.pattern.permute.xlu0 0
      %2204 = vperm.xlu0 %2203, %v2162
      %v2205 = vpop.permute.xlu0 %2204
      %2208 = vset.pattern.permute.xlu0 0
      %2209 = vperm.xlu0 %2208, %v2163
      %v2210 = vpop.permute.xlu0 %2209
      %2213 = vset.pattern.permute.xlu0 0
      %2214 = vperm.xlu0 %2213, %v2164
      %v2215 = vpop.permute.xlu0 %2214
      %2218 = vset.pattern.permute.xlu0 0
      %2219 = vperm.xlu0 %2218, %v2165
      %v2220 = vpop.permute.xlu0 %2219
      %2223 = vset.pattern.permute.xlu0 0
      %2224 = vperm.xlu0 %2223, %v2166
      %v2225 = vpop.permute.xlu0 %2224
      %2228 = vset.pattern.permute.xlu0 0
      %2229 = vperm.xlu0 %2228, %v2167
      %v2230 = vpop.permute.xlu0 %2229
      %2233 = vset.pattern.permute.xlu0 0
      %2234 = vperm.xlu0 %2233, %v2168
      %v2235 = vpop.permute.xlu0 %2234
      %2238 = vset.pattern.permute.xlu0 0
      %2239 = vperm.xlu0 %2238, %v2169
      %v2240 = vpop.permute.xlu0 %2239
      %2243 = vset.pattern.permute.xlu0 0
      %2244 = vperm.xlu0 %2243, %v2170
      %v2245 = vpop.permute.xlu0 %2244
      %2248 = vset.pattern.permute.xlu0 0
      %2249 = vperm.xlu0 %2248, %v2171
      %v2250 = vpop.permute.xlu0 %2249
      %2253 = vset.pattern.permute.xlu0 0
      %2254 = vperm.xlu0 %2253, %v2172
      %v2255 = vpop.permute.xlu0 %2254
      %2258 = vset.pattern.permute.xlu0 0
      %2259 = vperm.xlu0 %2258, %v2173
      %v2260 = vpop.permute.xlu0 %2259
      %2263 = vset.pattern.permute.xlu0 0
      %2264 = vperm.xlu0 %2263, %v2174
      %v2265 = vpop.permute.xlu0 %2264
      %2268 = vset.pattern.permute.xlu0 0
      %2269 = vperm.xlu0 %2268, %v2175
      %v2270 = vpop.permute.xlu0 %2269
      %2273 = vset.pattern.permute.xlu0 0
      %2274 = vperm.xlu0 %2273, %v2176
      %v2275 = vpop.permute.xlu0 %2274
      %2278 = vset.pattern.permute.xlu0 0
      %2279 = vperm.xlu0 %2278, %v2177
      %v2280 = vpop.permute.xlu0 %2279
      %2283 = vset.pattern.permute.xlu0 0
      %2284 = vperm.xlu0 %2283, %v2178
      %v2285 = vpop.permute.xlu0 %2284
      %2288 = vset.pattern.permute.xlu0 0
      %2289 = vperm.xlu0 %2288, %v2179
      %v2290 = vpop.permute.xlu0 %2289
      %2293 = vset.pattern.permute.xlu0 0
      %2294 = vperm.xlu0 %2293, %v2180
      %v2295 = vpop.permute.xlu0 %2294
      %2298 = vset.pattern.permute.xlu0 0
      %2299 = vperm.xlu0 %2298, %v2181
      %v2300 = vpop.permute.xlu0 %2299
      %2303 = vset.pattern.permute.xlu0 0
      %2304 = vperm.xlu0 %2303, %v2182
      %v2305 = vpop.permute.xlu0 %2304
      %2308 = vset.pattern.permute.xlu0 0
      %2309 = vperm.xlu0 %2308, %v2183
      %v2310 = vpop.permute.xlu0 %2309
      %2313 = vset.pattern.permute.xlu0 0
      %2314 = vperm.xlu0 %2313, %v2184
      %v2315 = vpop.permute.xlu0 %2314
      %2318 = vset.pattern.permute.xlu0 0
      %2319 = vperm.xlu0 %2318, %v2185
      %v2320 = vpop.permute.xlu0 %2319
      %2323 = vset.pattern.permute.xlu0 0
      %2324 = vperm.xlu0 %2323, %v2186
      %v2325 = vpop.permute.xlu0 %2324
      %2328 = vset.pattern.permute.xlu0 0
      %2329 = vperm.xlu0 %2328, %v2187
      %v2330 = vpop.permute.xlu0 %2329
      %2333 = vset.pattern.permute.xlu0 0
      %2334 = vperm.xlu0 %2333, %v2188
      %v2335 = vpop.permute.xlu0 %2334
      %2338 = vset.pattern.permute.xlu0 0
      %2339 = vperm.xlu0 %2338, %v2189
      %v2340 = vpop.permute.xlu0 %2339
      %2343 = vset.pattern.permute.xlu0 0
      %2344 = vperm.xlu0 %2343, %v2190
      %v2345 = vpop.permute.xlu0 %2344
      %2348 = vset.pattern.permute.xlu0 0
      %2349 = vperm.xlu0 %2348, %v2191
      %v2350 = vpop.permute.xlu0 %2349
      %v2352 = vadd.f32 %v1936, %v2195
      %v2353 = vadd.f32 %v1937, %v2195
      %v2354 = vadd.f32 %v1938, %v2195
      %v2355 = vadd.f32 %v1939, %v2195
      %v2356 = vadd.f32 %v1940, %v2195
      %v2357 = vadd.f32 %v1941, %v2195
      %v2358 = vadd.f32 %v1942, %v2195
      %v2359 = vadd.f32 %v1943, %v2200
      %v2360 = vadd.f32 %v1944, %v2200
      %v2361 = vadd.f32 %v1945, %v2200
      %v2362 = vadd.f32 %v1946, %v2200
      %v2363 = vadd.f32 %v1947, %v2200
      %v2364 = vadd.f32 %v1948, %v2200
      %v2365 = vadd.f32 %v1949, %v2200
      %v2366 = vadd.f32 %v1950, %v2205
      %v2367 = vadd.f32 %v1951, %v2205
      %v2368 = vadd.f32 %v1952, %v2205
      %v2369 = vadd.f32 %v1953, %v2205
      %v2370 = vadd.f32 %v1954, %v2205
      %v2371 = vadd.f32 %v1955, %v2205
      %v2372 = vadd.f32 %v1956, %v2205
      %v2373 = vadd.f32 %v1957, %v2210
      %v2374 = vadd.f32 %v1958, %v2210
      %v2375 = vadd.f32 %v1959, %v2210
      %v2376 = vadd.f32 %v1960, %v2210
      %v2377 = vadd.f32 %v1961, %v2210
      %v2378 = vadd.f32 %v1962, %v2210
      %v2379 = vadd.f32 %v1963, %v2210
      %v2380 = vadd.f32 %v1964, %v2215
      %v2381 = vadd.f32 %v1965, %v2215
      %v2382 = vadd.f32 %v1966, %v2215
      %v2383 = vadd.f32 %v1967, %v2215
      %v2384 = vadd.f32 %v1968, %v2215
      %v2385 = vadd.f32 %v1969, %v2215
      %v2386 = vadd.f32 %v1970, %v2215
      %v2387 = vadd.f32 %v1971, %v2220
      %v2388 = vadd.f32 %v1972, %v2220
      %v2389 = vadd.f32 %v1973, %v2220
      %v2390 = vadd.f32 %v1974, %v2220
      %v2391 = vadd.f32 %v1975, %v2220
      %v2392 = vadd.f32 %v1976, %v2220
      %v2393 = vadd.f32 %v1977, %v2220
      %v2394 = vadd.f32 %v1978, %v2225
      %v2395 = vadd.f32 %v1979, %v2225
      %v2396 = vadd.f32 %v1980, %v2225
      %v2397 = vadd.f32 %v1981, %v2225
      %v2398 = vadd.f32 %v1982, %v2225
      %v2399 = vadd.f32 %v1983, %v2225
      %v2400 = vadd.f32 %v1984, %v2225
      %v2401 = vadd.f32 %v1985, %v2230
      %v2402 = vadd.f32 %v1986, %v2230
      %v2403 = vadd.f32 %v1987, %v2230
      %v2404 = vadd.f32 %v1988, %v2230
      %v2405 = vadd.f32 %v1989, %v2230
      %v2406 = vadd.f32 %v1990, %v2230
      %v2407 = vadd.f32 %v1991, %v2230
      %v2408 = vadd.f32 %v1992, %v2235
      %v2409 = vadd.f32 %v1993, %v2235
      %v2410 = vadd.f32 %v1994, %v2235
      %v2411 = vadd.f32 %v1995, %v2235
      %v2412 = vadd.f32 %v1996, %v2235
      %v2413 = vadd.f32 %v1997, %v2235
      %v2414 = vadd.f32 %v1998, %v2235
      %v2415 = vadd.f32 %v1999, %v2240
      %v2416 = vadd.f32 %v2000, %v2240
      %v2417 = vadd.f32 %v2001, %v2240
      %v2418 = vadd.f32 %v2002, %v2240
      %v2419 = vadd.f32 %v2003, %v2240
      %v2420 = vadd.f32 %v2004, %v2240
      %v2421 = vadd.f32 %v2005, %v2240
      %v2422 = vadd.f32 %v2006, %v2245
      %v2423 = vadd.f32 %v2007, %v2245
      %v2424 = vadd.f32 %v2008, %v2245
      %v2425 = vadd.f32 %v2009, %v2245
      %v2426 = vadd.f32 %v2010, %v2245
      %v2427 = vadd.f32 %v2011, %v2245
      %v2428 = vadd.f32 %v2012, %v2245
      %v2429 = vadd.f32 %v2013, %v2250
      %v2430 = vadd.f32 %v2014, %v2250
      %v2431 = vadd.f32 %v2015, %v2250
      %v2432 = vadd.f32 %v2016, %v2250
      %v2433 = vadd.f32 %v2017, %v2250
      %v2434 = vadd.f32 %v2018, %v2250
      %v2435 = vadd.f32 %v2019, %v2250
      %v2436 = vadd.f32 %v2020, %v2255
      %v2437 = vadd.f32 %v2021, %v2255
      %v2438 = vadd.f32 %v2022, %v2255
      %v2439 = vadd.f32 %v2023, %v2255
      %v2440 = vadd.f32 %v2024, %v2255
      %v2441 = vadd.f32 %v2025, %v2255
      %v2442 = vadd.f32 %v2026, %v2255
      %v2443 = vadd.f32 %v2027, %v2260
      %v2444 = vadd.f32 %v2028, %v2260
      %v2445 = vadd.f32 %v2029, %v2260
      %v2446 = vadd.f32 %v2030, %v2260
      %v2447 = vadd.f32 %v2031, %v2260
      %v2448 = vadd.f32 %v2032, %v2260
      %v2449 = vadd.f32 %v2033, %v2260
      %v2450 = vadd.f32 %v2034, %v2265
      %v2451 = vadd.f32 %v2035, %v2265
      %v2452 = vadd.f32 %v2036, %v2265
      %v2453 = vadd.f32 %v2037, %v2265
      %v2454 = vadd.f32 %v2038, %v2265
      %v2455 = vadd.f32 %v2039, %v2265
      %v2456 = vadd.f32 %v2040, %v2265
      %v2457 = vadd.f32 %v2041, %v2270
      %v2458 = vadd.f32 %v2042, %v2270
      %v2459 = vadd.f32 %v2043, %v2270
      %v2460 = vadd.f32 %v2044, %v2270
      %v2461 = vadd.f32 %v2045, %v2270
      %v2462 = vadd.f32 %v2046, %v2270
      %v2463 = vadd.f32 %v2047, %v2270
      %v2464 = vadd.f32 %v2048, %v2275
      %v2465 = vadd.f32 %v2049, %v2275
      %v2466 = vadd.f32 %v2050, %v2275
      %v2467 = vadd.f32 %v2051, %v2275
      %v2468 = vadd.f32 %v2052, %v2275
      %v2469 = vadd.f32 %v2053, %v2275
      %v2470 = vadd.f32 %v2054, %v2275
      %v2471 = vadd.f32 %v2055, %v2280
      %v2472 = vadd.f32 %v2056, %v2280
      %v2473 = vadd.f32 %v2057, %v2280
      %v2474 = vadd.f32 %v2058, %v2280
      %v2475 = vadd.f32 %v2059, %v2280
      %v2476 = vadd.f32 %v2060, %v2280
      %v2477 = vadd.f32 %v2061, %v2280
      %v2478 = vadd.f32 %v2062, %v2285
      %v2479 = vadd.f32 %v2063, %v2285
      %v2480 = vadd.f32 %v2064, %v2285
      %v2481 = vadd.f32 %v2065, %v2285
      %v2482 = vadd.f32 %v2066, %v2285
      %v2483 = vadd.f32 %v2067, %v2285
      %v2484 = vadd.f32 %v2068, %v2285
      %v2485 = vadd.f32 %v2069, %v2290
      %v2486 = vadd.f32 %v2070, %v2290
      %v2487 = vadd.f32 %v2071, %v2290
      %v2488 = vadd.f32 %v2072, %v2290
      %v2489 = vadd.f32 %v2073, %v2290
      %v2490 = vadd.f32 %v2074, %v2290
      %v2491 = vadd.f32 %v2075, %v2290
      %v2492 = vadd.f32 %v2076, %v2295
      %v2493 = vadd.f32 %v2077, %v2295
      %v2494 = vadd.f32 %v2078, %v2295
      %v2495 = vadd.f32 %v2079, %v2295
      %v2496 = vadd.f32 %v2080, %v2295
      %v2497 = vadd.f32 %v2081, %v2295
      %v2498 = vadd.f32 %v2082, %v2295
      %v2499 = vadd.f32 %v2083, %v2300
      %v2500 = vadd.f32 %v2084, %v2300
      %v2501 = vadd.f32 %v2085, %v2300
      %v2502 = vadd.f32 %v2086, %v2300
      %v2503 = vadd.f32 %v2087, %v2300
      %v2504 = vadd.f32 %v2088, %v2300
      %v2505 = vadd.f32 %v2089, %v2300
      %v2506 = vadd.f32 %v2090, %v2305
      %v2507 = vadd.f32 %v2091, %v2305
      %v2508 = vadd.f32 %v2092, %v2305
      %v2509 = vadd.f32 %v2093, %v2305
      %v2510 = vadd.f32 %v2094, %v2305
      %v2511 = vadd.f32 %v2095, %v2305
      %v2512 = vadd.f32 %v2096, %v2305
      %v2513 = vadd.f32 %v2097, %v2310
      %v2514 = vadd.f32 %v2098, %v2310
      %v2515 = vadd.f32 %v2099, %v2310
      %v2516 = vadd.f32 %v2100, %v2310
      %v2517 = vadd.f32 %v2101, %v2310
      %v2518 = vadd.f32 %v2102, %v2310
      %v2519 = vadd.f32 %v2103, %v2310
      %v2520 = vadd.f32 %v2104, %v2315
      %v2521 = vadd.f32 %v2105, %v2315
      %v2522 = vadd.f32 %v2106, %v2315
      %v2523 = vadd.f32 %v2107, %v2315
      %v2524 = vadd.f32 %v2108, %v2315
      %v2525 = vadd.f32 %v2109, %v2315
      %v2526 = vadd.f32 %v2110, %v2315
      %v2527 = vadd.f32 %v2111, %v2320
      %v2528 = vadd.f32 %v2112, %v2320
      %v2529 = vadd.f32 %v2113, %v2320
      %v2530 = vadd.f32 %v2114, %v2320
      %v2531 = vadd.f32 %v2115, %v2320
      %v2532 = vadd.f32 %v2116, %v2320
      %v2533 = vadd.f32 %v2117, %v2320
      %v2534 = vadd.f32 %v2118, %v2325
      %v2535 = vadd.f32 %v2119, %v2325
      %v2536 = vadd.f32 %v2120, %v2325
      %v2537 = vadd.f32 %v2121, %v2325
      %v2538 = vadd.f32 %v2122, %v2325
      %v2539 = vadd.f32 %v2123, %v2325
      %v2540 = vadd.f32 %v2124, %v2325
      %v2541 = vadd.f32 %v2125, %v2330
      %v2542 = vadd.f32 %v2126, %v2330
      %v2543 = vadd.f32 %v2127, %v2330
      %v2544 = vadd.f32 %v2128, %v2330
      %v2545 = vadd.f32 %v2129, %v2330
      %v2546 = vadd.f32 %v2130, %v2330
      %v2547 = vadd.f32 %v2131, %v2330
      %v2548 = vadd.f32 %v2132, %v2335
      %v2549 = vadd.f32 %v2133, %v2335
      %v2550 = vadd.f32 %v2134, %v2335
      %v2551 = vadd.f32 %v2135, %v2335
      %v2552 = vadd.f32 %v2136, %v2335
      %v2553 = vadd.f32 %v2137, %v2335
      %v2554 = vadd.f32 %v2138, %v2335
      %v2555 = vadd.f32 %v2139, %v2340
      %v2556 = vadd.f32 %v2140, %v2340
      %v2557 = vadd.f32 %v2141, %v2340
      %v2558 = vadd.f32 %v2142, %v2340
      %v2559 = vadd.f32 %v2143, %v2340
      %v2560 = vadd.f32 %v2144, %v2340
      %v2561 = vadd.f32 %v2145, %v2340
      %v2562 = vadd.f32 %v2146, %v2345
      %v2563 = vadd.f32 %v2147, %v2345
      %v2564 = vadd.f32 %v2148, %v2345
      %v2565 = vadd.f32 %v2149, %v2345
      %v2566 = vadd.f32 %v2150, %v2345
      %v2567 = vadd.f32 %v2151, %v2345
      %v2568 = vadd.f32 %v2152, %v2345
      %v2569 = vadd.f32 %v2153, %v2350
      %v2570 = vadd.f32 %v2154, %v2350
      %v2571 = vadd.f32 %v2155, %v2350
      %v2572 = vadd.f32 %v2156, %v2350
      %v2573 = vadd.f32 %v2157, %v2350
      %v2574 = vadd.f32 %v2158, %v2350
      %v2575 = vadd.f32 %v2159, %v2350
      %v2576 = vmax.f32 %v2352, 0.0
      %v2577 = vmax.f32 %v2353, 0.0
      %v2578 = vmax.f32 %v2354, 0.0
      %v2579 = vmax.f32 %v2355, 0.0
      %v2580 = vmax.f32 %v2356, 0.0
      %v2581 = vmax.f32 %v2357, 0.0
      %v2582 = vmax.f32 %v2358, 0.0
      %v2583 = vmax.f32 %v2359, 0.0
      %v2584 = vmax.f32 %v2360, 0.0
      %v2585 = vmax.f32 %v2361, 0.0
      %v2586 = vmax.f32 %v2362, 0.0
      %v2587 = vmax.f32 %v2363, 0.0
      %v2588 = vmax.f32 %v2364, 0.0
      %v2589 = vmax.f32 %v2365, 0.0
      %v2590 = vmax.f32 %v2366, 0.0
      %v2591 = vmax.f32 %v2367, 0.0
      %v2592 = vmax.f32 %v2368, 0.0
      %v2593 = vmax.f32 %v2369, 0.0
      %v2594 = vmax.f32 %v2370, 0.0
      %v2595 = vmax.f32 %v2371, 0.0
      %v2596 = vmax.f32 %v2372, 0.0
      %v2597 = vmax.f32 %v2373, 0.0
      %v2598 = vmax.f32 %v2374, 0.0
      %v2599 = vmax.f32 %v2375, 0.0
      %v2600 = vmax.f32 %v2376, 0.0
      %v2601 = vmax.f32 %v2377, 0.0
      %v2602 = vmax.f32 %v2378, 0.0
      %v2603 = vmax.f32 %v2379, 0.0
      %v2604 = vmax.f32 %v2380, 0.0
      %v2605 = vmax.f32 %v2381, 0.0
      %v2606 = vmax.f32 %v2382, 0.0
      %v2607 = vmax.f32 %v2383, 0.0
      %v2608 = vmax.f32 %v2384, 0.0
      %v2609 = vmax.f32 %v2385, 0.0
      %v2610 = vmax.f32 %v2386, 0.0
      %v2611 = vmax.f32 %v2387, 0.0
      %v2612 = vmax.f32 %v2388, 0.0
      %v2613 = vmax.f32 %v2389, 0.0
      %v2614 = vmax.f32 %v2390, 0.0
      %v2615 = vmax.f32 %v2391, 0.0
      %v2616 = vmax.f32 %v2392, 0.0
      %v2617 = vmax.f32 %v2393, 0.0
      %v2618 = vmax.f32 %v2394, 0.0
      %v2619 = vmax.f32 %v2395, 0.0
      %v2620 = vmax.f32 %v2396, 0.0
      %v2621 = vmax.f32 %v2397, 0.0
      %v2622 = vmax.f32 %v2398, 0.0
      %v2623 = vmax.f32 %v2399, 0.0
      %v2624 = vmax.f32 %v2400, 0.0
      %v2625 = vmax.f32 %v2401, 0.0
      %v2626 = vmax.f32 %v2402, 0.0
      %v2627 = vmax.f32 %v2403, 0.0
      %v2628 = vmax.f32 %v2404, 0.0
      %v2629 = vmax.f32 %v2405, 0.0
      %v2630 = vmax.f32 %v2406, 0.0
      %v2631 = vmax.f32 %v2407, 0.0
      %v2632 = vmax.f32 %v2408, 0.0
      %v2633 = vmax.f32 %v2409, 0.0
      %v2634 = vmax.f32 %v2410, 0.0
      %v2635 = vmax.f32 %v2411, 0.0
      %v2636 = vmax.f32 %v2412, 0.0
      %v2637 = vmax.f32 %v2413, 0.0
      %v2638 = vmax.f32 %v2414, 0.0
      %v2639 = vmax.f32 %v2415, 0.0
      %v2640 = vmax.f32 %v2416, 0.0
      %v2641 = vmax.f32 %v2417, 0.0
      %v2642 = vmax.f32 %v2418, 0.0
      %v2643 = vmax.f32 %v2419, 0.0
      %v2644 = vmax.f32 %v2420, 0.0
      %v2645 = vmax.f32 %v2421, 0.0
      %v2646 = vmax.f32 %v2422, 0.0
      %v2647 = vmax.f32 %v2423, 0.0
      %v2648 = vmax.f32 %v2424, 0.0
      %v2649 = vmax.f32 %v2425, 0.0
      %v2650 = vmax.f32 %v2426, 0.0
      %v2651 = vmax.f32 %v2427, 0.0
      %v2652 = vmax.f32 %v2428, 0.0
      %v2653 = vmax.f32 %v2429, 0.0
      %v2654 = vmax.f32 %v2430, 0.0
      %v2655 = vmax.f32 %v2431, 0.0
      %v2656 = vmax.f32 %v2432, 0.0
      %v2657 = vmax.f32 %v2433, 0.0
      %v2658 = vmax.f32 %v2434, 0.0
      %v2659 = vmax.f32 %v2435, 0.0
      %v2660 = vmax.f32 %v2436, 0.0
      %v2661 = vmax.f32 %v2437, 0.0
      %v2662 = vmax.f32 %v2438, 0.0
      %v2663 = vmax.f32 %v2439, 0.0
      %v2664 = vmax.f32 %v2440, 0.0
      %v2665 = vmax.f32 %v2441, 0.0
      %v2666 = vmax.f32 %v2442, 0.0
      %v2667 = vmax.f32 %v2443, 0.0
      %v2668 = vmax.f32 %v2444, 0.0
      %v2669 = vmax.f32 %v2445, 0.0
      %v2670 = vmax.f32 %v2446, 0.0
      %v2671 = vmax.f32 %v2447, 0.0
      %v2672 = vmax.f32 %v2448, 0.0
      %v2673 = vmax.f32 %v2449, 0.0
      %v2674 = vmax.f32 %v2450, 0.0
      %v2675 = vmax.f32 %v2451, 0.0
      %v2676 = vmax.f32 %v2452, 0.0
      %v2677 = vmax.f32 %v2453, 0.0
      %v2678 = vmax.f32 %v2454, 0.0
      %v2679 = vmax.f32 %v2455, 0.0
      %v2680 = vmax.f32 %v2456, 0.0
      %v2681 = vmax.f32 %v2457, 0.0
      %v2682 = vmax.f32 %v2458, 0.0
      %v2683 = vmax.f32 %v2459, 0.0
      %v2684 = vmax.f32 %v2460, 0.0
      %v2685 = vmax.f32 %v2461, 0.0
      %v2686 = vmax.f32 %v2462, 0.0
      %v2687 = vmax.f32 %v2463, 0.0
      %v2688 = vmax.f32 %v2464, 0.0
      %v2689 = vmax.f32 %v2465, 0.0
      %v2690 = vmax.f32 %v2466, 0.0
      %v2691 = vmax.f32 %v2467, 0.0
      %v2692 = vmax.f32 %v2468, 0.0
      %v2693 = vmax.f32 %v2469, 0.0
      %v2694 = vmax.f32 %v2470, 0.0
      %v2695 = vmax.f32 %v2471, 0.0
      %v2696 = vmax.f32 %v2472, 0.0
      %v2697 = vmax.f32 %v2473, 0.0
      %v2698 = vmax.f32 %v2474, 0.0
      %v2699 = vmax.f32 %v2475, 0.0
      %v2700 = vmax.f32 %v2476, 0.0
      %v2701 = vmax.f32 %v2477, 0.0
      %v2702 = vmax.f32 %v2478, 0.0
      %v2703 = vmax.f32 %v2479, 0.0
      %v2704 = vmax.f32 %v2480, 0.0
      %v2705 = vmax.f32 %v2481, 0.0
      %v2706 = vmax.f32 %v2482, 0.0
      %v2707 = vmax.f32 %v2483, 0.0
      %v2708 = vmax.f32 %v2484, 0.0
      %v2709 = vmax.f32 %v2485, 0.0
      %v2710 = vmax.f32 %v2486, 0.0
      %v2711 = vmax.f32 %v2487, 0.0
      %v2712 = vmax.f32 %v2488, 0.0
      %v2713 = vmax.f32 %v2489, 0.0
      %v2714 = vmax.f32 %v2490, 0.0
      %v2715 = vmax.f32 %v2491, 0.0
      %v2716 = vmax.f32 %v2492, 0.0
      %v2717 = vmax.f32 %v2493, 0.0
      %v2718 = vmax.f32 %v2494, 0.0
      %v2719 = vmax.f32 %v2495, 0.0
      %v2720 = vmax.f32 %v2496, 0.0
      %v2721 = vmax.f32 %v2497, 0.0
      %v2722 = vmax.f32 %v2498, 0.0
      %v2723 = vmax.f32 %v2499, 0.0
      %v2724 = vmax.f32 %v2500, 0.0
      %v2725 = vmax.f32 %v2501, 0.0
      %v2726 = vmax.f32 %v2502, 0.0
      %v2727 = vmax.f32 %v2503, 0.0
      %v2728 = vmax.f32 %v2504, 0.0
      %v2729 = vmax.f32 %v2505, 0.0
      %v2730 = vmax.f32 %v2506, 0.0
      %v2731 = vmax.f32 %v2507, 0.0
      %v2732 = vmax.f32 %v2508, 0.0
      %v2733 = vmax.f32 %v2509, 0.0
      %v2734 = vmax.f32 %v2510, 0.0
      %v2735 = vmax.f32 %v2511, 0.0
      %v2736 = vmax.f32 %v2512, 0.0
      %v2737 = vmax.f32 %v2513, 0.0
      %v2738 = vmax.f32 %v2514, 0.0
      %v2739 = vmax.f32 %v2515, 0.0
      %v2740 = vmax.f32 %v2516, 0.0
      %v2741 = vmax.f32 %v2517, 0.0
      %v2742 = vmax.f32 %v2518, 0.0
      %v2743 = vmax.f32 %v2519, 0.0
      %v2744 = vmax.f32 %v2520, 0.0
      %v2745 = vmax.f32 %v2521, 0.0
      %v2746 = vmax.f32 %v2522, 0.0
      %v2747 = vmax.f32 %v2523, 0.0
      %v2748 = vmax.f32 %v2524, 0.0
      %v2749 = vmax.f32 %v2525, 0.0
      %v2750 = vmax.f32 %v2526, 0.0
      %v2751 = vmax.f32 %v2527, 0.0
      %v2752 = vmax.f32 %v2528, 0.0
      %v2753 = vmax.f32 %v2529, 0.0
      %v2754 = vmax.f32 %v2530, 0.0
      %v2755 = vmax.f32 %v2531, 0.0
      %v2756 = vmax.f32 %v2532, 0.0
      %v2757 = vmax.f32 %v2533, 0.0
      %v2758 = vmax.f32 %v2534, 0.0
      %v2759 = vmax.f32 %v2535, 0.0
      %v2760 = vmax.f32 %v2536, 0.0
      %v2761 = vmax.f32 %v2537, 0.0
      %v2762 = vmax.f32 %v2538, 0.0
      %v2763 = vmax.f32 %v2539, 0.0
      %v2764 = vmax.f32 %v2540, 0.0
      %v2765 = vmax.f32 %v2541, 0.0
      %v2766 = vmax.f32 %v2542, 0.0
      %v2767 = vmax.f32 %v2543, 0.0
      %v2768 = vmax.f32 %v2544, 0.0
      %v2769 = vmax.f32 %v2545, 0.0
      %v2770 = vmax.f32 %v2546, 0.0
      %v2771 = vmax.f32 %v2547, 0.0
      %v2772 = vmax.f32 %v2548, 0.0
      %v2773 = vmax.f32 %v2549, 0.0
      %v2774 = vmax.f32 %v2550, 0.0
      %v2775 = vmax.f32 %v2551, 0.0
      %v2776 = vmax.f32 %v2552, 0.0
      %v2777 = vmax.f32 %v2553, 0.0
      %v2778 = vmax.f32 %v2554, 0.0
      %v2779 = vmax.f32 %v2555, 0.0
      %v2780 = vmax.f32 %v2556, 0.0
      %v2781 = vmax.f32 %v2557, 0.0
      %v2782 = vmax.f32 %v2558, 0.0
      %v2783 = vmax.f32 %v2559, 0.0
      %v2784 = vmax.f32 %v2560, 0.0
      %v2785 = vmax.f32 %v2561, 0.0
      %v2786 = vmax.f32 %v2562, 0.0
      %v2787 = vmax.f32 %v2563, 0.0
      %v2788 = vmax.f32 %v2564, 0.0
      %v2789 = vmax.f32 %v2565, 0.0
      %v2790 = vmax.f32 %v2566, 0.0
      %v2791 = vmax.f32 %v2567, 0.0
      %v2792 = vmax.f32 %v2568, 0.0
      %v2793 = vmax.f32 %v2569, 0.0
      %v2794 = vmax.f32 %v2570, 0.0
      %v2795 = vmax.f32 %v2571, 0.0
      %v2796 = vmax.f32 %v2572, 0.0
      %v2797 = vmax.f32 %v2573, 0.0
      %v2798 = vmax.f32 %v2574, 0.0
      %v2799 = vmax.f32 %v2575, 0.0
      %v2800 = vpack.c.bf16 %v2583, %v2576
      %v2801 = vpack.c.bf16 %v2584, %v2577
      %v2802 = vpack.c.bf16 %v2585, %v2578
      %v2803 = vpack.c.bf16 %v2586, %v2579
      %v2804 = vpack.c.bf16 %v2587, %v2580
      %v2805 = vpack.c.bf16 %v2588, %v2581
      %v2806 = vpack.c.bf16 %v2589, %v2582
      %v2807 = vpack.c.bf16 %v2597, %v2590
      %v2808 = vpack.c.bf16 %v2598, %v2591
      %v2809 = vpack.c.bf16 %v2599, %v2592
      %v2810 = vpack.c.bf16 %v2600, %v2593
      %v2811 = vpack.c.bf16 %v2601, %v2594
      %v2812 = vpack.c.bf16 %v2602, %v2595
      %v2813 = vpack.c.bf16 %v2603, %v2596
      %v2814 = vpack.c.bf16 %v2611, %v2604
      %v2815 = vpack.c.bf16 %v2612, %v2605
      %v2816 = vpack.c.bf16 %v2613, %v2606
      %v2817 = vpack.c.bf16 %v2614, %v2607
      %v2818 = vpack.c.bf16 %v2615, %v2608
      %v2819 = vpack.c.bf16 %v2616, %v2609
      %v2820 = vpack.c.bf16 %v2617, %v2610
      %v2821 = vpack.c.bf16 %v2625, %v2618
      %v2822 = vpack.c.bf16 %v2626, %v2619
      %v2823 = vpack.c.bf16 %v2627, %v2620
      %v2824 = vpack.c.bf16 %v2628, %v2621
      %v2825 = vpack.c.bf16 %v2629, %v2622
      %v2826 = vpack.c.bf16 %v2630, %v2623
      %v2827 = vpack.c.bf16 %v2631, %v2624
      %v2828 = vpack.c.bf16 %v2639, %v2632
      %v2829 = vpack.c.bf16 %v2640, %v2633
      %v2830 = vpack.c.bf16 %v2641, %v2634
      %v2831 = vpack.c.bf16 %v2642, %v2635
      %v2832 = vpack.c.bf16 %v2643, %v2636
      %v2833 = vpack.c.bf16 %v2644, %v2637
      %v2834 = vpack.c.bf16 %v2645, %v2638
      %v2835 = vpack.c.bf16 %v2653, %v2646
      %v2836 = vpack.c.bf16 %v2654, %v2647
      %v2837 = vpack.c.bf16 %v2655, %v2648
      %v2838 = vpack.c.bf16 %v2656, %v2649
      %v2839 = vpack.c.bf16 %v2657, %v2650
      %v2840 = vpack.c.bf16 %v2658, %v2651
      %v2841 = vpack.c.bf16 %v2659, %v2652
      %v2842 = vpack.c.bf16 %v2667, %v2660
      %v2843 = vpack.c.bf16 %v2668, %v2661
      %v2844 = vpack.c.bf16 %v2669, %v2662
      %v2845 = vpack.c.bf16 %v2670, %v2663
      %v2846 = vpack.c.bf16 %v2671, %v2664
      %v2847 = vpack.c.bf16 %v2672, %v2665
      %v2848 = vpack.c.bf16 %v2673, %v2666
      %v2849 = vpack.c.bf16 %v2681, %v2674
      %v2850 = vpack.c.bf16 %v2682, %v2675
      %v2851 = vpack.c.bf16 %v2683, %v2676
      %v2852 = vpack.c.bf16 %v2684, %v2677
      %v2853 = vpack.c.bf16 %v2685, %v2678
      %v2854 = vpack.c.bf16 %v2686, %v2679
      %v2855 = vpack.c.bf16 %v2687, %v2680
      %v2856 = vpack.c.bf16 %v2695, %v2688
      %v2857 = vpack.c.bf16 %v2696, %v2689
      %v2858 = vpack.c.bf16 %v2697, %v2690
      %v2859 = vpack.c.bf16 %v2698, %v2691
      %v2860 = vpack.c.bf16 %v2699, %v2692
      %v2861 = vpack.c.bf16 %v2700, %v2693
      %v2862 = vpack.c.bf16 %v2701, %v2694
      %v2863 = vpack.c.bf16 %v2709, %v2702
      %v2864 = vpack.c.bf16 %v2710, %v2703
      %v2865 = vpack.c.bf16 %v2711, %v2704
      %v2866 = vpack.c.bf16 %v2712, %v2705
      %v2867 = vpack.c.bf16 %v2713, %v2706
      %v2868 = vpack.c.bf16 %v2714, %v2707
      %v2869 = vpack.c.bf16 %v2715, %v2708
      %v2870 = vpack.c.bf16 %v2723, %v2716
      %v2871 = vpack.c.bf16 %v2724, %v2717
      %v2872 = vpack.c.bf16 %v2725, %v2718
      %v2873 = vpack.c.bf16 %v2726, %v2719
      %v2874 = vpack.c.bf16 %v2727, %v2720
      %v2875 = vpack.c.bf16 %v2728, %v2721
      %v2876 = vpack.c.bf16 %v2729, %v2722
      %v2877 = vpack.c.bf16 %v2737, %v2730
      %v2878 = vpack.c.bf16 %v2738, %v2731
      %v2879 = vpack.c.bf16 %v2739, %v2732
      %v2880 = vpack.c.bf16 %v2740, %v2733
      %v2881 = vpack.c.bf16 %v2741, %v2734
      %v2882 = vpack.c.bf16 %v2742, %v2735
      %v2883 = vpack.c.bf16 %v2743, %v2736
      %v2884 = vpack.c.bf16 %v2751, %v2744
      %v2885 = vpack.c.bf16 %v2752, %v2745
      %v2886 = vpack.c.bf16 %v2753, %v2746
      %v2887 = vpack.c.bf16 %v2754, %v2747
      %v2888 = vpack.c.bf16 %v2755, %v2748
      %v2889 = vpack.c.bf16 %v2756, %v2749
      %v2890 = vpack.c.bf16 %v2757, %v2750
      %v2891 = vpack.c.bf16 %v2765, %v2758
      %v2892 = vpack.c.bf16 %v2766, %v2759
      %v2893 = vpack.c.bf16 %v2767, %v2760
      %v2894 = vpack.c.bf16 %v2768, %v2761
      %v2895 = vpack.c.bf16 %v2769, %v2762
      %v2896 = vpack.c.bf16 %v2770, %v2763
      %v2897 = vpack.c.bf16 %v2771, %v2764
      %v2898 = vpack.c.bf16 %v2779, %v2772
      %v2899 = vpack.c.bf16 %v2780, %v2773
      %v2900 = vpack.c.bf16 %v2781, %v2774
      %v2901 = vpack.c.bf16 %v2782, %v2775
      %v2902 = vpack.c.bf16 %v2783, %v2776
      %v2903 = vpack.c.bf16 %v2784, %v2777
      %v2904 = vpack.c.bf16 %v2785, %v2778
      %v2905 = vpack.c.bf16 %v2793, %v2786
      %v2906 = vpack.c.bf16 %v2794, %v2787
      %v2907 = vpack.c.bf16 %v2795, %v2788
      %v2908 = vpack.c.bf16 %v2796, %v2789
      %v2909 = vpack.c.bf16 %v2797, %v2790
      %v2910 = vpack.c.bf16 %v2798, %v2791
      %v2911 = vpack.c.bf16 %v2799, %v2792
      %v2912 = vld [vmem:[%s197] sm:$0xff]
      %v2913 = vld [vmem:[%s197 + $0x8] sm:$0xff]
      %v2914 = vld [vmem:[%s197 + $0x10] sm:$0xff]
      %v2915 = vld [vmem:[%s197 + $0x18] sm:$0xff]
      %v2916 = vld [vmem:[%s197 + $0x20] sm:$0xff]
      %v2917 = vld [vmem:[%s197 + $0x28] sm:$0xff]
      %v2918 = vld [vmem:[%s197 + $0x30] sm:$0xff]
      %v2919 = vld [vmem:[%s197 + $0x38] sm:$0xff]
      %v2920 = vld [vmem:[%s197 + $0x40] sm:$0xff]
      %v2921 = vld [vmem:[%s197 + $0x48] sm:$0xff]
      %v2922 = vld [vmem:[%s197 + $0x50] sm:$0xff]
      %v2923 = vld [vmem:[%s197 + $0x58] sm:$0xff]
      %v2924 = vld [vmem:[%s197 + $0x60] sm:$0xff]
      %v2925 = vld [vmem:[%s197 + $0x68] sm:$0xff]
      %v2926 = vld [vmem:[%s197 + $0x70] sm:$0xff]
      %v2927 = vld [vmem:[%s197 + $0x78] sm:$0xff]
      %v2928 = vld [vmem:[%s197 + $0x80] sm:$0xff]
      %v2929 = vld [vmem:[%s197 + $0x88] sm:$0xff]
      %v2930 = vld [vmem:[%s197 + $0x90] sm:$0xff]
      %v2931 = vld [vmem:[%s197 + $0x98] sm:$0xff]
      %v2932 = vld [vmem:[%s197 + $0xa0] sm:$0xff]
      %v2933 = vld [vmem:[%s197 + $0xa8] sm:$0xff]
      %v2934 = vld [vmem:[%s197 + $0xb0] sm:$0xff]
      %v2935 = vld [vmem:[%s197 + $0xb8] sm:$0xff]
      %v2936 = vld [vmem:[%s197 + $0xc0] sm:$0xff]
      %v2937 = vld [vmem:[%s197 + $0xc8] sm:$0xff]
      %v2938 = vld [vmem:[%s197 + $0xd0] sm:$0xff]
      %v2939 = vld [vmem:[%s197 + $0xd8] sm:$0xff]
      %v2940 = vld [vmem:[%s197 + $0xe0] sm:$0xff]
      %v2941 = vld [vmem:[%s197 + $0xe8] sm:$0xff]
      %v2942 = vld [vmem:[%s197 + $0xf0] sm:$0xff]
      %v2943 = vld [vmem:[%s197 + $0xf8] sm:$0xff]
      %v2944 = vld [vmem:[%s197 + $0x100] sm:$0xff]
      %v2945 = vld [vmem:[%s197 + $0x108] sm:$0xff]
      %v2946 = vld [vmem:[%s197 + $0x110] sm:$0xff]
      %v2947 = vld [vmem:[%s197 + $0x118] sm:$0xff]
      %v2948 = vld [vmem:[%s197 + $0x120] sm:$0xff]
      %v2949 = vld [vmem:[%s197 + $0x128] sm:$0xff]
      %v2950 = vld [vmem:[%s197 + $0x130] sm:$0xff]
      %v2951 = vld [vmem:[%s197 + $0x138] sm:$0xff]
      %v2952 = vld [vmem:[%s197 + $0x140] sm:$0xff]
      %v2953 = vld [vmem:[%s197 + $0x148] sm:$0xff]
      %v2954 = vld [vmem:[%s197 + $0x150] sm:$0xff]
      %v2955 = vld [vmem:[%s197 + $0x158] sm:$0xff]
      %v2956 = vld [vmem:[%s197 + $0x160] sm:$0xff]
      %v2957 = vld [vmem:[%s197 + $0x168] sm:$0xff]
      %v2958 = vld [vmem:[%s197 + $0x170] sm:$0xff]
      %v2959 = vld [vmem:[%s197 + $0x178] sm:$0xff]
      %v2960 = vld [vmem:[%s197 + $0x180] sm:$0xff]
      %v2961 = vld [vmem:[%s197 + $0x188] sm:$0xff]
      %v2962 = vld [vmem:[%s197 + $0x190] sm:$0xff]
      %v2963 = vld [vmem:[%s197 + $0x198] sm:$0xff]
      %v2964 = vld [vmem:[%s197 + $0x1a0] sm:$0xff]
      %v2965 = vld [vmem:[%s197 + $0x1a8] sm:$0xff]
      %v2966 = vld [vmem:[%s197 + $0x1b0] sm:$0xff]
      %v2967 = vld [vmem:[%s197 + $0x1b8] sm:$0xff]
      %v2968 = vld [vmem:[%s197 + $0x1c0] sm:$0xff]
      %v2969 = vld [vmem:[%s197 + $0x1c8] sm:$0xff]
      %v2970 = vld [vmem:[%s197 + $0x1d0] sm:$0xff]
      %v2971 = vld [vmem:[%s197 + $0x1d8] sm:$0xff]
      %v2972 = vld [vmem:[%s197 + $0x1e0] sm:$0xff]
      %v2973 = vld [vmem:[%s197 + $0x1e8] sm:$0xff]
      %v2974 = vld [vmem:[%s197 + $0x1f0] sm:$0xff]
      %v2975 = vld [vmem:[%s197 + $0x1f8] sm:$0xff]
      %v3040 = vunpack.c.l.b16 %v2912
      %v3041 = vunpack.c.h.b16 %v2912
      %v3042 = vunpack.c.l.b16 %v2913
      %v3043 = vunpack.c.h.b16 %v2913
      %v3044 = vunpack.c.l.b16 %v2914
      %v3045 = vunpack.c.h.b16 %v2914
      %v3046 = vunpack.c.l.b16 %v2915
      %v3047 = vunpack.c.h.b16 %v2915
      %v3048 = vunpack.c.l.b16 %v2916
      %v3049 = vunpack.c.h.b16 %v2916
      %v3050 = vunpack.c.l.b16 %v2917
      %v3051 = vunpack.c.h.b16 %v2917
      %v3052 = vunpack.c.l.b16 %v2918
      %v3053 = vunpack.c.h.b16 %v2918
      %v3054 = vunpack.c.l.b16 %v2919
      %v3055 = vunpack.c.h.b16 %v2919
      %v3056 = vunpack.c.l.b16 %v2920
      %v3057 = vunpack.c.h.b16 %v2920
      %v3058 = vunpack.c.l.b16 %v2921
      %v3059 = vunpack.c.h.b16 %v2921
      %v3060 = vunpack.c.l.b16 %v2922
      %v3061 = vunpack.c.h.b16 %v2922
      %v3062 = vunpack.c.l.b16 %v2923
      %v3063 = vunpack.c.h.b16 %v2923
      %v3064 = vunpack.c.l.b16 %v2924
      %v3065 = vunpack.c.h.b16 %v2924
      %v3066 = vunpack.c.l.b16 %v2925
      %v3067 = vunpack.c.h.b16 %v2925
      %v3068 = vunpack.c.l.b16 %v2926
      %v3069 = vunpack.c.h.b16 %v2926
      %v3070 = vunpack.c.l.b16 %v2927
      %v3071 = vunpack.c.h.b16 %v2927
      %v3072 = vunpack.c.l.b16 %v2928
      %v3073 = vunpack.c.h.b16 %v2928
      %v3074 = vunpack.c.l.b16 %v2929
      %v3075 = vunpack.c.h.b16 %v2929
      %v3076 = vunpack.c.l.b16 %v2930
      %v3077 = vunpack.c.h.b16 %v2930
      %v3078 = vunpack.c.l.b16 %v2931
      %v3079 = vunpack.c.h.b16 %v2931
      %v3080 = vunpack.c.l.b16 %v2932
      %v3081 = vunpack.c.h.b16 %v2932
      %v3082 = vunpack.c.l.b16 %v2933
      %v3083 = vunpack.c.h.b16 %v2933
      %v3084 = vunpack.c.l.b16 %v2934
      %v3085 = vunpack.c.h.b16 %v2934
      %v3086 = vunpack.c.l.b16 %v2935
      %v3087 = vunpack.c.h.b16 %v2935
      %v3088 = vunpack.c.l.b16 %v2936
      %v3089 = vunpack.c.h.b16 %v2936
      %v3090 = vunpack.c.l.b16 %v2937
      %v3091 = vunpack.c.h.b16 %v2937
      %v3092 = vunpack.c.l.b16 %v2938
      %v3093 = vunpack.c.h.b16 %v2938
      %v3094 = vunpack.c.l.b16 %v2939
      %v3095 = vunpack.c.h.b16 %v2939
      %v3096 = vunpack.c.l.b16 %v2940
      %v3097 = vunpack.c.h.b16 %v2940
      %v3098 = vunpack.c.l.b16 %v2941
      %v3099 = vunpack.c.h.b16 %v2941
      %v3100 = vunpack.c.l.b16 %v2942
      %v3101 = vunpack.c.h.b16 %v2942
      %v3102 = vunpack.c.l.b16 %v2943
      %v3103 = vunpack.c.h.b16 %v2943
      %v3104 = vunpack.c.l.b16 %v2944
      %v3105 = vunpack.c.h.b16 %v2944
      %v3106 = vunpack.c.l.b16 %v2945
      %v3107 = vunpack.c.h.b16 %v2945
      %v3108 = vunpack.c.l.b16 %v2946
      %v3109 = vunpack.c.h.b16 %v2946
      %v3110 = vunpack.c.l.b16 %v2947
      %v3111 = vunpack.c.h.b16 %v2947
      %v3112 = vunpack.c.l.b16 %v2948
      %v3113 = vunpack.c.h.b16 %v2948
      %v3114 = vunpack.c.l.b16 %v2949
      %v3115 = vunpack.c.h.b16 %v2949
      %v3116 = vunpack.c.l.b16 %v2950
      %v3117 = vunpack.c.h.b16 %v2950
      %v3118 = vunpack.c.l.b16 %v2951
      %v3119 = vunpack.c.h.b16 %v2951
      %v3120 = vunpack.c.l.b16 %v2952
      %v3121 = vunpack.c.h.b16 %v2952
      %v3122 = vunpack.c.l.b16 %v2953
      %v3123 = vunpack.c.h.b16 %v2953
      %v3124 = vunpack.c.l.b16 %v2954
      %v3125 = vunpack.c.h.b16 %v2954
      %v3126 = vunpack.c.l.b16 %v2955
      %v3127 = vunpack.c.h.b16 %v2955
      %v3128 = vunpack.c.l.b16 %v2956
      %v3129 = vunpack.c.h.b16 %v2956
      %v3130 = vunpack.c.l.b16 %v2957
      %v3131 = vunpack.c.h.b16 %v2957
      %v3132 = vunpack.c.l.b16 %v2958
      %v3133 = vunpack.c.h.b16 %v2958
      %v3134 = vunpack.c.l.b16 %v2959
      %v3135 = vunpack.c.h.b16 %v2959
      %v3136 = vunpack.c.l.b16 %v2960
      %v3137 = vunpack.c.h.b16 %v2960
      %v3138 = vunpack.c.l.b16 %v2961
      %v3139 = vunpack.c.h.b16 %v2961
      %v3140 = vunpack.c.l.b16 %v2962
      %v3141 = vunpack.c.h.b16 %v2962
      %v3142 = vunpack.c.l.b16 %v2963
      %v3143 = vunpack.c.h.b16 %v2963
      %v3144 = vunpack.c.l.b16 %v2964
      %v3145 = vunpack.c.h.b16 %v2964
      %v3146 = vunpack.c.l.b16 %v2965
      %v3147 = vunpack.c.h.b16 %v2965
      %v3148 = vunpack.c.l.b16 %v2966
      %v3149 = vunpack.c.h.b16 %v2966
      %v3150 = vunpack.c.l.b16 %v2967
      %v3151 = vunpack.c.h.b16 %v2967
      %v3152 = vunpack.c.l.b16 %v2968
      %v3153 = vunpack.c.h.b16 %v2968
      %v3154 = vunpack.c.l.b16 %v2969
      %v3155 = vunpack.c.h.b16 %v2969
      %v3156 = vunpack.c.l.b16 %v2970
      %v3157 = vunpack.c.h.b16 %v2970
      %v3158 = vunpack.c.l.b16 %v2971
      %v3159 = vunpack.c.h.b16 %v2971
      %v3160 = vunpack.c.l.b16 %v2972
      %v3161 = vunpack.c.h.b16 %v2972
      %v3162 = vunpack.c.l.b16 %v2973
      %v3163 = vunpack.c.h.b16 %v2973
      %v3164 = vunpack.c.l.b16 %v2974
      %v3165 = vunpack.c.h.b16 %v2974
      %v3166 = vunpack.c.l.b16 %v2975
      %v3167 = vunpack.c.h.b16 %v2975
      %v3168 = vpack.c.b16 %v3042, %v3040
      %v3169 = vpack.c.b16 %v3043, %v3041
      %v3170 = vpack.c.b16 %v3046, %v3044
      %v3171 = vpack.c.b16 %v3047, %v3045
      %v3172 = vpack.c.b16 %v3050, %v3048
      %v3173 = vpack.c.b16 %v3051, %v3049
      %v3174 = vpack.c.b16 %v3054, %v3052
      %v3175 = vpack.c.b16 %v3055, %v3053
      %v3176 = vpack.c.b16 %v3058, %v3056
      %v3177 = vpack.c.b16 %v3059, %v3057
      %v3178 = vpack.c.b16 %v3062, %v3060
      %v3179 = vpack.c.b16 %v3063, %v3061
      %v3180 = vpack.c.b16 %v3066, %v3064
      %v3181 = vpack.c.b16 %v3067, %v3065
      %v3182 = vpack.c.b16 %v3070, %v3068
      %v3183 = vpack.c.b16 %v3071, %v3069
      %v3184 = vpack.c.b16 %v3074, %v3072
      %v3185 = vpack.c.b16 %v3075, %v3073
      %v3186 = vpack.c.b16 %v3078, %v3076
      %v3187 = vpack.c.b16 %v3079, %v3077
      %v3188 = vpack.c.b16 %v3082, %v3080
      %v3189 = vpack.c.b16 %v3083, %v3081
      %v3190 = vpack.c.b16 %v3086, %v3084
      %v3191 = vpack.c.b16 %v3087, %v3085
      %v3192 = vpack.c.b16 %v3090, %v3088
      %v3193 = vpack.c.b16 %v3091, %v3089
      %v3194 = vpack.c.b16 %v3094, %v3092
      %v3195 = vpack.c.b16 %v3095, %v3093
      %v3196 = vpack.c.b16 %v3098, %v3096
      %v3197 = vpack.c.b16 %v3099, %v3097
      %v3198 = vpack.c.b16 %v3102, %v3100
      %v3199 = vpack.c.b16 %v3103, %v3101
      %v3200 = vpack.c.b16 %v3106, %v3104
      %v3201 = vpack.c.b16 %v3107, %v3105
      %v3202 = vpack.c.b16 %v3110, %v3108
      %v3203 = vpack.c.b16 %v3111, %v3109
      %v3204 = vpack.c.b16 %v3114, %v3112
      %v3205 = vpack.c.b16 %v3115, %v3113
      %v3206 = vpack.c.b16 %v3118, %v3116
      %v3207 = vpack.c.b16 %v3119, %v3117
      %v3208 = vpack.c.b16 %v3122, %v3120
      %v3209 = vpack.c.b16 %v3123, %v3121
      %v3210 = vpack.c.b16 %v3126, %v3124
      %v3211 = vpack.c.b16 %v3127, %v3125
      %v3212 = vpack.c.b16 %v3130, %v3128
      %v3213 = vpack.c.b16 %v3131, %v3129
      %v3214 = vpack.c.b16 %v3134, %v3132
      %v3215 = vpack.c.b16 %v3135, %v3133
      %v3216 = vpack.c.b16 %v3138, %v3136
      %v3217 = vpack.c.b16 %v3139, %v3137
      %v3218 = vpack.c.b16 %v3142, %v3140
      %v3219 = vpack.c.b16 %v3143, %v3141
      %v3220 = vpack.c.b16 %v3146, %v3144
      %v3221 = vpack.c.b16 %v3147, %v3145
      %v3222 = vpack.c.b16 %v3150, %v3148
      %v3223 = vpack.c.b16 %v3151, %v3149
      %v3224 = vpack.c.b16 %v3154, %v3152
      %v3225 = vpack.c.b16 %v3155, %v3153
      %v3226 = vpack.c.b16 %v3158, %v3156
      %v3227 = vpack.c.b16 %v3159, %v3157
      %v3228 = vpack.c.b16 %v3162, %v3160
      %v3229 = vpack.c.b16 %v3163, %v3161
      %v3230 = vpack.c.b16 %v3166, %v3164
      %v3231 = vpack.c.b16 %v3167, %v3165
      %3296 = vmatprep.subr.bf16.mxu0 %v2850
      %3297 = vmatpush1.bf16.msra.mxu0 %v2849
      %3298 = vmatprep.subr.bf16.mxu0 %v2843
      %3299 = vmatpush1.bf16.msra.mxu0 %v2842
      %3300 = vmatprep.subr.bf16.mxu0 %v2836
      %3301 = vmatpush1.bf16.msra.mxu0 %v2835
      %3302 = vmatprep.subr.bf16.mxu0 %v2829
      %3303 = vmatpush1.bf16.msra.mxu0 %v2828
      %3304 = vmatprep.subr.bf16.mxu0 %v2822
      %3305 = vmatpush1.bf16.msra.mxu0 %v2821
      %3306 = vmatprep.subr.bf16.mxu0 %v2815
      %3307 = vmatpush1.bf16.msra.mxu0 %v2814
      %3308 = vmatprep.subr.bf16.mxu0 %v2808
      %3309 = vmatpush1.bf16.msra.mxu0 %v2807
      %3310 = vmatprep.subr.bf16.mxu0 %v2801
      %3311 = vmatpush1.bf16.msra.mxu0 %v2800
      %3312 = vmatprep.subr.bf16.mxu0 %v2906
      %3313 = vmatpush2.bf16.msra.mxu0 %v2905
      %3314 = vmatprep.subr.bf16.mxu0 %v2899
      %3315 = vmatpush2.bf16.msra.mxu0 %v2898
      %3316 = vmatprep.subr.bf16.mxu0 %v2892
      %3317 = vmatpush2.bf16.msra.mxu0 %v2891
      %3318 = vmatprep.subr.bf16.mxu0 %v2885
      %3319 = vmatpush2.bf16.msra.mxu0 %v2884
      %3320 = vmatprep.subr.bf16.mxu0 %v2878
      %3321 = vmatpush2.bf16.msra.mxu0 %v2877
      %3322 = vmatprep.subr.bf16.mxu0 %v2871
      %3323 = vmatpush2.bf16.msra.mxu0 %v2870
      %3324 = vmatprep.subr.bf16.mxu0 %v2864
      %3325 = vmatpush2.bf16.msra.mxu0 %v2863
      %3326 = vmatprep.subr.bf16.mxu0 %v2857
      %3327 = vmatpush2.bf16.msra.mxu0 %v2856
      %3328 = vmatprep.mubr.bf16.mxu0 %v3169
      %3329 = vmatmul.mubr.bf16.gmra.mxu0 %v3168
      %v3330 = vpop.f32.mrf.mxu0
      %v3331 = vadd.f32 0.0, %v3330
      %v3332 = vpop.f32.mrf.mxu0
      %v3333 = vadd.f32 0.0, %v3332
      %v3334 = vpop.f32.mrf.mxu0
      %v3335 = vadd.f32 0.0, %v3334
      %v3336 = vpop.f32.mrf.mxu0
      %v3337 = vadd.f32 0.0, %v3336
      %3338 = vmatprep.mubr.bf16.mxu0 %v3171
      %3339 = vmatmul.mubr.bf16.gmra.mxu0 %v3170
      %v3340 = vpop.f32.mrf.mxu0
      %v3341 = vadd.f32 0.0, %v3340
      %v3342 = vpop.f32.mrf.mxu0
      %v3343 = vadd.f32 0.0, %v3342
      %v3344 = vpop.f32.mrf.mxu0
      %v3345 = vadd.f32 0.0, %v3344
      %v3346 = vpop.f32.mrf.mxu0
      %v3347 = vadd.f32 0.0, %v3346
      %3348 = vmatprep.mubr.bf16.mxu0 %v3173
      %3349 = vmatmul.mubr.bf16.gmra.mxu0 %v3172
      %v3350 = vpop.f32.mrf.mxu0
      %v3351 = vadd.f32 0.0, %v3350
      %v3352 = vpop.f32.mrf.mxu0
      %v3353 = vadd.f32 0.0, %v3352
      %v3354 = vpop.f32.mrf.mxu0
      %v3355 = vadd.f32 0.0, %v3354
      %v3356 = vpop.f32.mrf.mxu0
      %v3357 = vadd.f32 0.0, %v3356
      %3358 = vmatprep.mubr.bf16.mxu0 %v3175
      %3359 = vmatmul.mubr.bf16.gmra.mxu0 %v3174
      %v3360 = vpop.f32.mrf.mxu0
      %v3361 = vadd.f32 0.0, %v3360
      %v3362 = vpop.f32.mrf.mxu0
      %v3363 = vadd.f32 0.0, %v3362
      %v3364 = vpop.f32.mrf.mxu0
      %v3365 = vadd.f32 0.0, %v3364
      %v3366 = vpop.f32.mrf.mxu0
      %v3367 = vadd.f32 0.0, %v3366
      %3368 = vmatprep.mubr.bf16.mxu0 %v3177
      %3369 = vmatmul.mubr.bf16.gmra.mxu0 %v3176
      %v3370 = vpop.f32.mrf.mxu0
      %v3371 = vadd.f32 0.0, %v3370
      %v3372 = vpop.f32.mrf.mxu0
      %v3373 = vadd.f32 0.0, %v3372
      %v3374 = vpop.f32.mrf.mxu0
      %v3375 = vadd.f32 0.0, %v3374
      %v3376 = vpop.f32.mrf.mxu0
      %v3377 = vadd.f32 0.0, %v3376
      %3378 = vmatprep.mubr.bf16.mxu0 %v3179
      %3379 = vmatmul.mubr.bf16.gmra.mxu0 %v3178
      %v3380 = vpop.f32.mrf.mxu0
      %v3381 = vadd.f32 0.0, %v3380
      %v3382 = vpop.f32.mrf.mxu0
      %v3383 = vadd.f32 0.0, %v3382
      %v3384 = vpop.f32.mrf.mxu0
      %v3385 = vadd.f32 0.0, %v3384
      %v3386 = vpop.f32.mrf.mxu0
      %v3387 = vadd.f32 0.0, %v3386
      %3388 = vmatprep.mubr.bf16.mxu0 %v3181
      %3389 = vmatmul.mubr.bf16.gmra.mxu0 %v3180
      %v3390 = vpop.f32.mrf.mxu0
      %v3391 = vadd.f32 0.0, %v3390
      %v3392 = vpop.f32.mrf.mxu0
      %v3393 = vadd.f32 0.0, %v3392
      %v3394 = vpop.f32.mrf.mxu0
      %v3395 = vadd.f32 0.0, %v3394
      %v3396 = vpop.f32.mrf.mxu0
      %v3397 = vadd.f32 0.0, %v3396
      %3398 = vmatprep.mubr.bf16.mxu0 %v3183
      %3399 = vmatmul.mubr.bf16.gmra.mxu0 %v3182
      %v3400 = vpop.f32.mrf.mxu0
      %v3401 = vadd.f32 0.0, %v3400
      %v3402 = vpop.f32.mrf.mxu0
      %v3403 = vadd.f32 0.0, %v3402
      %v3404 = vpop.f32.mrf.mxu0
      %v3405 = vadd.f32 0.0, %v3404
      %v3406 = vpop.f32.mrf.mxu0
      %v3407 = vadd.f32 0.0, %v3406
      %3408 = vmatprep.mubr.bf16.mxu0 %v3185
      %3409 = vmatmul.mubr.bf16.gmra.mxu0 %v3184
      %v3410 = vpop.f32.mrf.mxu0
      %v3411 = vadd.f32 0.0, %v3410
      %v3412 = vpop.f32.mrf.mxu0
      %v3413 = vadd.f32 0.0, %v3412
      %v3414 = vpop.f32.mrf.mxu0
      %v3415 = vadd.f32 0.0, %v3414
      %v3416 = vpop.f32.mrf.mxu0
      %v3417 = vadd.f32 0.0, %v3416
      %3418 = vmatprep.mubr.bf16.mxu0 %v3187
      %3419 = vmatmul.mubr.bf16.gmra.mxu0 %v3186
      %v3420 = vpop.f32.mrf.mxu0
      %v3421 = vadd.f32 0.0, %v3420
      %v3422 = vpop.f32.mrf.mxu0
      %v3423 = vadd.f32 0.0, %v3422
      %v3424 = vpop.f32.mrf.mxu0
      %v3425 = vadd.f32 0.0, %v3424
      %v3426 = vpop.f32.mrf.mxu0
      %v3427 = vadd.f32 0.0, %v3426
      %3428 = vmatprep.mubr.bf16.mxu0 %v3189
      %3429 = vmatmul.mubr.bf16.gmra.mxu0 %v3188
      %v3430 = vpop.f32.mrf.mxu0
      %v3431 = vadd.f32 0.0, %v3430
      %v3432 = vpop.f32.mrf.mxu0
      %v3433 = vadd.f32 0.0, %v3432
      %v3434 = vpop.f32.mrf.mxu0
      %v3435 = vadd.f32 0.0, %v3434
      %v3436 = vpop.f32.mrf.mxu0
      %v3437 = vadd.f32 0.0, %v3436
      %3438 = vmatprep.mubr.bf16.mxu0 %v3191
      %3439 = vmatmul.mubr.bf16.gmra.mxu0 %v3190
      %v3440 = vpop.f32.mrf.mxu0
      %v3441 = vadd.f32 0.0, %v3440
      %v3442 = vpop.f32.mrf.mxu0
      %v3443 = vadd.f32 0.0, %v3442
      %v3444 = vpop.f32.mrf.mxu0
      %v3445 = vadd.f32 0.0, %v3444
      %v3446 = vpop.f32.mrf.mxu0
      %v3447 = vadd.f32 0.0, %v3446
      %3448 = vmatprep.mubr.bf16.mxu0 %v3193
      %3449 = vmatmul.mubr.bf16.gmra.mxu0 %v3192
      %v3450 = vpop.f32.mrf.mxu0
      %v3451 = vadd.f32 0.0, %v3450
      %v3452 = vpop.f32.mrf.mxu0
      %v3453 = vadd.f32 0.0, %v3452
      %v3454 = vpop.f32.mrf.mxu0
      %v3455 = vadd.f32 0.0, %v3454
      %v3456 = vpop.f32.mrf.mxu0
      %v3457 = vadd.f32 0.0, %v3456
      %3458 = vmatprep.mubr.bf16.mxu0 %v3195
      %3459 = vmatmul.mubr.bf16.gmra.mxu0 %v3194
      %v3460 = vpop.f32.mrf.mxu0
      %v3461 = vadd.f32 0.0, %v3460
      %v3462 = vpop.f32.mrf.mxu0
      %v3463 = vadd.f32 0.0, %v3462
      %v3464 = vpop.f32.mrf.mxu0
      %v3465 = vadd.f32 0.0, %v3464
      %v3466 = vpop.f32.mrf.mxu0
      %v3467 = vadd.f32 0.0, %v3466
      %3468 = vmatprep.mubr.bf16.mxu0 %v3197
      %3469 = vmatmul.mubr.bf16.gmra.mxu0 %v3196
      %v3470 = vpop.f32.mrf.mxu0
      %v3471 = vadd.f32 0.0, %v3470
      %v3472 = vpop.f32.mrf.mxu0
      %v3473 = vadd.f32 0.0, %v3472
      %v3474 = vpop.f32.mrf.mxu0
      %v3475 = vadd.f32 0.0, %v3474
      %v3476 = vpop.f32.mrf.mxu0
      %v3477 = vadd.f32 0.0, %v3476
      %3478 = vmatprep.mubr.bf16.mxu0 %v3199
      %3479 = vmatmul.mubr.bf16.gmra.mxu0 %v3198
      %v3480 = vpop.f32.mrf.mxu0
      %v3481 = vadd.f32 0.0, %v3480
      %v3482 = vpop.f32.mrf.mxu0
      %v3483 = vadd.f32 0.0, %v3482
      %v3484 = vpop.f32.mrf.mxu0
      %v3485 = vadd.f32 0.0, %v3484
      %v3486 = vpop.f32.mrf.mxu0
      %v3487 = vadd.f32 0.0, %v3486
      %3488 = vmatprep.mubr.bf16.mxu0 %v3201
      %3489 = vmatmul.mubr.bf16.gmra.mxu0 %v3200
      %v3490 = vpop.f32.mrf.mxu0
      %v3491 = vadd.f32 0.0, %v3490
      %v3492 = vpop.f32.mrf.mxu0
      %v3493 = vadd.f32 0.0, %v3492
      %v3494 = vpop.f32.mrf.mxu0
      %v3495 = vadd.f32 0.0, %v3494
      %v3496 = vpop.f32.mrf.mxu0
      %v3497 = vadd.f32 0.0, %v3496
      %3498 = vmatprep.mubr.bf16.mxu0 %v3203
      %3499 = vmatmul.mubr.bf16.gmra.mxu0 %v3202
      %v3500 = vpop.f32.mrf.mxu0
      %v3501 = vadd.f32 0.0, %v3500
      %v3502 = vpop.f32.mrf.mxu0
      %v3503 = vadd.f32 0.0, %v3502
      %v3504 = vpop.f32.mrf.mxu0
      %v3505 = vadd.f32 0.0, %v3504
      %v3506 = vpop.f32.mrf.mxu0
      %v3507 = vadd.f32 0.0, %v3506
      %3508 = vmatprep.mubr.bf16.mxu0 %v3205
      %3509 = vmatmul.mubr.bf16.gmra.mxu0 %v3204
      %v3510 = vpop.f32.mrf.mxu0
      %v3511 = vadd.f32 0.0, %v3510
      %v3512 = vpop.f32.mrf.mxu0
      %v3513 = vadd.f32 0.0, %v3512
      %v3514 = vpop.f32.mrf.mxu0
      %v3515 = vadd.f32 0.0, %v3514
      %v3516 = vpop.f32.mrf.mxu0
      %v3517 = vadd.f32 0.0, %v3516
      %3518 = vmatprep.mubr.bf16.mxu0 %v3207
      %3519 = vmatmul.mubr.bf16.gmra.mxu0 %v3206
      %v3520 = vpop.f32.mrf.mxu0
      %v3521 = vadd.f32 0.0, %v3520
      %v3522 = vpop.f32.mrf.mxu0
      %v3523 = vadd.f32 0.0, %v3522
      %v3524 = vpop.f32.mrf.mxu0
      %v3525 = vadd.f32 0.0, %v3524
      %v3526 = vpop.f32.mrf.mxu0
      %v3527 = vadd.f32 0.0, %v3526
      %3528 = vmatprep.mubr.bf16.mxu0 %v3209
      %3529 = vmatmul.mubr.bf16.gmra.mxu0 %v3208
      %v3530 = vpop.f32.mrf.mxu0
      %v3531 = vadd.f32 0.0, %v3530
      %v3532 = vpop.f32.mrf.mxu0
      %v3533 = vadd.f32 0.0, %v3532
      %v3534 = vpop.f32.mrf.mxu0
      %v3535 = vadd.f32 0.0, %v3534
      %v3536 = vpop.f32.mrf.mxu0
      %v3537 = vadd.f32 0.0, %v3536
      %3538 = vmatprep.mubr.bf16.mxu0 %v3211
      %3539 = vmatmul.mubr.bf16.gmra.mxu0 %v3210
      %v3540 = vpop.f32.mrf.mxu0
      %v3541 = vadd.f32 0.0, %v3540
      %v3542 = vpop.f32.mrf.mxu0
      %v3543 = vadd.f32 0.0, %v3542
      %v3544 = vpop.f32.mrf.mxu0
      %v3545 = vadd.f32 0.0, %v3544
      %v3546 = vpop.f32.mrf.mxu0
      %v3547 = vadd.f32 0.0, %v3546
      %3548 = vmatprep.mubr.bf16.mxu0 %v3213
      %3549 = vmatmul.mubr.bf16.gmra.mxu0 %v3212
      %v3550 = vpop.f32.mrf.mxu0
      %v3551 = vadd.f32 0.0, %v3550
      %v3552 = vpop.f32.mrf.mxu0
      %v3553 = vadd.f32 0.0, %v3552
      %v3554 = vpop.f32.mrf.mxu0
      %v3555 = vadd.f32 0.0, %v3554
      %v3556 = vpop.f32.mrf.mxu0
      %v3557 = vadd.f32 0.0, %v3556
      %3558 = vmatprep.mubr.bf16.mxu0 %v3215
      %3559 = vmatmul.mubr.bf16.gmra.mxu0 %v3214
      %v3560 = vpop.f32.mrf.mxu0
      %v3561 = vadd.f32 0.0, %v3560
      %v3562 = vpop.f32.mrf.mxu0
      %v3563 = vadd.f32 0.0, %v3562
      %v3564 = vpop.f32.mrf.mxu0
      %v3565 = vadd.f32 0.0, %v3564
      %v3566 = vpop.f32.mrf.mxu0
      %v3567 = vadd.f32 0.0, %v3566
      %3568 = vmatprep.mubr.bf16.mxu0 %v3217
      %3569 = vmatmul.mubr.bf16.gmra.mxu0 %v3216
      %v3570 = vpop.f32.mrf.mxu0
      %v3571 = vadd.f32 0.0, %v3570
      %v3572 = vpop.f32.mrf.mxu0
      %v3573 = vadd.f32 0.0, %v3572
      %v3574 = vpop.f32.mrf.mxu0
      %v3575 = vadd.f32 0.0, %v3574
      %v3576 = vpop.f32.mrf.mxu0
      %v3577 = vadd.f32 0.0, %v3576
      %3578 = vmatprep.mubr.bf16.mxu0 %v3219
      %3579 = vmatmul.mubr.bf16.gmra.mxu0 %v3218
      %v3580 = vpop.f32.mrf.mxu0
      %v3581 = vadd.f32 0.0, %v3580
      %v3582 = vpop.f32.mrf.mxu0
      %v3583 = vadd.f32 0.0, %v3582
      %v3584 = vpop.f32.mrf.mxu0
      %v3585 = vadd.f32 0.0, %v3584
      %v3586 = vpop.f32.mrf.mxu0
      %v3587 = vadd.f32 0.0, %v3586
      %3588 = vmatprep.mubr.bf16.mxu0 %v3221
      %3589 = vmatmul.mubr.bf16.gmra.mxu0 %v3220
      %v3590 = vpop.f32.mrf.mxu0
      %v3591 = vadd.f32 0.0, %v3590
      %v3592 = vpop.f32.mrf.mxu0
      %v3593 = vadd.f32 0.0, %v3592
      %v3594 = vpop.f32.mrf.mxu0
      %v3595 = vadd.f32 0.0, %v3594
      %v3596 = vpop.f32.mrf.mxu0
      %v3597 = vadd.f32 0.0, %v3596
      %3598 = vmatprep.mubr.bf16.mxu0 %v3223
      %3599 = vmatmul.mubr.bf16.gmra.mxu0 %v3222
      %v3600 = vpop.f32.mrf.mxu0
      %v3601 = vadd.f32 0.0, %v3600
      %v3602 = vpop.f32.mrf.mxu0
      %v3603 = vadd.f32 0.0, %v3602
      %v3604 = vpop.f32.mrf.mxu0
      %v3605 = vadd.f32 0.0, %v3604
      %v3606 = vpop.f32.mrf.mxu0
      %v3607 = vadd.f32 0.0, %v3606
      %3608 = vmatprep.mubr.bf16.mxu0 %v3225
      %3609 = vmatmul.mubr.bf16.gmra.mxu0 %v3224
      %v3610 = vpop.f32.mrf.mxu0
      %v3611 = vadd.f32 0.0, %v3610
      %v3612 = vpop.f32.mrf.mxu0
      %v3613 = vadd.f32 0.0, %v3612
      %v3614 = vpop.f32.mrf.mxu0
      %v3615 = vadd.f32 0.0, %v3614
      %v3616 = vpop.f32.mrf.mxu0
      %v3617 = vadd.f32 0.0, %v3616
      %3618 = vmatprep.mubr.bf16.mxu0 %v3227
      %3619 = vmatmul.mubr.bf16.gmra.mxu0 %v3226
      %v3620 = vpop.f32.mrf.mxu0
      %v3621 = vadd.f32 0.0, %v3620
      %v3622 = vpop.f32.mrf.mxu0
      %v3623 = vadd.f32 0.0, %v3622
      %v3624 = vpop.f32.mrf.mxu0
      %v3625 = vadd.f32 0.0, %v3624
      %v3626 = vpop.f32.mrf.mxu0
      %v3627 = vadd.f32 0.0, %v3626
      %3628 = vmatprep.mubr.bf16.mxu0 %v3229
      %3629 = vmatmul.mubr.bf16.gmra.mxu0 %v3228
      %v3630 = vpop.f32.mrf.mxu0
      %v3631 = vadd.f32 0.0, %v3630
      %v3632 = vpop.f32.mrf.mxu0
      %v3633 = vadd.f32 0.0, %v3632
      %v3634 = vpop.f32.mrf.mxu0
      %v3635 = vadd.f32 0.0, %v3634
      %v3636 = vpop.f32.mrf.mxu0
      %v3637 = vadd.f32 0.0, %v3636
      %3638 = vmatprep.mubr.bf16.mxu0 %v3231
      %3639 = vmatmul.mubr.bf16.gmra.mxu0 %v3230
      %v3640 = vpop.f32.mrf.mxu0
      %v3641 = vadd.f32 0.0, %v3640
      %v3642 = vpop.f32.mrf.mxu0
      %v3643 = vadd.f32 0.0, %v3642
      %v3644 = vpop.f32.mrf.mxu0
      %v3645 = vadd.f32 0.0, %v3644
      %v3646 = vpop.f32.mrf.mxu0
      %v3647 = vadd.f32 0.0, %v3646
      %3648 = vdwg.mxu0
      %3649 = vmatprep.subr.bf16.mxu0 %v2852
      %3650 = vmatpush1.bf16.msra.mxu0 %v2851
      %3651 = vmatprep.subr.bf16.mxu0 %v2845
      %3652 = vmatpush1.bf16.msra.mxu0 %v2844
      %3653 = vmatprep.subr.bf16.mxu0 %v2838
      %3654 = vmatpush1.bf16.msra.mxu0 %v2837
      %3655 = vmatprep.subr.bf16.mxu0 %v2831
      %3656 = vmatpush1.bf16.msra.mxu0 %v2830
      %3657 = vmatprep.subr.bf16.mxu0 %v2824
      %3658 = vmatpush1.bf16.msra.mxu0 %v2823
      %3659 = vmatprep.subr.bf16.mxu0 %v2817
      %3660 = vmatpush1.bf16.msra.mxu0 %v2816
      %3661 = vmatprep.subr.bf16.mxu0 %v2810
      %3662 = vmatpush1.bf16.msra.mxu0 %v2809
      %3663 = vmatprep.subr.bf16.mxu0 %v2803
      %3664 = vmatpush1.bf16.msra.mxu0 %v2802
      %3665 = vmatprep.subr.bf16.mxu0 %v2908
      %3666 = vmatpush2.bf16.msra.mxu0 %v2907
      %3667 = vmatprep.subr.bf16.mxu0 %v2901
      %3668 = vmatpush2.bf16.msra.mxu0 %v2900
      %3669 = vmatprep.subr.bf16.mxu0 %v2894
      %3670 = vmatpush2.bf16.msra.mxu0 %v2893
      %3671 = vmatprep.subr.bf16.mxu0 %v2887
      %3672 = vmatpush2.bf16.msra.mxu0 %v2886
      %3673 = vmatprep.subr.bf16.mxu0 %v2880
      %3674 = vmatpush2.bf16.msra.mxu0 %v2879
      %3675 = vmatprep.subr.bf16.mxu0 %v2873
      %3676 = vmatpush2.bf16.msra.mxu0 %v2872
      %3677 = vmatprep.subr.bf16.mxu0 %v2866
      %3678 = vmatpush2.bf16.msra.mxu0 %v2865
      %3679 = vmatprep.subr.bf16.mxu0 %v2859
      %3680 = vmatpush2.bf16.msra.mxu0 %v2858
      %3681 = vmatprep.mubr.bf16.mxu0 %v3169
      %3682 = vmatmul.mubr.bf16.gmra.mxu0 %v3168
      %v3683 = vpop.f32.mrf.mxu0
      %v3684 = vadd.f32 0.0, %v3683
      %v3685 = vpop.f32.mrf.mxu0
      %v3686 = vadd.f32 0.0, %v3685
      %v3687 = vpop.f32.mrf.mxu0
      %v3688 = vadd.f32 0.0, %v3687
      %v3689 = vpop.f32.mrf.mxu0
      %v3690 = vadd.f32 0.0, %v3689
      %3691 = vmatprep.mubr.bf16.mxu0 %v3171
      %3692 = vmatmul.mubr.bf16.gmra.mxu0 %v3170
      %v3693 = vpop.f32.mrf.mxu0
      %v3694 = vadd.f32 0.0, %v3693
      %v3695 = vpop.f32.mrf.mxu0
      %v3696 = vadd.f32 0.0, %v3695
      %v3697 = vpop.f32.mrf.mxu0
      %v3698 = vadd.f32 0.0, %v3697
      %v3699 = vpop.f32.mrf.mxu0
      %v3700 = vadd.f32 0.0, %v3699
      %3701 = vmatprep.mubr.bf16.mxu0 %v3173
      %3702 = vmatmul.mubr.bf16.gmra.mxu0 %v3172
      %v3703 = vpop.f32.mrf.mxu0
      %v3704 = vadd.f32 0.0, %v3703
      %v3705 = vpop.f32.mrf.mxu0
      %v3706 = vadd.f32 0.0, %v3705
      %v3707 = vpop.f32.mrf.mxu0
      %v3708 = vadd.f32 0.0, %v3707
      %v3709 = vpop.f32.mrf.mxu0
      %v3710 = vadd.f32 0.0, %v3709
      %3711 = vmatprep.mubr.bf16.mxu0 %v3175
      %3712 = vmatmul.mubr.bf16.gmra.mxu0 %v3174
      %v3713 = vpop.f32.mrf.mxu0
      %v3714 = vadd.f32 0.0, %v3713
      %v3715 = vpop.f32.mrf.mxu0
      %v3716 = vadd.f32 0.0, %v3715
      %v3717 = vpop.f32.mrf.mxu0
      %v3718 = vadd.f32 0.0, %v3717
      %v3719 = vpop.f32.mrf.mxu0
      %v3720 = vadd.f32 0.0, %v3719
      %3721 = vmatprep.mubr.bf16.mxu0 %v3177
      %3722 = vmatmul.mubr.bf16.gmra.mxu0 %v3176
      %v3723 = vpop.f32.mrf.mxu0
      %v3724 = vadd.f32 0.0, %v3723
      %v3725 = vpop.f32.mrf.mxu0
      %v3726 = vadd.f32 0.0, %v3725
      %v3727 = vpop.f32.mrf.mxu0
      %v3728 = vadd.f32 0.0, %v3727
      %v3729 = vpop.f32.mrf.mxu0
      %v3730 = vadd.f32 0.0, %v3729
      %3731 = vmatprep.mubr.bf16.mxu0 %v3179
      %3732 = vmatmul.mubr.bf16.gmra.mxu0 %v3178
      %v3733 = vpop.f32.mrf.mxu0
      %v3734 = vadd.f32 0.0, %v3733
      %v3735 = vpop.f32.mrf.mxu0
      %v3736 = vadd.f32 0.0, %v3735
      %v3737 = vpop.f32.mrf.mxu0
      %v3738 = vadd.f32 0.0, %v3737
      %v3739 = vpop.f32.mrf.mxu0
      %v3740 = vadd.f32 0.0, %v3739
      %3741 = vmatprep.mubr.bf16.mxu0 %v3181
      %3742 = vmatmul.mubr.bf16.gmra.mxu0 %v3180
      %v3743 = vpop.f32.mrf.mxu0
      %v3744 = vadd.f32 0.0, %v3743
      %v3745 = vpop.f32.mrf.mxu0
      %v3746 = vadd.f32 0.0, %v3745
      %v3747 = vpop.f32.mrf.mxu0
      %v3748 = vadd.f32 0.0, %v3747
      %v3749 = vpop.f32.mrf.mxu0
      %v3750 = vadd.f32 0.0, %v3749
      %3751 = vmatprep.mubr.bf16.mxu0 %v3183
      %3752 = vmatmul.mubr.bf16.gmra.mxu0 %v3182
      %v3753 = vpop.f32.mrf.mxu0
      %v3754 = vadd.f32 0.0, %v3753
      %v3755 = vpop.f32.mrf.mxu0
      %v3756 = vadd.f32 0.0, %v3755
      %v3757 = vpop.f32.mrf.mxu0
      %v3758 = vadd.f32 0.0, %v3757
      %v3759 = vpop.f32.mrf.mxu0
      %v3760 = vadd.f32 0.0, %v3759
      %3761 = vmatprep.mubr.bf16.mxu0 %v3185
      %3762 = vmatmul.mubr.bf16.gmra.mxu0 %v3184
      %v3763 = vpop.f32.mrf.mxu0
      %v3764 = vadd.f32 0.0, %v3763
      %v3765 = vpop.f32.mrf.mxu0
      %v3766 = vadd.f32 0.0, %v3765
      %v3767 = vpop.f32.mrf.mxu0
      %v3768 = vadd.f32 0.0, %v3767
      %v3769 = vpop.f32.mrf.mxu0
      %v3770 = vadd.f32 0.0, %v3769
      %3771 = vmatprep.mubr.bf16.mxu0 %v3187
      %3772 = vmatmul.mubr.bf16.gmra.mxu0 %v3186
      %v3773 = vpop.f32.mrf.mxu0
      %v3774 = vadd.f32 0.0, %v3773
      %v3775 = vpop.f32.mrf.mxu0
      %v3776 = vadd.f32 0.0, %v3775
      %v3777 = vpop.f32.mrf.mxu0
      %v3778 = vadd.f32 0.0, %v3777
      %v3779 = vpop.f32.mrf.mxu0
      %v3780 = vadd.f32 0.0, %v3779
      %3781 = vmatprep.mubr.bf16.mxu0 %v3189
      %3782 = vmatmul.mubr.bf16.gmra.mxu0 %v3188
      %v3783 = vpop.f32.mrf.mxu0
      %v3784 = vadd.f32 0.0, %v3783
      %v3785 = vpop.f32.mrf.mxu0
      %v3786 = vadd.f32 0.0, %v3785
      %v3787 = vpop.f32.mrf.mxu0
      %v3788 = vadd.f32 0.0, %v3787
      %v3789 = vpop.f32.mrf.mxu0
      %v3790 = vadd.f32 0.0, %v3789
      %3791 = vmatprep.mubr.bf16.mxu0 %v3191
      %3792 = vmatmul.mubr.bf16.gmra.mxu0 %v3190
      %v3793 = vpop.f32.mrf.mxu0
      %v3794 = vadd.f32 0.0, %v3793
      %v3795 = vpop.f32.mrf.mxu0
      %v3796 = vadd.f32 0.0, %v3795
      %v3797 = vpop.f32.mrf.mxu0
      %v3798 = vadd.f32 0.0, %v3797
      %v3799 = vpop.f32.mrf.mxu0
      %v3800 = vadd.f32 0.0, %v3799
      %3801 = vmatprep.mubr.bf16.mxu0 %v3193
      %3802 = vmatmul.mubr.bf16.gmra.mxu0 %v3192
      %v3803 = vpop.f32.mrf.mxu0
      %v3804 = vadd.f32 0.0, %v3803
      %v3805 = vpop.f32.mrf.mxu0
      %v3806 = vadd.f32 0.0, %v3805
      %v3807 = vpop.f32.mrf.mxu0
      %v3808 = vadd.f32 0.0, %v3807
      %v3809 = vpop.f32.mrf.mxu0
      %v3810 = vadd.f32 0.0, %v3809
      %3811 = vmatprep.mubr.bf16.mxu0 %v3195
      %3812 = vmatmul.mubr.bf16.gmra.mxu0 %v3194
      %v3813 = vpop.f32.mrf.mxu0
      %v3814 = vadd.f32 0.0, %v3813
      %v3815 = vpop.f32.mrf.mxu0
      %v3816 = vadd.f32 0.0, %v3815
      %v3817 = vpop.f32.mrf.mxu0
      %v3818 = vadd.f32 0.0, %v3817
      %v3819 = vpop.f32.mrf.mxu0
      %v3820 = vadd.f32 0.0, %v3819
      %3821 = vmatprep.mubr.bf16.mxu0 %v3197
      %3822 = vmatmul.mubr.bf16.gmra.mxu0 %v3196
      %v3823 = vpop.f32.mrf.mxu0
      %v3824 = vadd.f32 0.0, %v3823
      %v3825 = vpop.f32.mrf.mxu0
      %v3826 = vadd.f32 0.0, %v3825
      %v3827 = vpop.f32.mrf.mxu0
      %v3828 = vadd.f32 0.0, %v3827
      %v3829 = vpop.f32.mrf.mxu0
      %v3830 = vadd.f32 0.0, %v3829
      %3831 = vmatprep.mubr.bf16.mxu0 %v3199
      %3832 = vmatmul.mubr.bf16.gmra.mxu0 %v3198
      %v3833 = vpop.f32.mrf.mxu0
      %v3834 = vadd.f32 0.0, %v3833
      %v3835 = vpop.f32.mrf.mxu0
      %v3836 = vadd.f32 0.0, %v3835
      %v3837 = vpop.f32.mrf.mxu0
      %v3838 = vadd.f32 0.0, %v3837
      %v3839 = vpop.f32.mrf.mxu0
      %v3840 = vadd.f32 0.0, %v3839
      %3841 = vmatprep.mubr.bf16.mxu0 %v3201
      %3842 = vmatmul.mubr.bf16.gmra.mxu0 %v3200
      %v3843 = vpop.f32.mrf.mxu0
      %v3844 = vadd.f32 0.0, %v3843
      %v3845 = vpop.f32.mrf.mxu0
      %v3846 = vadd.f32 0.0, %v3845
      %v3847 = vpop.f32.mrf.mxu0
      %v3848 = vadd.f32 0.0, %v3847
      %v3849 = vpop.f32.mrf.mxu0
      %v3850 = vadd.f32 0.0, %v3849
      %3851 = vmatprep.mubr.bf16.mxu0 %v3203
      %3852 = vmatmul.mubr.bf16.gmra.mxu0 %v3202
      %v3853 = vpop.f32.mrf.mxu0
      %v3854 = vadd.f32 0.0, %v3853
      %v3855 = vpop.f32.mrf.mxu0
      %v3856 = vadd.f32 0.0, %v3855
      %v3857 = vpop.f32.mrf.mxu0
      %v3858 = vadd.f32 0.0, %v3857
      %v3859 = vpop.f32.mrf.mxu0
      %v3860 = vadd.f32 0.0, %v3859
      %3861 = vmatprep.mubr.bf16.mxu0 %v3205
      %3862 = vmatmul.mubr.bf16.gmra.mxu0 %v3204
      %v3863 = vpop.f32.mrf.mxu0
      %v3864 = vadd.f32 0.0, %v3863
      %v3865 = vpop.f32.mrf.mxu0
      %v3866 = vadd.f32 0.0, %v3865
      %v3867 = vpop.f32.mrf.mxu0
      %v3868 = vadd.f32 0.0, %v3867
      %v3869 = vpop.f32.mrf.mxu0
      %v3870 = vadd.f32 0.0, %v3869
      %3871 = vmatprep.mubr.bf16.mxu0 %v3207
      %3872 = vmatmul.mubr.bf16.gmra.mxu0 %v3206
      %v3873 = vpop.f32.mrf.mxu0
      %v3874 = vadd.f32 0.0, %v3873
      %v3875 = vpop.f32.mrf.mxu0
      %v3876 = vadd.f32 0.0, %v3875
      %v3877 = vpop.f32.mrf.mxu0
      %v3878 = vadd.f32 0.0, %v3877
      %v3879 = vpop.f32.mrf.mxu0
      %v3880 = vadd.f32 0.0, %v3879
      %3881 = vmatprep.mubr.bf16.mxu0 %v3209
      %3882 = vmatmul.mubr.bf16.gmra.mxu0 %v3208
      %v3883 = vpop.f32.mrf.mxu0
      %v3884 = vadd.f32 0.0, %v3883
      %v3885 = vpop.f32.mrf.mxu0
      %v3886 = vadd.f32 0.0, %v3885
      %v3887 = vpop.f32.mrf.mxu0
      %v3888 = vadd.f32 0.0, %v3887
      %v3889 = vpop.f32.mrf.mxu0
      %v3890 = vadd.f32 0.0, %v3889
      %3891 = vmatprep.mubr.bf16.mxu0 %v3211
      %3892 = vmatmul.mubr.bf16.gmra.mxu0 %v3210
      %v3893 = vpop.f32.mrf.mxu0
      %v3894 = vadd.f32 0.0, %v3893
      %v3895 = vpop.f32.mrf.mxu0
      %v3896 = vadd.f32 0.0, %v3895
      %v3897 = vpop.f32.mrf.mxu0
      %v3898 = vadd.f32 0.0, %v3897
      %v3899 = vpop.f32.mrf.mxu0
      %v3900 = vadd.f32 0.0, %v3899
      %3901 = vmatprep.mubr.bf16.mxu0 %v3213
      %3902 = vmatmul.mubr.bf16.gmra.mxu0 %v3212
      %v3903 = vpop.f32.mrf.mxu0
      %v3904 = vadd.f32 0.0, %v3903
      %v3905 = vpop.f32.mrf.mxu0
      %v3906 = vadd.f32 0.0, %v3905
      %v3907 = vpop.f32.mrf.mxu0
      %v3908 = vadd.f32 0.0, %v3907
      %v3909 = vpop.f32.mrf.mxu0
      %v3910 = vadd.f32 0.0, %v3909
      %3911 = vmatprep.mubr.bf16.mxu0 %v3215
      %3912 = vmatmul.mubr.bf16.gmra.mxu0 %v3214
      %v3913 = vpop.f32.mrf.mxu0
      %v3914 = vadd.f32 0.0, %v3913
      %v3915 = vpop.f32.mrf.mxu0
      %v3916 = vadd.f32 0.0, %v3915
      %v3917 = vpop.f32.mrf.mxu0
      %v3918 = vadd.f32 0.0, %v3917
      %v3919 = vpop.f32.mrf.mxu0
      %v3920 = vadd.f32 0.0, %v3919
      %3921 = vmatprep.mubr.bf16.mxu0 %v3217
      %3922 = vmatmul.mubr.bf16.gmra.mxu0 %v3216
      %v3923 = vpop.f32.mrf.mxu0
      %v3924 = vadd.f32 0.0, %v3923
      %v3925 = vpop.f32.mrf.mxu0
      %v3926 = vadd.f32 0.0, %v3925
      %v3927 = vpop.f32.mrf.mxu0
      %v3928 = vadd.f32 0.0, %v3927
      %v3929 = vpop.f32.mrf.mxu0
      %v3930 = vadd.f32 0.0, %v3929
      %3931 = vmatprep.mubr.bf16.mxu0 %v3219
      %3932 = vmatmul.mubr.bf16.gmra.mxu0 %v3218
      %v3933 = vpop.f32.mrf.mxu0
      %v3934 = vadd.f32 0.0, %v3933
      %v3935 = vpop.f32.mrf.mxu0
      %v3936 = vadd.f32 0.0, %v3935
      %v3937 = vpop.f32.mrf.mxu0
      %v3938 = vadd.f32 0.0, %v3937
      %v3939 = vpop.f32.mrf.mxu0
      %v3940 = vadd.f32 0.0, %v3939
      %3941 = vmatprep.mubr.bf16.mxu0 %v3221
      %3942 = vmatmul.mubr.bf16.gmra.mxu0 %v3220
      %v3943 = vpop.f32.mrf.mxu0
      %v3944 = vadd.f32 0.0, %v3943
      %v3945 = vpop.f32.mrf.mxu0
      %v3946 = vadd.f32 0.0, %v3945
      %v3947 = vpop.f32.mrf.mxu0
      %v3948 = vadd.f32 0.0, %v3947
      %v3949 = vpop.f32.mrf.mxu0
      %v3950 = vadd.f32 0.0, %v3949
      %3951 = vmatprep.mubr.bf16.mxu0 %v3223
      %3952 = vmatmul.mubr.bf16.gmra.mxu0 %v3222
      %v3953 = vpop.f32.mrf.mxu0
      %v3954 = vadd.f32 0.0, %v3953
      %v3955 = vpop.f32.mrf.mxu0
      %v3956 = vadd.f32 0.0, %v3955
      %v3957 = vpop.f32.mrf.mxu0
      %v3958 = vadd.f32 0.0, %v3957
      %v3959 = vpop.f32.mrf.mxu0
      %v3960 = vadd.f32 0.0, %v3959
      %3961 = vmatprep.mubr.bf16.mxu0 %v3225
      %3962 = vmatmul.mubr.bf16.gmra.mxu0 %v3224
      %v3963 = vpop.f32.mrf.mxu0
      %v3964 = vadd.f32 0.0, %v3963
      %v3965 = vpop.f32.mrf.mxu0
      %v3966 = vadd.f32 0.0, %v3965
      %v3967 = vpop.f32.mrf.mxu0
      %v3968 = vadd.f32 0.0, %v3967
      %v3969 = vpop.f32.mrf.mxu0
      %v3970 = vadd.f32 0.0, %v3969
      %3971 = vmatprep.mubr.bf16.mxu0 %v3227
      %3972 = vmatmul.mubr.bf16.gmra.mxu0 %v3226
      %v3973 = vpop.f32.mrf.mxu0
      %v3974 = vadd.f32 0.0, %v3973
      %v3975 = vpop.f32.mrf.mxu0
      %v3976 = vadd.f32 0.0, %v3975
      %v3977 = vpop.f32.mrf.mxu0
      %v3978 = vadd.f32 0.0, %v3977
      %v3979 = vpop.f32.mrf.mxu0
      %v3980 = vadd.f32 0.0, %v3979
      %3981 = vmatprep.mubr.bf16.mxu0 %v3229
      %3982 = vmatmul.mubr.bf16.gmra.mxu0 %v3228
      %v3983 = vpop.f32.mrf.mxu0
      %v3984 = vadd.f32 0.0, %v3983
      %v3985 = vpop.f32.mrf.mxu0
      %v3986 = vadd.f32 0.0, %v3985
      %v3987 = vpop.f32.mrf.mxu0
      %v3988 = vadd.f32 0.0, %v3987
      %v3989 = vpop.f32.mrf.mxu0
      %v3990 = vadd.f32 0.0, %v3989
      %3991 = vmatprep.mubr.bf16.mxu0 %v3231
      %3992 = vmatmul.mubr.bf16.gmra.mxu0 %v3230
      %v3993 = vpop.f32.mrf.mxu0
      %v3994 = vadd.f32 0.0, %v3993
      %v3995 = vpop.f32.mrf.mxu0
      %v3996 = vadd.f32 0.0, %v3995
      %v3997 = vpop.f32.mrf.mxu0
      %v3998 = vadd.f32 0.0, %v3997
      %v3999 = vpop.f32.mrf.mxu0
      %v4000 = vadd.f32 0.0, %v3999
      %4001 = vdwg.mxu0
      %4002 = vmatprep.subr.bf16.mxu0 %v2854
      %4003 = vmatpush1.bf16.msra.mxu0 %v2853
      %4004 = vmatprep.subr.bf16.mxu0 %v2847
      %4005 = vmatpush1.bf16.msra.mxu0 %v2846
      %4006 = vmatprep.subr.bf16.mxu0 %v2840
      %4007 = vmatpush1.bf16.msra.mxu0 %v2839
      %4008 = vmatprep.subr.bf16.mxu0 %v2833
      %4009 = vmatpush1.bf16.msra.mxu0 %v2832
      %4010 = vmatprep.subr.bf16.mxu0 %v2826
      %4011 = vmatpush1.bf16.msra.mxu0 %v2825
      %4012 = vmatprep.subr.bf16.mxu0 %v2819
      %4013 = vmatpush1.bf16.msra.mxu0 %v2818
      %4014 = vmatprep.subr.bf16.mxu0 %v2812
      %4015 = vmatpush1.bf16.msra.mxu0 %v2811
      %4016 = vmatprep.subr.bf16.mxu0 %v2805
      %4017 = vmatpush1.bf16.msra.mxu0 %v2804
      %4018 = vmatprep.subr.bf16.mxu0 %v2910
      %4019 = vmatpush2.bf16.msra.mxu0 %v2909
      %4020 = vmatprep.subr.bf16.mxu0 %v2903
      %4021 = vmatpush2.bf16.msra.mxu0 %v2902
      %4022 = vmatprep.subr.bf16.mxu0 %v2896
      %4023 = vmatpush2.bf16.msra.mxu0 %v2895
      %4024 = vmatprep.subr.bf16.mxu0 %v2889
      %4025 = vmatpush2.bf16.msra.mxu0 %v2888
      %4026 = vmatprep.subr.bf16.mxu0 %v2882
      %4027 = vmatpush2.bf16.msra.mxu0 %v2881
      %4028 = vmatprep.subr.bf16.mxu0 %v2875
      %4029 = vmatpush2.bf16.msra.mxu0 %v2874
      %4030 = vmatprep.subr.bf16.mxu0 %v2868
      %4031 = vmatpush2.bf16.msra.mxu0 %v2867
      %4032 = vmatprep.subr.bf16.mxu0 %v2861
      %4033 = vmatpush2.bf16.msra.mxu0 %v2860
      %4034 = vmatprep.mubr.bf16.mxu0 %v3169
      %4035 = vmatmul.mubr.bf16.gmra.mxu0 %v3168
      %v4036 = vpop.f32.mrf.mxu0
      %v4037 = vadd.f32 0.0, %v4036
      %v4038 = vpop.f32.mrf.mxu0
      %v4039 = vadd.f32 0.0, %v4038
      %v4040 = vpop.f32.mrf.mxu0
      %v4041 = vadd.f32 0.0, %v4040
      %v4042 = vpop.f32.mrf.mxu0
      %v4043 = vadd.f32 0.0, %v4042
      %4044 = vmatprep.mubr.bf16.mxu0 %v3171
      %4045 = vmatmul.mubr.bf16.gmra.mxu0 %v3170
      %v4046 = vpop.f32.mrf.mxu0
      %v4047 = vadd.f32 0.0, %v4046
      %v4048 = vpop.f32.mrf.mxu0
      %v4049 = vadd.f32 0.0, %v4048
      %v4050 = vpop.f32.mrf.mxu0
      %v4051 = vadd.f32 0.0, %v4050
      %v4052 = vpop.f32.mrf.mxu0
      %v4053 = vadd.f32 0.0, %v4052
      %4054 = vmatprep.mubr.bf16.mxu0 %v3173
      %4055 = vmatmul.mubr.bf16.gmra.mxu0 %v3172
      %v4056 = vpop.f32.mrf.mxu0
      %v4057 = vadd.f32 0.0, %v4056
      %v4058 = vpop.f32.mrf.mxu0
      %v4059 = vadd.f32 0.0, %v4058
      %v4060 = vpop.f32.mrf.mxu0
      %v4061 = vadd.f32 0.0, %v4060
      %v4062 = vpop.f32.mrf.mxu0
      %v4063 = vadd.f32 0.0, %v4062
      %4064 = vmatprep.mubr.bf16.mxu0 %v3175
      %4065 = vmatmul.mubr.bf16.gmra.mxu0 %v3174
      %v4066 = vpop.f32.mrf.mxu0
      %v4067 = vadd.f32 0.0, %v4066
      %v4068 = vpop.f32.mrf.mxu0
      %v4069 = vadd.f32 0.0, %v4068
      %v4070 = vpop.f32.mrf.mxu0
      %v4071 = vadd.f32 0.0, %v4070
      %v4072 = vpop.f32.mrf.mxu0
      %v4073 = vadd.f32 0.0, %v4072
      %4074 = vmatprep.mubr.bf16.mxu0 %v3177
      %4075 = vmatmul.mubr.bf16.gmra.mxu0 %v3176
      %v4076 = vpop.f32.mrf.mxu0
      %v4077 = vadd.f32 0.0, %v4076
      %v4078 = vpop.f32.mrf.mxu0
      %v4079 = vadd.f32 0.0, %v4078
      %v4080 = vpop.f32.mrf.mxu0
      %v4081 = vadd.f32 0.0, %v4080
      %v4082 = vpop.f32.mrf.mxu0
      %v4083 = vadd.f32 0.0, %v4082
      %4084 = vmatprep.mubr.bf16.mxu0 %v3179
      %4085 = vmatmul.mubr.bf16.gmra.mxu0 %v3178
      %v4086 = vpop.f32.mrf.mxu0
      %v4087 = vadd.f32 0.0, %v4086
      %v4088 = vpop.f32.mrf.mxu0
      %v4089 = vadd.f32 0.0, %v4088
      %v4090 = vpop.f32.mrf.mxu0
      %v4091 = vadd.f32 0.0, %v4090
      %v4092 = vpop.f32.mrf.mxu0
      %v4093 = vadd.f32 0.0, %v4092
      %4094 = vmatprep.mubr.bf16.mxu0 %v3181
      %4095 = vmatmul.mubr.bf16.gmra.mxu0 %v3180
      %v4096 = vpop.f32.mrf.mxu0
      %v4097 = vadd.f32 0.0, %v4096
      %v4098 = vpop.f32.mrf.mxu0
      %v4099 = vadd.f32 0.0, %v4098
      %v4100 = vpop.f32.mrf.mxu0
      %v4101 = vadd.f32 0.0, %v4100
      %v4102 = vpop.f32.mrf.mxu0
      %v4103 = vadd.f32 0.0, %v4102
      %4104 = vmatprep.mubr.bf16.mxu0 %v3183
      %4105 = vmatmul.mubr.bf16.gmra.mxu0 %v3182
      %v4106 = vpop.f32.mrf.mxu0
      %v4107 = vadd.f32 0.0, %v4106
      %v4108 = vpop.f32.mrf.mxu0
      %v4109 = vadd.f32 0.0, %v4108
      %v4110 = vpop.f32.mrf.mxu0
      %v4111 = vadd.f32 0.0, %v4110
      %v4112 = vpop.f32.mrf.mxu0
      %v4113 = vadd.f32 0.0, %v4112
      %4114 = vmatprep.mubr.bf16.mxu0 %v3185
      %4115 = vmatmul.mubr.bf16.gmra.mxu0 %v3184
      %v4116 = vpop.f32.mrf.mxu0
      %v4117 = vadd.f32 0.0, %v4116
      %v4118 = vpop.f32.mrf.mxu0
      %v4119 = vadd.f32 0.0, %v4118
      %v4120 = vpop.f32.mrf.mxu0
      %v4121 = vadd.f32 0.0, %v4120
      %v4122 = vpop.f32.mrf.mxu0
      %v4123 = vadd.f32 0.0, %v4122
      %4124 = vmatprep.mubr.bf16.mxu0 %v3187
      %4125 = vmatmul.mubr.bf16.gmra.mxu0 %v3186
      %v4126 = vpop.f32.mrf.mxu0
      %v4127 = vadd.f32 0.0, %v4126
      %v4128 = vpop.f32.mrf.mxu0
      %v4129 = vadd.f32 0.0, %v4128
      %v4130 = vpop.f32.mrf.mxu0
      %v4131 = vadd.f32 0.0, %v4130
      %v4132 = vpop.f32.mrf.mxu0
      %v4133 = vadd.f32 0.0, %v4132
      %4134 = vmatprep.mubr.bf16.mxu0 %v3189
      %4135 = vmatmul.mubr.bf16.gmra.mxu0 %v3188
      %v4136 = vpop.f32.mrf.mxu0
      %v4137 = vadd.f32 0.0, %v4136
      %v4138 = vpop.f32.mrf.mxu0
      %v4139 = vadd.f32 0.0, %v4138
      %v4140 = vpop.f32.mrf.mxu0
      %v4141 = vadd.f32 0.0, %v4140
      %v4142 = vpop.f32.mrf.mxu0
      %v4143 = vadd.f32 0.0, %v4142
      %4144 = vmatprep.mubr.bf16.mxu0 %v3191
      %4145 = vmatmul.mubr.bf16.gmra.mxu0 %v3190
      %v4146 = vpop.f32.mrf.mxu0
      %v4147 = vadd.f32 0.0, %v4146
      %v4148 = vpop.f32.mrf.mxu0
      %v4149 = vadd.f32 0.0, %v4148
      %v4150 = vpop.f32.mrf.mxu0
      %v4151 = vadd.f32 0.0, %v4150
      %v4152 = vpop.f32.mrf.mxu0
      %v4153 = vadd.f32 0.0, %v4152
      %4154 = vmatprep.mubr.bf16.mxu0 %v3193
      %4155 = vmatmul.mubr.bf16.gmra.mxu0 %v3192
      %v4156 = vpop.f32.mrf.mxu0
      %v4157 = vadd.f32 0.0, %v4156
      %v4158 = vpop.f32.mrf.mxu0
      %v4159 = vadd.f32 0.0, %v4158
      %v4160 = vpop.f32.mrf.mxu0
      %v4161 = vadd.f32 0.0, %v4160
      %v4162 = vpop.f32.mrf.mxu0
      %v4163 = vadd.f32 0.0, %v4162
      %4164 = vmatprep.mubr.bf16.mxu0 %v3195
      %4165 = vmatmul.mubr.bf16.gmra.mxu0 %v3194
      %v4166 = vpop.f32.mrf.mxu0
      %v4167 = vadd.f32 0.0, %v4166
      %v4168 = vpop.f32.mrf.mxu0
      %v4169 = vadd.f32 0.0, %v4168
      %v4170 = vpop.f32.mrf.mxu0
      %v4171 = vadd.f32 0.0, %v4170
      %v4172 = vpop.f32.mrf.mxu0
      %v4173 = vadd.f32 0.0, %v4172
      %4174 = vmatprep.mubr.bf16.mxu0 %v3197
      %4175 = vmatmul.mubr.bf16.gmra.mxu0 %v3196
      %v4176 = vpop.f32.mrf.mxu0
      %v4177 = vadd.f32 0.0, %v4176
      %v4178 = vpop.f32.mrf.mxu0
      %v4179 = vadd.f32 0.0, %v4178
      %v4180 = vpop.f32.mrf.mxu0
      %v4181 = vadd.f32 0.0, %v4180
      %v4182 = vpop.f32.mrf.mxu0
      %v4183 = vadd.f32 0.0, %v4182
      %4184 = vmatprep.mubr.bf16.mxu0 %v3199
      %4185 = vmatmul.mubr.bf16.gmra.mxu0 %v3198
      %v4186 = vpop.f32.mrf.mxu0
      %v4187 = vadd.f32 0.0, %v4186
      %v4188 = vpop.f32.mrf.mxu0
      %v4189 = vadd.f32 0.0, %v4188
      %v4190 = vpop.f32.mrf.mxu0
      %v4191 = vadd.f32 0.0, %v4190
      %v4192 = vpop.f32.mrf.mxu0
      %v4193 = vadd.f32 0.0, %v4192
      %4194 = vmatprep.mubr.bf16.mxu0 %v3201
      %4195 = vmatmul.mubr.bf16.gmra.mxu0 %v3200
      %v4196 = vpop.f32.mrf.mxu0
      %v4197 = vadd.f32 0.0, %v4196
      %v4198 = vpop.f32.mrf.mxu0
      %v4199 = vadd.f32 0.0, %v4198
      %v4200 = vpop.f32.mrf.mxu0
      %v4201 = vadd.f32 0.0, %v4200
      %v4202 = vpop.f32.mrf.mxu0
      %v4203 = vadd.f32 0.0, %v4202
      %4204 = vmatprep.mubr.bf16.mxu0 %v3203
      %4205 = vmatmul.mubr.bf16.gmra.mxu0 %v3202
      %v4206 = vpop.f32.mrf.mxu0
      %v4207 = vadd.f32 0.0, %v4206
      %v4208 = vpop.f32.mrf.mxu0
      %v4209 = vadd.f32 0.0, %v4208
      %v4210 = vpop.f32.mrf.mxu0
      %v4211 = vadd.f32 0.0, %v4210
      %v4212 = vpop.f32.mrf.mxu0
      %v4213 = vadd.f32 0.0, %v4212
      %4214 = vmatprep.mubr.bf16.mxu0 %v3205
      %4215 = vmatmul.mubr.bf16.gmra.mxu0 %v3204
      %v4216 = vpop.f32.mrf.mxu0
      %v4217 = vadd.f32 0.0, %v4216
      %v4218 = vpop.f32.mrf.mxu0
      %v4219 = vadd.f32 0.0, %v4218
      %v4220 = vpop.f32.mrf.mxu0
      %v4221 = vadd.f32 0.0, %v4220
      %v4222 = vpop.f32.mrf.mxu0
      %v4223 = vadd.f32 0.0, %v4222
      %4224 = vmatprep.mubr.bf16.mxu0 %v3207
      %4225 = vmatmul.mubr.bf16.gmra.mxu0 %v3206
      %v4226 = vpop.f32.mrf.mxu0
      %v4227 = vadd.f32 0.0, %v4226
      %v4228 = vpop.f32.mrf.mxu0
      %v4229 = vadd.f32 0.0, %v4228
      %v4230 = vpop.f32.mrf.mxu0
      %v4231 = vadd.f32 0.0, %v4230
      %v4232 = vpop.f32.mrf.mxu0
      %v4233 = vadd.f32 0.0, %v4232
      %4234 = vmatprep.mubr.bf16.mxu0 %v3209
      %4235 = vmatmul.mubr.bf16.gmra.mxu0 %v3208
      %v4236 = vpop.f32.mrf.mxu0
      %v4237 = vadd.f32 0.0, %v4236
      %v4238 = vpop.f32.mrf.mxu0
      %v4239 = vadd.f32 0.0, %v4238
      %v4240 = vpop.f32.mrf.mxu0
      %v4241 = vadd.f32 0.0, %v4240
      %v4242 = vpop.f32.mrf.mxu0
      %v4243 = vadd.f32 0.0, %v4242
      %4244 = vmatprep.mubr.bf16.mxu0 %v3211
      %4245 = vmatmul.mubr.bf16.gmra.mxu0 %v3210
      %v4246 = vpop.f32.mrf.mxu0
      %v4247 = vadd.f32 0.0, %v4246
      %v4248 = vpop.f32.mrf.mxu0
      %v4249 = vadd.f32 0.0, %v4248
      %v4250 = vpop.f32.mrf.mxu0
      %v4251 = vadd.f32 0.0, %v4250
      %v4252 = vpop.f32.mrf.mxu0
      %v4253 = vadd.f32 0.0, %v4252
      %4254 = vmatprep.mubr.bf16.mxu0 %v3213
      %4255 = vmatmul.mubr.bf16.gmra.mxu0 %v3212
      %v4256 = vpop.f32.mrf.mxu0
      %v4257 = vadd.f32 0.0, %v4256
      %v4258 = vpop.f32.mrf.mxu0
      %v4259 = vadd.f32 0.0, %v4258
      %v4260 = vpop.f32.mrf.mxu0
      %v4261 = vadd.f32 0.0, %v4260
      %v4262 = vpop.f32.mrf.mxu0
      %v4263 = vadd.f32 0.0, %v4262
      %4264 = vmatprep.mubr.bf16.mxu0 %v3215
      %4265 = vmatmul.mubr.bf16.gmra.mxu0 %v3214
      %v4266 = vpop.f32.mrf.mxu0
      %v4267 = vadd.f32 0.0, %v4266
      %v4268 = vpop.f32.mrf.mxu0
      %v4269 = vadd.f32 0.0, %v4268
      %v4270 = vpop.f32.mrf.mxu0
      %v4271 = vadd.f32 0.0, %v4270
      %v4272 = vpop.f32.mrf.mxu0
      %v4273 = vadd.f32 0.0, %v4272
      %4274 = vmatprep.mubr.bf16.mxu0 %v3217
      %4275 = vmatmul.mubr.bf16.gmra.mxu0 %v3216
      %v4276 = vpop.f32.mrf.mxu0
      %v4277 = vadd.f32 0.0, %v4276
      %v4278 = vpop.f32.mrf.mxu0
      %v4279 = vadd.f32 0.0, %v4278
      %v4280 = vpop.f32.mrf.mxu0
      %v4281 = vadd.f32 0.0, %v4280
      %v4282 = vpop.f32.mrf.mxu0
      %v4283 = vadd.f32 0.0, %v4282
      %4284 = vmatprep.mubr.bf16.mxu0 %v3219
      %4285 = vmatmul.mubr.bf16.gmra.mxu0 %v3218
      %v4286 = vpop.f32.mrf.mxu0
      %v4287 = vadd.f32 0.0, %v4286
      %v4288 = vpop.f32.mrf.mxu0
      %v4289 = vadd.f32 0.0, %v4288
      %v4290 = vpop.f32.mrf.mxu0
      %v4291 = vadd.f32 0.0, %v4290
      %v4292 = vpop.f32.mrf.mxu0
      %v4293 = vadd.f32 0.0, %v4292
      %4294 = vmatprep.mubr.bf16.mxu0 %v3221
      %4295 = vmatmul.mubr.bf16.gmra.mxu0 %v3220
      %v4296 = vpop.f32.mrf.mxu0
      %v4297 = vadd.f32 0.0, %v4296
      %v4298 = vpop.f32.mrf.mxu0
      %v4299 = vadd.f32 0.0, %v4298
      %v4300 = vpop.f32.mrf.mxu0
      %v4301 = vadd.f32 0.0, %v4300
      %v4302 = vpop.f32.mrf.mxu0
      %v4303 = vadd.f32 0.0, %v4302
      %4304 = vmatprep.mubr.bf16.mxu0 %v3223
      %4305 = vmatmul.mubr.bf16.gmra.mxu0 %v3222
      %v4306 = vpop.f32.mrf.mxu0
      %v4307 = vadd.f32 0.0, %v4306
      %v4308 = vpop.f32.mrf.mxu0
      %v4309 = vadd.f32 0.0, %v4308
      %v4310 = vpop.f32.mrf.mxu0
      %v4311 = vadd.f32 0.0, %v4310
      %v4312 = vpop.f32.mrf.mxu0
      %v4313 = vadd.f32 0.0, %v4312
      %4314 = vmatprep.mubr.bf16.mxu0 %v3225
      %4315 = vmatmul.mubr.bf16.gmra.mxu0 %v3224
      %v4316 = vpop.f32.mrf.mxu0
      %v4317 = vadd.f32 0.0, %v4316
      %v4318 = vpop.f32.mrf.mxu0
      %v4319 = vadd.f32 0.0, %v4318
      %v4320 = vpop.f32.mrf.mxu0
      %v4321 = vadd.f32 0.0, %v4320
      %v4322 = vpop.f32.mrf.mxu0
      %v4323 = vadd.f32 0.0, %v4322
      %4324 = vmatprep.mubr.bf16.mxu0 %v3227
      %4325 = vmatmul.mubr.bf16.gmra.mxu0 %v3226
      %v4326 = vpop.f32.mrf.mxu0
      %v4327 = vadd.f32 0.0, %v4326
      %v4328 = vpop.f32.mrf.mxu0
      %v4329 = vadd.f32 0.0, %v4328
      %v4330 = vpop.f32.mrf.mxu0
      %v4331 = vadd.f32 0.0, %v4330
      %v4332 = vpop.f32.mrf.mxu0
      %v4333 = vadd.f32 0.0, %v4332
      %4334 = vmatprep.mubr.bf16.mxu0 %v3229
      %4335 = vmatmul.mubr.bf16.gmra.mxu0 %v3228
      %v4336 = vpop.f32.mrf.mxu0
      %v4337 = vadd.f32 0.0, %v4336
      %v4338 = vpop.f32.mrf.mxu0
      %v4339 = vadd.f32 0.0, %v4338
      %v4340 = vpop.f32.mrf.mxu0
      %v4341 = vadd.f32 0.0, %v4340
      %v4342 = vpop.f32.mrf.mxu0
      %v4343 = vadd.f32 0.0, %v4342
      %4344 = vmatprep.mubr.bf16.mxu0 %v3231
      %4345 = vmatmul.mubr.bf16.gmra.mxu0 %v3230
      %v4346 = vpop.f32.mrf.mxu0
      %v4347 = vadd.f32 0.0, %v4346
      %v4348 = vpop.f32.mrf.mxu0
      %v4349 = vadd.f32 0.0, %v4348
      %v4350 = vpop.f32.mrf.mxu0
      %v4351 = vadd.f32 0.0, %v4350
      %v4352 = vpop.f32.mrf.mxu0
      %v4353 = vadd.f32 0.0, %v4352
      %4354 = vdwg.mxu0
      %4355 = vmatprep.subr.bf16.mxu0 0
      %4356 = vmatpush1.bf16.msra.mxu0 %v2855
      %4357 = vmatprep.subr.bf16.mxu0 0
      %4358 = vmatpush1.bf16.msra.mxu0 %v2848
      %4359 = vmatprep.subr.bf16.mxu0 0
      %4360 = vmatpush1.bf16.msra.mxu0 %v2841
      %4361 = vmatprep.subr.bf16.mxu0 0
      %4362 = vmatpush1.bf16.msra.mxu0 %v2834
      %4363 = vmatprep.subr.bf16.mxu0 0
      %4364 = vmatpush1.bf16.msra.mxu0 %v2827
      %4365 = vmatprep.subr.bf16.mxu0 0
      %4366 = vmatpush1.bf16.msra.mxu0 %v2820
      %4367 = vmatprep.subr.bf16.mxu0 0
      %4368 = vmatpush1.bf16.msra.mxu0 %v2813
      %4369 = vmatprep.subr.bf16.mxu0 0
      %4370 = vmatpush1.bf16.msra.mxu0 %v2806
      %4371 = vmatprep.subr.bf16.mxu0 0
      %4372 = vmatpush2.bf16.msra.mxu0 %v2911
      %4373 = vmatprep.subr.bf16.mxu0 0
      %4374 = vmatpush2.bf16.msra.mxu0 %v2904
      %4375 = vmatprep.subr.bf16.mxu0 0
      %4376 = vmatpush2.bf16.msra.mxu0 %v2897
      %4377 = vmatprep.subr.bf16.mxu0 0
      %4378 = vmatpush2.bf16.msra.mxu0 %v2890
      %4379 = vmatprep.subr.bf16.mxu0 0
      %4380 = vmatpush2.bf16.msra.mxu0 %v2883
      %4381 = vmatprep.subr.bf16.mxu0 0
      %4382 = vmatpush2.bf16.msra.mxu0 %v2876
      %4383 = vmatprep.subr.bf16.mxu0 0
      %4384 = vmatpush2.bf16.msra.mxu0 %v2869
      %4385 = vmatprep.subr.bf16.mxu0 0
      %4386 = vmatpush2.bf16.msra.mxu0 %v2862
      %4387 = vmatprep.mubr.bf16.mxu0 %v3169
      %4388 = vmatmul.mubr.bf16.gmra.mxu0 %v3168
      %v4389 = vpop.f32.mrf.mxu0
      %v4390 = vadd.f32 0.0, %v4389
      %v4391 = vpop.f32.mrf.mxu0
      %v4392 = vpop.f32.mrf.mxu0
      %v4393 = vadd.f32 0.0, %v4392
      %v4394 = vpop.f32.mrf.mxu0
      %4395 = vmatprep.mubr.bf16.mxu0 %v3171
      %4396 = vmatmul.mubr.bf16.gmra.mxu0 %v3170
      %v4397 = vpop.f32.mrf.mxu0
      %v4398 = vadd.f32 0.0, %v4397
      %v4399 = vpop.f32.mrf.mxu0
      %v4400 = vpop.f32.mrf.mxu0
      %v4401 = vadd.f32 0.0, %v4400
      %v4402 = vpop.f32.mrf.mxu0
      %4403 = vmatprep.mubr.bf16.mxu0 %v3173
      %4404 = vmatmul.mubr.bf16.gmra.mxu0 %v3172
      %v4405 = vpop.f32.mrf.mxu0
      %v4406 = vadd.f32 0.0, %v4405
      %v4407 = vpop.f32.mrf.mxu0
      %v4408 = vpop.f32.mrf.mxu0
      %v4409 = vadd.f32 0.0, %v4408
      %v4410 = vpop.f32.mrf.mxu0
      %4411 = vmatprep.mubr.bf16.mxu0 %v3175
      %4412 = vmatmul.mubr.bf16.gmra.mxu0 %v3174
      %v4413 = vpop.f32.mrf.mxu0
      %v4414 = vadd.f32 0.0, %v4413
      %v4415 = vpop.f32.mrf.mxu0
      %v4416 = vpop.f32.mrf.mxu0
      %v4417 = vadd.f32 0.0, %v4416
      %v4418 = vpop.f32.mrf.mxu0
      %4419 = vmatprep.mubr.bf16.mxu0 %v3177
      %4420 = vmatmul.mubr.bf16.gmra.mxu0 %v3176
      %v4421 = vpop.f32.mrf.mxu0
      %v4422 = vadd.f32 0.0, %v4421
      %v4423 = vpop.f32.mrf.mxu0
      %v4424 = vpop.f32.mrf.mxu0
      %v4425 = vadd.f32 0.0, %v4424
      %v4426 = vpop.f32.mrf.mxu0
      %4427 = vmatprep.mubr.bf16.mxu0 %v3179
      %4428 = vmatmul.mubr.bf16.gmra.mxu0 %v3178
      %v4429 = vpop.f32.mrf.mxu0
      %v4430 = vadd.f32 0.0, %v4429
      %v4431 = vpop.f32.mrf.mxu0
      %v4432 = vpop.f32.mrf.mxu0
      %v4433 = vadd.f32 0.0, %v4432
      %v4434 = vpop.f32.mrf.mxu0
      %4435 = vmatprep.mubr.bf16.mxu0 %v3181
      %4436 = vmatmul.mubr.bf16.gmra.mxu0 %v3180
      %v4437 = vpop.f32.mrf.mxu0
      %v4438 = vadd.f32 0.0, %v4437
      %v4439 = vpop.f32.mrf.mxu0
      %v4440 = vpop.f32.mrf.mxu0
      %v4441 = vadd.f32 0.0, %v4440
      %v4442 = vpop.f32.mrf.mxu0
      %4443 = vmatprep.mubr.bf16.mxu0 %v3183
      %4444 = vmatmul.mubr.bf16.gmra.mxu0 %v3182
      %v4445 = vpop.f32.mrf.mxu0
      %v4446 = vadd.f32 0.0, %v4445
      %v4447 = vpop.f32.mrf.mxu0
      %v4448 = vpop.f32.mrf.mxu0
      %v4449 = vadd.f32 0.0, %v4448
      %v4450 = vpop.f32.mrf.mxu0
      %4451 = vmatprep.mubr.bf16.mxu0 %v3185
      %4452 = vmatmul.mubr.bf16.gmra.mxu0 %v3184
      %v4453 = vpop.f32.mrf.mxu0
      %v4454 = vadd.f32 0.0, %v4453
      %v4455 = vpop.f32.mrf.mxu0
      %v4456 = vpop.f32.mrf.mxu0
      %v4457 = vadd.f32 0.0, %v4456
      %v4458 = vpop.f32.mrf.mxu0
      %4459 = vmatprep.mubr.bf16.mxu0 %v3187
      %4460 = vmatmul.mubr.bf16.gmra.mxu0 %v3186
      %v4461 = vpop.f32.mrf.mxu0
      %v4462 = vadd.f32 0.0, %v4461
      %v4463 = vpop.f32.mrf.mxu0
      %v4464 = vpop.f32.mrf.mxu0
      %v4465 = vadd.f32 0.0, %v4464
      %v4466 = vpop.f32.mrf.mxu0
      %4467 = vmatprep.mubr.bf16.mxu0 %v3189
      %4468 = vmatmul.mubr.bf16.gmra.mxu0 %v3188
      %v4469 = vpop.f32.mrf.mxu0
      %v4470 = vadd.f32 0.0, %v4469
      %v4471 = vpop.f32.mrf.mxu0
      %v4472 = vpop.f32.mrf.mxu0
      %v4473 = vadd.f32 0.0, %v4472
      %v4474 = vpop.f32.mrf.mxu0
      %4475 = vmatprep.mubr.bf16.mxu0 %v3191
      %4476 = vmatmul.mubr.bf16.gmra.mxu0 %v3190
      %v4477 = vpop.f32.mrf.mxu0
      %v4478 = vadd.f32 0.0, %v4477
      %v4479 = vpop.f32.mrf.mxu0
      %v4480 = vpop.f32.mrf.mxu0
      %v4481 = vadd.f32 0.0, %v4480
      %v4482 = vpop.f32.mrf.mxu0
      %4483 = vmatprep.mubr.bf16.mxu0 %v3193
      %4484 = vmatmul.mubr.bf16.gmra.mxu0 %v3192
      %v4485 = vpop.f32.mrf.mxu0
      %v4486 = vadd.f32 0.0, %v4485
      %v4487 = vpop.f32.mrf.mxu0
      %v4488 = vpop.f32.mrf.mxu0
      %v4489 = vadd.f32 0.0, %v4488
      %v4490 = vpop.f32.mrf.mxu0
      %4491 = vmatprep.mubr.bf16.mxu0 %v3195
      %4492 = vmatmul.mubr.bf16.gmra.mxu0 %v3194
      %v4493 = vpop.f32.mrf.mxu0
      %v4494 = vadd.f32 0.0, %v4493
      %v4495 = vpop.f32.mrf.mxu0
      %v4496 = vpop.f32.mrf.mxu0
      %v4497 = vadd.f32 0.0, %v4496
      %v4498 = vpop.f32.mrf.mxu0
      %4499 = vmatprep.mubr.bf16.mxu0 %v3197
      %4500 = vmatmul.mubr.bf16.gmra.mxu0 %v3196
      %v4501 = vpop.f32.mrf.mxu0
      %v4502 = vadd.f32 0.0, %v4501
      %v4503 = vpop.f32.mrf.mxu0
      %v4504 = vpop.f32.mrf.mxu0
      %v4505 = vadd.f32 0.0, %v4504
      %v4506 = vpop.f32.mrf.mxu0
      %4507 = vmatprep.mubr.bf16.mxu0 %v3199
      %4508 = vmatmul.mubr.bf16.gmra.mxu0 %v3198
      %v4509 = vpop.f32.mrf.mxu0
      %v4510 = vadd.f32 0.0, %v4509
      %v4511 = vpop.f32.mrf.mxu0
      %v4512 = vpop.f32.mrf.mxu0
      %v4513 = vadd.f32 0.0, %v4512
      %v4514 = vpop.f32.mrf.mxu0
      %4515 = vmatprep.mubr.bf16.mxu0 %v3201
      %4516 = vmatmul.mubr.bf16.gmra.mxu0 %v3200
      %v4517 = vpop.f32.mrf.mxu0
      %v4518 = vadd.f32 0.0, %v4517
      %v4519 = vpop.f32.mrf.mxu0
      %v4520 = vpop.f32.mrf.mxu0
      %v4521 = vadd.f32 0.0, %v4520
      %v4522 = vpop.f32.mrf.mxu0
      %4523 = vmatprep.mubr.bf16.mxu0 %v3203
      %4524 = vmatmul.mubr.bf16.gmra.mxu0 %v3202
      %v4525 = vpop.f32.mrf.mxu0
      %v4526 = vadd.f32 0.0, %v4525
      %v4527 = vpop.f32.mrf.mxu0
      %v4528 = vpop.f32.mrf.mxu0
      %v4529 = vadd.f32 0.0, %v4528
      %v4530 = vpop.f32.mrf.mxu0
      %4531 = vmatprep.mubr.bf16.mxu0 %v3205
      %4532 = vmatmul.mubr.bf16.gmra.mxu0 %v3204
      %v4533 = vpop.f32.mrf.mxu0
      %v4534 = vadd.f32 0.0, %v4533
      %v4535 = vpop.f32.mrf.mxu0
      %v4536 = vpop.f32.mrf.mxu0
      %v4537 = vadd.f32 0.0, %v4536
      %v4538 = vpop.f32.mrf.mxu0
      %4539 = vmatprep.mubr.bf16.mxu0 %v3207
      %4540 = vmatmul.mubr.bf16.gmra.mxu0 %v3206
      %v4541 = vpop.f32.mrf.mxu0
      %v4542 = vadd.f32 0.0, %v4541
      %v4543 = vpop.f32.mrf.mxu0
      %v4544 = vpop.f32.mrf.mxu0
      %v4545 = vadd.f32 0.0, %v4544
      %v4546 = vpop.f32.mrf.mxu0
      %4547 = vmatprep.mubr.bf16.mxu0 %v3209
      %4548 = vmatmul.mubr.bf16.gmra.mxu0 %v3208
      %v4549 = vpop.f32.mrf.mxu0
      %v4550 = vadd.f32 0.0, %v4549
      %v4551 = vpop.f32.mrf.mxu0
      %v4552 = vpop.f32.mrf.mxu0
      %v4553 = vadd.f32 0.0, %v4552
      %v4554 = vpop.f32.mrf.mxu0
      %4555 = vmatprep.mubr.bf16.mxu0 %v3211
      %4556 = vmatmul.mubr.bf16.gmra.mxu0 %v3210
      %v4557 = vpop.f32.mrf.mxu0
      %v4558 = vadd.f32 0.0, %v4557
      %v4559 = vpop.f32.mrf.mxu0
      %v4560 = vpop.f32.mrf.mxu0
      %v4561 = vadd.f32 0.0, %v4560
      %v4562 = vpop.f32.mrf.mxu0
      %4563 = vmatprep.mubr.bf16.mxu0 %v3213
      %4564 = vmatmul.mubr.bf16.gmra.mxu0 %v3212
      %v4565 = vpop.f32.mrf.mxu0
      %v4566 = vadd.f32 0.0, %v4565
      %v4567 = vpop.f32.mrf.mxu0
      %v4568 = vpop.f32.mrf.mxu0
      %v4569 = vadd.f32 0.0, %v4568
      %v4570 = vpop.f32.mrf.mxu0
      %4571 = vmatprep.mubr.bf16.mxu0 %v3215
      %4572 = vmatmul.mubr.bf16.gmra.mxu0 %v3214
      %v4573 = vpop.f32.mrf.mxu0
      %v4574 = vadd.f32 0.0, %v4573
      %v4575 = vpop.f32.mrf.mxu0
      %v4576 = vpop.f32.mrf.mxu0
      %v4577 = vadd.f32 0.0, %v4576
      %v4578 = vpop.f32.mrf.mxu0
      %4579 = vmatprep.mubr.bf16.mxu0 %v3217
      %4580 = vmatmul.mubr.bf16.gmra.mxu0 %v3216
      %v4581 = vpop.f32.mrf.mxu0
      %v4582 = vadd.f32 0.0, %v4581
      %v4583 = vpop.f32.mrf.mxu0
      %v4584 = vpop.f32.mrf.mxu0
      %v4585 = vadd.f32 0.0, %v4584
      %v4586 = vpop.f32.mrf.mxu0
      %4587 = vmatprep.mubr.bf16.mxu0 %v3219
      %4588 = vmatmul.mubr.bf16.gmra.mxu0 %v3218
      %v4589 = vpop.f32.mrf.mxu0
      %v4590 = vadd.f32 0.0, %v4589
      %v4591 = vpop.f32.mrf.mxu0
      %v4592 = vpop.f32.mrf.mxu0
      %v4593 = vadd.f32 0.0, %v4592
      %v4594 = vpop.f32.mrf.mxu0
      %4595 = vmatprep.mubr.bf16.mxu0 %v3221
      %4596 = vmatmul.mubr.bf16.gmra.mxu0 %v3220
      %v4597 = vpop.f32.mrf.mxu0
      %v4598 = vadd.f32 0.0, %v4597
      %v4599 = vpop.f32.mrf.mxu0
      %v4600 = vpop.f32.mrf.mxu0
      %v4601 = vadd.f32 0.0, %v4600
      %v4602 = vpop.f32.mrf.mxu0
      %4603 = vmatprep.mubr.bf16.mxu0 %v3223
      %4604 = vmatmul.mubr.bf16.gmra.mxu0 %v3222
      %v4605 = vpop.f32.mrf.mxu0
      %v4606 = vadd.f32 0.0, %v4605
      %v4607 = vpop.f32.mrf.mxu0
      %v4608 = vpop.f32.mrf.mxu0
      %v4609 = vadd.f32 0.0, %v4608
      %v4610 = vpop.f32.mrf.mxu0
      %4611 = vmatprep.mubr.bf16.mxu0 %v3225
      %4612 = vmatmul.mubr.bf16.gmra.mxu0 %v3224
      %v4613 = vpop.f32.mrf.mxu0
      %v4614 = vadd.f32 0.0, %v4613
      %v4615 = vpop.f32.mrf.mxu0
      %v4616 = vpop.f32.mrf.mxu0
      %v4617 = vadd.f32 0.0, %v4616
      %v4618 = vpop.f32.mrf.mxu0
      %4619 = vmatprep.mubr.bf16.mxu0 %v3227
      %4620 = vmatmul.mubr.bf16.gmra.mxu0 %v3226
      %v4621 = vpop.f32.mrf.mxu0
      %v4622 = vadd.f32 0.0, %v4621
      %v4623 = vpop.f32.mrf.mxu0
      %v4624 = vpop.f32.mrf.mxu0
      %v4625 = vadd.f32 0.0, %v4624
      %v4626 = vpop.f32.mrf.mxu0
      %4627 = vmatprep.mubr.bf16.mxu0 %v3229
      %4628 = vmatmul.mubr.bf16.gmra.mxu0 %v3228
      %v4629 = vpop.f32.mrf.mxu0
      %v4630 = vadd.f32 0.0, %v4629
      %v4631 = vpop.f32.mrf.mxu0
      %v4632 = vpop.f32.mrf.mxu0
      %v4633 = vadd.f32 0.0, %v4632
      %v4634 = vpop.f32.mrf.mxu0
      %4635 = vmatprep.mubr.bf16.mxu0 %v3231
      %4636 = vmatmul.mubr.bf16.gmra.mxu0 %v3230
      %v4637 = vpop.f32.mrf.mxu0
      %v4638 = vadd.f32 0.0, %v4637
      %v4639 = vpop.f32.mrf.mxu0
      %v4640 = vpop.f32.mrf.mxu0
      %v4641 = vadd.f32 0.0, %v4640
      %v4642 = vpop.f32.mrf.mxu0
      %4643 = vdwg.mxu0
      %v4644 = vpack.c.bf16 %v3335, %v3331
      %v4645 = vpack.c.bf16 %v3337, %v3333
      %v4646 = vpack.c.bf16 %v3688, %v3684
      %v4647 = vpack.c.bf16 %v3690, %v3686
      %v4648 = vpack.c.bf16 %v4041, %v4037
      %v4649 = vpack.c.bf16 %v4043, %v4039
      %v4650 = vpack.c.bf16 %v4393, %v4390
      %v4651 = vpack.c.bf16 %v3345, %v3341
      %v4652 = vpack.c.bf16 %v3347, %v3343
      %v4653 = vpack.c.bf16 %v3698, %v3694
      %v4654 = vpack.c.bf16 %v3700, %v3696
      %v4655 = vpack.c.bf16 %v4051, %v4047
      %v4656 = vpack.c.bf16 %v4053, %v4049
      %v4657 = vpack.c.bf16 %v4401, %v4398
      %v4658 = vpack.c.bf16 %v3355, %v3351
      %v4659 = vpack.c.bf16 %v3357, %v3353
      %v4660 = vpack.c.bf16 %v3708, %v3704
      %v4661 = vpack.c.bf16 %v3710, %v3706
      %v4662 = vpack.c.bf16 %v4061, %v4057
      %v4663 = vpack.c.bf16 %v4063, %v4059
      %v4664 = vpack.c.bf16 %v4409, %v4406
      %v4665 = vpack.c.bf16 %v3365, %v3361
      %v4666 = vpack.c.bf16 %v3367, %v3363
      %v4667 = vpack.c.bf16 %v3718, %v3714
      %v4668 = vpack.c.bf16 %v3720, %v3716
      %v4669 = vpack.c.bf16 %v4071, %v4067
      %v4670 = vpack.c.bf16 %v4073, %v4069
      %v4671 = vpack.c.bf16 %v4417, %v4414
      %v4672 = vpack.c.bf16 %v3375, %v3371
      %v4673 = vpack.c.bf16 %v3377, %v3373
      %v4674 = vpack.c.bf16 %v3728, %v3724
      %v4675 = vpack.c.bf16 %v3730, %v3726
      %v4676 = vpack.c.bf16 %v4081, %v4077
      %v4677 = vpack.c.bf16 %v4083, %v4079
      %v4678 = vpack.c.bf16 %v4425, %v4422
      %v4679 = vpack.c.bf16 %v3385, %v3381
      %v4680 = vpack.c.bf16 %v3387, %v3383
      %v4681 = vpack.c.bf16 %v3738, %v3734
      %v4682 = vpack.c.bf16 %v3740, %v3736
      %v4683 = vpack.c.bf16 %v4091, %v4087
      %v4684 = vpack.c.bf16 %v4093, %v4089
      %v4685 = vpack.c.bf16 %v4433, %v4430
      %v4686 = vpack.c.bf16 %v3395, %v3391
      %v4687 = vpack.c.bf16 %v3397, %v3393
      %v4688 = vpack.c.bf16 %v3748, %v3744
      %v4689 = vpack.c.bf16 %v3750, %v3746
      %v4690 = vpack.c.bf16 %v4101, %v4097
      %v4691 = vpack.c.bf16 %v4103, %v4099
      %v4692 = vpack.c.bf16 %v4441, %v4438
      %v4693 = vpack.c.bf16 %v3405, %v3401
      %v4694 = vpack.c.bf16 %v3407, %v3403
      %v4695 = vpack.c.bf16 %v3758, %v3754
      %v4696 = vpack.c.bf16 %v3760, %v3756
      %v4697 = vpack.c.bf16 %v4111, %v4107
      %v4698 = vpack.c.bf16 %v4113, %v4109
      %v4699 = vpack.c.bf16 %v4449, %v4446
      %v4700 = vpack.c.bf16 %v3415, %v3411
      %v4701 = vpack.c.bf16 %v3417, %v3413
      %v4702 = vpack.c.bf16 %v3768, %v3764
      %v4703 = vpack.c.bf16 %v3770, %v3766
      %v4704 = vpack.c.bf16 %v4121, %v4117
      %v4705 = vpack.c.bf16 %v4123, %v4119
      %v4706 = vpack.c.bf16 %v4457, %v4454
      %v4707 = vpack.c.bf16 %v3425, %v3421
      %v4708 = vpack.c.bf16 %v3427, %v3423
      %v4709 = vpack.c.bf16 %v3778, %v3774
      %v4710 = vpack.c.bf16 %v3780, %v3776
      %v4711 = vpack.c.bf16 %v4131, %v4127
      %v4712 = vpack.c.bf16 %v4133, %v4129
      %v4713 = vpack.c.bf16 %v4465, %v4462
      %v4714 = vpack.c.bf16 %v3435, %v3431
      %v4715 = vpack.c.bf16 %v3437, %v3433
      %v4716 = vpack.c.bf16 %v3788, %v3784
      %v4717 = vpack.c.bf16 %v3790, %v3786
      %v4718 = vpack.c.bf16 %v4141, %v4137
      %v4719 = vpack.c.bf16 %v4143, %v4139
      %v4720 = vpack.c.bf16 %v4473, %v4470
      %v4721 = vpack.c.bf16 %v3445, %v3441
      %v4722 = vpack.c.bf16 %v3447, %v3443
      %v4723 = vpack.c.bf16 %v3798, %v3794
      %v4724 = vpack.c.bf16 %v3800, %v3796
      %v4725 = vpack.c.bf16 %v4151, %v4147
      %v4726 = vpack.c.bf16 %v4153, %v4149
      %v4727 = vpack.c.bf16 %v4481, %v4478
      %v4728 = vpack.c.bf16 %v3455, %v3451
      %v4729 = vpack.c.bf16 %v3457, %v3453
      %v4730 = vpack.c.bf16 %v3808, %v3804
      %v4731 = vpack.c.bf16 %v3810, %v3806
      %v4732 = vpack.c.bf16 %v4161, %v4157
      %v4733 = vpack.c.bf16 %v4163, %v4159
      %v4734 = vpack.c.bf16 %v4489, %v4486
      %v4735 = vpack.c.bf16 %v3465, %v3461
      %v4736 = vpack.c.bf16 %v3467, %v3463
      %v4737 = vpack.c.bf16 %v3818, %v3814
      %v4738 = vpack.c.bf16 %v3820, %v3816
      %v4739 = vpack.c.bf16 %v4171, %v4167
      %v4740 = vpack.c.bf16 %v4173, %v4169
      %v4741 = vpack.c.bf16 %v4497, %v4494
      %v4742 = vpack.c.bf16 %v3475, %v3471
      %v4743 = vpack.c.bf16 %v3477, %v3473
      %v4744 = vpack.c.bf16 %v3828, %v3824
      %v4745 = vpack.c.bf16 %v3830, %v3826
      %v4746 = vpack.c.bf16 %v4181, %v4177
      %v4747 = vpack.c.bf16 %v4183, %v4179
      %v4748 = vpack.c.bf16 %v4505, %v4502
      %v4749 = vpack.c.bf16 %v3485, %v3481
      %v4750 = vpack.c.bf16 %v3487, %v3483
      %v4751 = vpack.c.bf16 %v3838, %v3834
      %v4752 = vpack.c.bf16 %v3840, %v3836
      %v4753 = vpack.c.bf16 %v4191, %v4187
      %v4754 = vpack.c.bf16 %v4193, %v4189
      %v4755 = vpack.c.bf16 %v4513, %v4510
      %v4756 = vpack.c.bf16 %v3495, %v3491
      %v4757 = vpack.c.bf16 %v3497, %v3493
      %v4758 = vpack.c.bf16 %v3848, %v3844
      %v4759 = vpack.c.bf16 %v3850, %v3846
      %v4760 = vpack.c.bf16 %v4201, %v4197
      %v4761 = vpack.c.bf16 %v4203, %v4199
      %v4762 = vpack.c.bf16 %v4521, %v4518
      %v4763 = vpack.c.bf16 %v3505, %v3501
      %v4764 = vpack.c.bf16 %v3507, %v3503
      %v4765 = vpack.c.bf16 %v3858, %v3854
      %v4766 = vpack.c.bf16 %v3860, %v3856
      %v4767 = vpack.c.bf16 %v4211, %v4207
      %v4768 = vpack.c.bf16 %v4213, %v4209
      %v4769 = vpack.c.bf16 %v4529, %v4526
      %v4770 = vpack.c.bf16 %v3515, %v3511
      %v4771 = vpack.c.bf16 %v3517, %v3513
      %v4772 = vpack.c.bf16 %v3868, %v3864
      %v4773 = vpack.c.bf16 %v3870, %v3866
      %v4774 = vpack.c.bf16 %v4221, %v4217
      %v4775 = vpack.c.bf16 %v4223, %v4219
      %v4776 = vpack.c.bf16 %v4537, %v4534
      %v4777 = vpack.c.bf16 %v3525, %v3521
      %v4778 = vpack.c.bf16 %v3527, %v3523
      %v4779 = vpack.c.bf16 %v3878, %v3874
      %v4780 = vpack.c.bf16 %v3880, %v3876
      %v4781 = vpack.c.bf16 %v4231, %v4227
      %v4782 = vpack.c.bf16 %v4233, %v4229
      %v4783 = vpack.c.bf16 %v4545, %v4542
      %v4784 = vpack.c.bf16 %v3535, %v3531
      %v4785 = vpack.c.bf16 %v3537, %v3533
      %v4786 = vpack.c.bf16 %v3888, %v3884
      %v4787 = vpack.c.bf16 %v3890, %v3886
      %v4788 = vpack.c.bf16 %v4241, %v4237
      %v4789 = vpack.c.bf16 %v4243, %v4239
      %v4790 = vpack.c.bf16 %v4553, %v4550
      %v4791 = vpack.c.bf16 %v3545, %v3541
      %v4792 = vpack.c.bf16 %v3547, %v3543
      %v4793 = vpack.c.bf16 %v3898, %v3894
      %v4794 = vpack.c.bf16 %v3900, %v3896
      %v4795 = vpack.c.bf16 %v4251, %v4247
      %v4796 = vpack.c.bf16 %v4253, %v4249
      %v4797 = vpack.c.bf16 %v4561, %v4558
      %v4798 = vpack.c.bf16 %v3555, %v3551
      %v4799 = vpack.c.bf16 %v3557, %v3553
      %v4800 = vpack.c.bf16 %v3908, %v3904
      %v4801 = vpack.c.bf16 %v3910, %v3906
      %v4802 = vpack.c.bf16 %v4261, %v4257
      %v4803 = vpack.c.bf16 %v4263, %v4259
      %v4804 = vpack.c.bf16 %v4569, %v4566
      %v4805 = vpack.c.bf16 %v3565, %v3561
      %v4806 = vpack.c.bf16 %v3567, %v3563
      %v4807 = vpack.c.bf16 %v3918, %v3914
      %v4808 = vpack.c.bf16 %v3920, %v3916
      %v4809 = vpack.c.bf16 %v4271, %v4267
      %v4810 = vpack.c.bf16 %v4273, %v4269
      %v4811 = vpack.c.bf16 %v4577, %v4574
      %v4812 = vpack.c.bf16 %v3575, %v3571
      %v4813 = vpack.c.bf16 %v3577, %v3573
      %v4814 = vpack.c.bf16 %v3928, %v3924
      %v4815 = vpack.c.bf16 %v3930, %v3926
      %v4816 = vpack.c.bf16 %v4281, %v4277
      %v4817 = vpack.c.bf16 %v4283, %v4279
      %v4818 = vpack.c.bf16 %v4585, %v4582
      %v4819 = vpack.c.bf16 %v3585, %v3581
      %v4820 = vpack.c.bf16 %v3587, %v3583
      %v4821 = vpack.c.bf16 %v3938, %v3934
      %v4822 = vpack.c.bf16 %v3940, %v3936
      %v4823 = vpack.c.bf16 %v4291, %v4287
      %v4824 = vpack.c.bf16 %v4293, %v4289
      %v4825 = vpack.c.bf16 %v4593, %v4590
      %v4826 = vpack.c.bf16 %v3595, %v3591
      %v4827 = vpack.c.bf16 %v3597, %v3593
      %v4828 = vpack.c.bf16 %v3948, %v3944
      %v4829 = vpack.c.bf16 %v3950, %v3946
      %v4830 = vpack.c.bf16 %v4301, %v4297
      %v4831 = vpack.c.bf16 %v4303, %v4299
      %v4832 = vpack.c.bf16 %v4601, %v4598
      %v4833 = vpack.c.bf16 %v3605, %v3601
      %v4834 = vpack.c.bf16 %v3607, %v3603
      %v4835 = vpack.c.bf16 %v3958, %v3954
      %v4836 = vpack.c.bf16 %v3960, %v3956
      %v4837 = vpack.c.bf16 %v4311, %v4307
      %v4838 = vpack.c.bf16 %v4313, %v4309
      %v4839 = vpack.c.bf16 %v4609, %v4606
      %v4840 = vpack.c.bf16 %v3615, %v3611
      %v4841 = vpack.c.bf16 %v3617, %v3613
      %v4842 = vpack.c.bf16 %v3968, %v3964
      %v4843 = vpack.c.bf16 %v3970, %v3966
      %v4844 = vpack.c.bf16 %v4321, %v4317
      %v4845 = vpack.c.bf16 %v4323, %v4319
      %v4846 = vpack.c.bf16 %v4617, %v4614
      %v4847 = vpack.c.bf16 %v3625, %v3621
      %v4848 = vpack.c.bf16 %v3627, %v3623
      %v4849 = vpack.c.bf16 %v3978, %v3974
      %v4850 = vpack.c.bf16 %v3980, %v3976
      %v4851 = vpack.c.bf16 %v4331, %v4327
      %v4852 = vpack.c.bf16 %v4333, %v4329
      %v4853 = vpack.c.bf16 %v4625, %v4622
      %v4854 = vpack.c.bf16 %v3635, %v3631
      %v4855 = vpack.c.bf16 %v3637, %v3633
      %v4856 = vpack.c.bf16 %v3988, %v3984
      %v4857 = vpack.c.bf16 %v3990, %v3986
      %v4858 = vpack.c.bf16 %v4341, %v4337
      %v4859 = vpack.c.bf16 %v4343, %v4339
      %v4860 = vpack.c.bf16 %v4633, %v4630
      %v4861 = vpack.c.bf16 %v3645, %v3641
      %v4862 = vpack.c.bf16 %v3647, %v3643
      %v4863 = vpack.c.bf16 %v3998, %v3994
      %v4864 = vpack.c.bf16 %v4000, %v3996
      %v4865 = vpack.c.bf16 %v4351, %v4347
      %v4866 = vpack.c.bf16 %v4353, %v4349
      %v4867 = vpack.c.bf16 %v4641, %v4638
      %v5092 = vunpack.c.l.b16 %v4644
      %v5093 = vunpack.c.l.b16 %v4645
      %v5094 = vunpack.c.l.b16 %v4646
      %v5095 = vunpack.c.l.b16 %v4647
      %v5096 = vunpack.c.l.b16 %v4648
      %v5097 = vunpack.c.l.b16 %v4649
      %v5098 = vunpack.c.l.b16 %v4650
      %v5099 = vunpack.c.h.b16 %v4644
      %v5100 = vunpack.c.h.b16 %v4645
      %v5101 = vunpack.c.h.b16 %v4646
      %v5102 = vunpack.c.h.b16 %v4647
      %v5103 = vunpack.c.h.b16 %v4648
      %v5104 = vunpack.c.h.b16 %v4649
      %v5105 = vunpack.c.h.b16 %v4650
      %v5106 = vunpack.c.l.b16 %v4651
      %v5107 = vunpack.c.l.b16 %v4652
      %v5108 = vunpack.c.l.b16 %v4653
      %v5109 = vunpack.c.l.b16 %v4654
      %v5110 = vunpack.c.l.b16 %v4655
      %v5111 = vunpack.c.l.b16 %v4656
      %v5112 = vunpack.c.l.b16 %v4657
      %v5113 = vunpack.c.h.b16 %v4651
      %v5114 = vunpack.c.h.b16 %v4652
      %v5115 = vunpack.c.h.b16 %v4653
      %v5116 = vunpack.c.h.b16 %v4654
      %v5117 = vunpack.c.h.b16 %v4655
      %v5118 = vunpack.c.h.b16 %v4656
      %v5119 = vunpack.c.h.b16 %v4657
      %v5120 = vunpack.c.l.b16 %v4658
      %v5121 = vunpack.c.l.b16 %v4659
      %v5122 = vunpack.c.l.b16 %v4660
      %v5123 = vunpack.c.l.b16 %v4661
      %v5124 = vunpack.c.l.b16 %v4662
      %v5125 = vunpack.c.l.b16 %v4663
      %v5126 = vunpack.c.l.b16 %v4664
      %v5127 = vunpack.c.h.b16 %v4658
      %v5128 = vunpack.c.h.b16 %v4659
      %v5129 = vunpack.c.h.b16 %v4660
      %v5130 = vunpack.c.h.b16 %v4661
      %v5131 = vunpack.c.h.b16 %v4662
      %v5132 = vunpack.c.h.b16 %v4663
      %v5133 = vunpack.c.h.b16 %v4664
      %v5134 = vunpack.c.l.b16 %v4665
      %v5135 = vunpack.c.l.b16 %v4666
      %v5136 = vunpack.c.l.b16 %v4667
      %v5137 = vunpack.c.l.b16 %v4668
      %v5138 = vunpack.c.l.b16 %v4669
      %v5139 = vunpack.c.l.b16 %v4670
      %v5140 = vunpack.c.l.b16 %v4671
      %v5141 = vunpack.c.h.b16 %v4665
      %v5142 = vunpack.c.h.b16 %v4666
      %v5143 = vunpack.c.h.b16 %v4667
      %v5144 = vunpack.c.h.b16 %v4668
      %v5145 = vunpack.c.h.b16 %v4669
      %v5146 = vunpack.c.h.b16 %v4670
      %v5147 = vunpack.c.h.b16 %v4671
      %v5148 = vunpack.c.l.b16 %v4672
      %v5149 = vunpack.c.l.b16 %v4673
      %v5150 = vunpack.c.l.b16 %v4674
      %v5151 = vunpack.c.l.b16 %v4675
      %v5152 = vunpack.c.l.b16 %v4676
      %v5153 = vunpack.c.l.b16 %v4677
      %v5154 = vunpack.c.l.b16 %v4678
      %v5155 = vunpack.c.h.b16 %v4672
      %v5156 = vunpack.c.h.b16 %v4673
      %v5157 = vunpack.c.h.b16 %v4674
      %v5158 = vunpack.c.h.b16 %v4675
      %v5159 = vunpack.c.h.b16 %v4676
      %v5160 = vunpack.c.h.b16 %v4677
      %v5161 = vunpack.c.h.b16 %v4678
      %v5162 = vunpack.c.l.b16 %v4679
      %v5163 = vunpack.c.l.b16 %v4680
      %v5164 = vunpack.c.l.b16 %v4681
      %v5165 = vunpack.c.l.b16 %v4682
      %v5166 = vunpack.c.l.b16 %v4683
      %v5167 = vunpack.c.l.b16 %v4684
      %v5168 = vunpack.c.l.b16 %v4685
      %v5169 = vunpack.c.h.b16 %v4679
      %v5170 = vunpack.c.h.b16 %v4680
      %v5171 = vunpack.c.h.b16 %v4681
      %v5172 = vunpack.c.h.b16 %v4682
      %v5173 = vunpack.c.h.b16 %v4683
      %v5174 = vunpack.c.h.b16 %v4684
      %v5175 = vunpack.c.h.b16 %v4685
      %v5176 = vunpack.c.l.b16 %v4686
      %v5177 = vunpack.c.l.b16 %v4687
      %v5178 = vunpack.c.l.b16 %v4688
      %v5179 = vunpack.c.l.b16 %v4689
      %v5180 = vunpack.c.l.b16 %v4690
      %v5181 = vunpack.c.l.b16 %v4691
      %v5182 = vunpack.c.l.b16 %v4692
      %v5183 = vunpack.c.h.b16 %v4686
      %v5184 = vunpack.c.h.b16 %v4687
      %v5185 = vunpack.c.h.b16 %v4688
      %v5186 = vunpack.c.h.b16 %v4689
      %v5187 = vunpack.c.h.b16 %v4690
      %v5188 = vunpack.c.h.b16 %v4691
      %v5189 = vunpack.c.h.b16 %v4692
      %v5190 = vunpack.c.l.b16 %v4693
      %v5191 = vunpack.c.l.b16 %v4694
      %v5192 = vunpack.c.l.b16 %v4695
      %v5193 = vunpack.c.l.b16 %v4696
      %v5194 = vunpack.c.l.b16 %v4697
      %v5195 = vunpack.c.l.b16 %v4698
      %v5196 = vunpack.c.l.b16 %v4699
      %v5197 = vunpack.c.h.b16 %v4693
      %v5198 = vunpack.c.h.b16 %v4694
      %v5199 = vunpack.c.h.b16 %v4695
      %v5200 = vunpack.c.h.b16 %v4696
      %v5201 = vunpack.c.h.b16 %v4697
      %v5202 = vunpack.c.h.b16 %v4698
      %v5203 = vunpack.c.h.b16 %v4699
      %v5204 = vunpack.c.l.b16 %v4700
      %v5205 = vunpack.c.l.b16 %v4701
      %v5206 = vunpack.c.l.b16 %v4702
      %v5207 = vunpack.c.l.b16 %v4703
      %v5208 = vunpack.c.l.b16 %v4704
      %v5209 = vunpack.c.l.b16 %v4705
      %v5210 = vunpack.c.l.b16 %v4706
      %v5211 = vunpack.c.h.b16 %v4700
      %v5212 = vunpack.c.h.b16 %v4701
      %v5213 = vunpack.c.h.b16 %v4702
      %v5214 = vunpack.c.h.b16 %v4703
      %v5215 = vunpack.c.h.b16 %v4704
      %v5216 = vunpack.c.h.b16 %v4705
      %v5217 = vunpack.c.h.b16 %v4706
      %v5218 = vunpack.c.l.b16 %v4707
      %v5219 = vunpack.c.l.b16 %v4708
      %v5220 = vunpack.c.l.b16 %v4709
      %v5221 = vunpack.c.l.b16 %v4710
      %v5222 = vunpack.c.l.b16 %v4711
      %v5223 = vunpack.c.l.b16 %v4712
      %v5224 = vunpack.c.l.b16 %v4713
      %v5225 = vunpack.c.h.b16 %v4707
      %v5226 = vunpack.c.h.b16 %v4708
      %v5227 = vunpack.c.h.b16 %v4709
      %v5228 = vunpack.c.h.b16 %v4710
      %v5229 = vunpack.c.h.b16 %v4711
      %v5230 = vunpack.c.h.b16 %v4712
      %v5231 = vunpack.c.h.b16 %v4713
      %v5232 = vunpack.c.l.b16 %v4714
      %v5233 = vunpack.c.l.b16 %v4715
      %v5234 = vunpack.c.l.b16 %v4716
      %v5235 = vunpack.c.l.b16 %v4717
      %v5236 = vunpack.c.l.b16 %v4718
      %v5237 = vunpack.c.l.b16 %v4719
      %v5238 = vunpack.c.l.b16 %v4720
      %v5239 = vunpack.c.h.b16 %v4714
      %v5240 = vunpack.c.h.b16 %v4715
      %v5241 = vunpack.c.h.b16 %v4716
      %v5242 = vunpack.c.h.b16 %v4717
      %v5243 = vunpack.c.h.b16 %v4718
      %v5244 = vunpack.c.h.b16 %v4719
      %v5245 = vunpack.c.h.b16 %v4720
      %v5246 = vunpack.c.l.b16 %v4721
      %v5247 = vunpack.c.l.b16 %v4722
      %v5248 = vunpack.c.l.b16 %v4723
      %v5249 = vunpack.c.l.b16 %v4724
      %v5250 = vunpack.c.l.b16 %v4725
      %v5251 = vunpack.c.l.b16 %v4726
      %v5252 = vunpack.c.l.b16 %v4727
      %v5253 = vunpack.c.h.b16 %v4721
      %v5254 = vunpack.c.h.b16 %v4722
      %v5255 = vunpack.c.h.b16 %v4723
      %v5256 = vunpack.c.h.b16 %v4724
      %v5257 = vunpack.c.h.b16 %v4725
      %v5258 = vunpack.c.h.b16 %v4726
      %v5259 = vunpack.c.h.b16 %v4727
      %v5260 = vunpack.c.l.b16 %v4728
      %v5261 = vunpack.c.l.b16 %v4729
      %v5262 = vunpack.c.l.b16 %v4730
      %v5263 = vunpack.c.l.b16 %v4731
      %v5264 = vunpack.c.l.b16 %v4732
      %v5265 = vunpack.c.l.b16 %v4733
      %v5266 = vunpack.c.l.b16 %v4734
      %v5267 = vunpack.c.h.b16 %v4728
      %v5268 = vunpack.c.h.b16 %v4729
      %v5269 = vunpack.c.h.b16 %v4730
      %v5270 = vunpack.c.h.b16 %v4731
      %v5271 = vunpack.c.h.b16 %v4732
      %v5272 = vunpack.c.h.b16 %v4733
      %v5273 = vunpack.c.h.b16 %v4734
      %v5274 = vunpack.c.l.b16 %v4735
      %v5275 = vunpack.c.l.b16 %v4736
      %v5276 = vunpack.c.l.b16 %v4737
      %v5277 = vunpack.c.l.b16 %v4738
      %v5278 = vunpack.c.l.b16 %v4739
      %v5279 = vunpack.c.l.b16 %v4740
      %v5280 = vunpack.c.l.b16 %v4741
      %v5281 = vunpack.c.h.b16 %v4735
      %v5282 = vunpack.c.h.b16 %v4736
      %v5283 = vunpack.c.h.b16 %v4737
      %v5284 = vunpack.c.h.b16 %v4738
      %v5285 = vunpack.c.h.b16 %v4739
      %v5286 = vunpack.c.h.b16 %v4740
      %v5287 = vunpack.c.h.b16 %v4741
      %v5288 = vunpack.c.l.b16 %v4742
      %v5289 = vunpack.c.l.b16 %v4743
      %v5290 = vunpack.c.l.b16 %v4744
      %v5291 = vunpack.c.l.b16 %v4745
      %v5292 = vunpack.c.l.b16 %v4746
      %v5293 = vunpack.c.l.b16 %v4747
      %v5294 = vunpack.c.l.b16 %v4748
      %v5295 = vunpack.c.h.b16 %v4742
      %v5296 = vunpack.c.h.b16 %v4743
      %v5297 = vunpack.c.h.b16 %v4744
      %v5298 = vunpack.c.h.b16 %v4745
      %v5299 = vunpack.c.h.b16 %v4746
      %v5300 = vunpack.c.h.b16 %v4747
      %v5301 = vunpack.c.h.b16 %v4748
      %v5302 = vunpack.c.l.b16 %v4749
      %v5303 = vunpack.c.l.b16 %v4750
      %v5304 = vunpack.c.l.b16 %v4751
      %v5305 = vunpack.c.l.b16 %v4752
      %v5306 = vunpack.c.l.b16 %v4753
      %v5307 = vunpack.c.l.b16 %v4754
      %v5308 = vunpack.c.l.b16 %v4755
      %v5309 = vunpack.c.h.b16 %v4749
      %v5310 = vunpack.c.h.b16 %v4750
      %v5311 = vunpack.c.h.b16 %v4751
      %v5312 = vunpack.c.h.b16 %v4752
      %v5313 = vunpack.c.h.b16 %v4753
      %v5314 = vunpack.c.h.b16 %v4754
      %v5315 = vunpack.c.h.b16 %v4755
      %v5316 = vunpack.c.l.b16 %v4756
      %v5317 = vunpack.c.l.b16 %v4757
      %v5318 = vunpack.c.l.b16 %v4758
      %v5319 = vunpack.c.l.b16 %v4759
      %v5320 = vunpack.c.l.b16 %v4760
      %v5321 = vunpack.c.l.b16 %v4761
      %v5322 = vunpack.c.l.b16 %v4762
      %v5323 = vunpack.c.h.b16 %v4756
      %v5324 = vunpack.c.h.b16 %v4757
      %v5325 = vunpack.c.h.b16 %v4758
      %v5326 = vunpack.c.h.b16 %v4759
      %v5327 = vunpack.c.h.b16 %v4760
      %v5328 = vunpack.c.h.b16 %v4761
      %v5329 = vunpack.c.h.b16 %v4762
      %v5330 = vunpack.c.l.b16 %v4763
      %v5331 = vunpack.c.l.b16 %v4764
      %v5332 = vunpack.c.l.b16 %v4765
      %v5333 = vunpack.c.l.b16 %v4766
      %v5334 = vunpack.c.l.b16 %v4767
      %v5335 = vunpack.c.l.b16 %v4768
      %v5336 = vunpack.c.l.b16 %v4769
      %v5337 = vunpack.c.h.b16 %v4763
      %v5338 = vunpack.c.h.b16 %v4764
      %v5339 = vunpack.c.h.b16 %v4765
      %v5340 = vunpack.c.h.b16 %v4766
      %v5341 = vunpack.c.h.b16 %v4767
      %v5342 = vunpack.c.h.b16 %v4768
      %v5343 = vunpack.c.h.b16 %v4769
      %v5344 = vunpack.c.l.b16 %v4770
      %v5345 = vunpack.c.l.b16 %v4771
      %v5346 = vunpack.c.l.b16 %v4772
      %v5347 = vunpack.c.l.b16 %v4773
      %v5348 = vunpack.c.l.b16 %v4774
      %v5349 = vunpack.c.l.b16 %v4775
      %v5350 = vunpack.c.l.b16 %v4776
      %v5351 = vunpack.c.h.b16 %v4770
      %v5352 = vunpack.c.h.b16 %v4771
      %v5353 = vunpack.c.h.b16 %v4772
      %v5354 = vunpack.c.h.b16 %v4773
      %v5355 = vunpack.c.h.b16 %v4774
      %v5356 = vunpack.c.h.b16 %v4775
      %v5357 = vunpack.c.h.b16 %v4776
      %v5358 = vunpack.c.l.b16 %v4777
      %v5359 = vunpack.c.l.b16 %v4778
      %v5360 = vunpack.c.l.b16 %v4779
      %v5361 = vunpack.c.l.b16 %v4780
      %v5362 = vunpack.c.l.b16 %v4781
      %v5363 = vunpack.c.l.b16 %v4782
      %v5364 = vunpack.c.l.b16 %v4783
      %v5365 = vunpack.c.h.b16 %v4777
      %v5366 = vunpack.c.h.b16 %v4778
      %v5367 = vunpack.c.h.b16 %v4779
      %v5368 = vunpack.c.h.b16 %v4780
      %v5369 = vunpack.c.h.b16 %v4781
      %v5370 = vunpack.c.h.b16 %v4782
      %v5371 = vunpack.c.h.b16 %v4783
      %v5372 = vunpack.c.l.b16 %v4784
      %v5373 = vunpack.c.l.b16 %v4785
      %v5374 = vunpack.c.l.b16 %v4786
      %v5375 = vunpack.c.l.b16 %v4787
      %v5376 = vunpack.c.l.b16 %v4788
      %v5377 = vunpack.c.l.b16 %v4789
      %v5378 = vunpack.c.l.b16 %v4790
      %v5379 = vunpack.c.h.b16 %v4784
      %v5380 = vunpack.c.h.b16 %v4785
      %v5381 = vunpack.c.h.b16 %v4786
      %v5382 = vunpack.c.h.b16 %v4787
      %v5383 = vunpack.c.h.b16 %v4788
      %v5384 = vunpack.c.h.b16 %v4789
      %v5385 = vunpack.c.h.b16 %v4790
      %v5386 = vunpack.c.l.b16 %v4791
      %v5387 = vunpack.c.l.b16 %v4792
      %v5388 = vunpack.c.l.b16 %v4793
      %v5389 = vunpack.c.l.b16 %v4794
      %v5390 = vunpack.c.l.b16 %v4795
      %v5391 = vunpack.c.l.b16 %v4796
      %v5392 = vunpack.c.l.b16 %v4797
      %v5393 = vunpack.c.h.b16 %v4791
      %v5394 = vunpack.c.h.b16 %v4792
      %v5395 = vunpack.c.h.b16 %v4793
      %v5396 = vunpack.c.h.b16 %v4794
      %v5397 = vunpack.c.h.b16 %v4795
      %v5398 = vunpack.c.h.b16 %v4796
      %v5399 = vunpack.c.h.b16 %v4797
      %v5400 = vunpack.c.l.b16 %v4798
      %v5401 = vunpack.c.l.b16 %v4799
      %v5402 = vunpack.c.l.b16 %v4800
      %v5403 = vunpack.c.l.b16 %v4801
      %v5404 = vunpack.c.l.b16 %v4802
      %v5405 = vunpack.c.l.b16 %v4803
      %v5406 = vunpack.c.l.b16 %v4804
      %v5407 = vunpack.c.h.b16 %v4798
      %v5408 = vunpack.c.h.b16 %v4799
      %v5409 = vunpack.c.h.b16 %v4800
      %v5410 = vunpack.c.h.b16 %v4801
      %v5411 = vunpack.c.h.b16 %v4802
      %v5412 = vunpack.c.h.b16 %v4803
      %v5413 = vunpack.c.h.b16 %v4804
      %v5414 = vunpack.c.l.b16 %v4805
      %v5415 = vunpack.c.l.b16 %v4806
      %v5416 = vunpack.c.l.b16 %v4807
      %v5417 = vunpack.c.l.b16 %v4808
      %v5418 = vunpack.c.l.b16 %v4809
      %v5419 = vunpack.c.l.b16 %v4810
      %v5420 = vunpack.c.l.b16 %v4811
      %v5421 = vunpack.c.h.b16 %v4805
      %v5422 = vunpack.c.h.b16 %v4806
      %v5423 = vunpack.c.h.b16 %v4807
      %v5424 = vunpack.c.h.b16 %v4808
      %v5425 = vunpack.c.h.b16 %v4809
      %v5426 = vunpack.c.h.b16 %v4810
      %v5427 = vunpack.c.h.b16 %v4811
      %v5428 = vunpack.c.l.b16 %v4812
      %v5429 = vunpack.c.l.b16 %v4813
      %v5430 = vunpack.c.l.b16 %v4814
      %v5431 = vunpack.c.l.b16 %v4815
      %v5432 = vunpack.c.l.b16 %v4816
      %v5433 = vunpack.c.l.b16 %v4817
      %v5434 = vunpack.c.l.b16 %v4818
      %v5435 = vunpack.c.h.b16 %v4812
      %v5436 = vunpack.c.h.b16 %v4813
      %v5437 = vunpack.c.h.b16 %v4814
      %v5438 = vunpack.c.h.b16 %v4815
      %v5439 = vunpack.c.h.b16 %v4816
      %v5440 = vunpack.c.h.b16 %v4817
      %v5441 = vunpack.c.h.b16 %v4818
      %v5442 = vunpack.c.l.b16 %v4819
      %v5443 = vunpack.c.l.b16 %v4820
      %v5444 = vunpack.c.l.b16 %v4821
      %v5445 = vunpack.c.l.b16 %v4822
      %v5446 = vunpack.c.l.b16 %v4823
      %v5447 = vunpack.c.l.b16 %v4824
      %v5448 = vunpack.c.l.b16 %v4825
      %v5449 = vunpack.c.h.b16 %v4819
      %v5450 = vunpack.c.h.b16 %v4820
      %v5451 = vunpack.c.h.b16 %v4821
      %v5452 = vunpack.c.h.b16 %v4822
      %v5453 = vunpack.c.h.b16 %v4823
      %v5454 = vunpack.c.h.b16 %v4824
      %v5455 = vunpack.c.h.b16 %v4825
      %v5456 = vunpack.c.l.b16 %v4826
      %v5457 = vunpack.c.l.b16 %v4827
      %v5458 = vunpack.c.l.b16 %v4828
      %v5459 = vunpack.c.l.b16 %v4829
      %v5460 = vunpack.c.l.b16 %v4830
      %v5461 = vunpack.c.l.b16 %v4831
      %v5462 = vunpack.c.l.b16 %v4832
      %v5463 = vunpack.c.h.b16 %v4826
      %v5464 = vunpack.c.h.b16 %v4827
      %v5465 = vunpack.c.h.b16 %v4828
      %v5466 = vunpack.c.h.b16 %v4829
      %v5467 = vunpack.c.h.b16 %v4830
      %v5468 = vunpack.c.h.b16 %v4831
      %v5469 = vunpack.c.h.b16 %v4832
      %v5470 = vunpack.c.l.b16 %v4833
      %v5471 = vunpack.c.l.b16 %v4834
      %v5472 = vunpack.c.l.b16 %v4835
      %v5473 = vunpack.c.l.b16 %v4836
      %v5474 = vunpack.c.l.b16 %v4837
      %v5475 = vunpack.c.l.b16 %v4838
      %v5476 = vunpack.c.l.b16 %v4839
      %v5477 = vunpack.c.h.b16 %v4833
      %v5478 = vunpack.c.h.b16 %v4834
      %v5479 = vunpack.c.h.b16 %v4835
      %v5480 = vunpack.c.h.b16 %v4836
      %v5481 = vunpack.c.h.b16 %v4837
      %v5482 = vunpack.c.h.b16 %v4838
      %v5483 = vunpack.c.h.b16 %v4839
      %v5484 = vunpack.c.l.b16 %v4840
      %v5485 = vunpack.c.l.b16 %v4841
      %v5486 = vunpack.c.l.b16 %v4842
      %v5487 = vunpack.c.l.b16 %v4843
      %v5488 = vunpack.c.l.b16 %v4844
      %v5489 = vunpack.c.l.b16 %v4845
      %v5490 = vunpack.c.l.b16 %v4846
      %v5491 = vunpack.c.h.b16 %v4840
      %v5492 = vunpack.c.h.b16 %v4841
      %v5493 = vunpack.c.h.b16 %v4842
      %v5494 = vunpack.c.h.b16 %v4843
      %v5495 = vunpack.c.h.b16 %v4844
      %v5496 = vunpack.c.h.b16 %v4845
      %v5497 = vunpack.c.h.b16 %v4846
      %v5498 = vunpack.c.l.b16 %v4847
      %v5499 = vunpack.c.l.b16 %v4848
      %v5500 = vunpack.c.l.b16 %v4849
      %v5501 = vunpack.c.l.b16 %v4850
      %v5502 = vunpack.c.l.b16 %v4851
      %v5503 = vunpack.c.l.b16 %v4852
      %v5504 = vunpack.c.l.b16 %v4853
      %v5505 = vunpack.c.h.b16 %v4847
      %v5506 = vunpack.c.h.b16 %v4848
      %v5507 = vunpack.c.h.b16 %v4849
      %v5508 = vunpack.c.h.b16 %v4850
      %v5509 = vunpack.c.h.b16 %v4851
      %v5510 = vunpack.c.h.b16 %v4852
      %v5511 = vunpack.c.h.b16 %v4853
      %v5512 = vunpack.c.l.b16 %v4854
      %v5513 = vunpack.c.l.b16 %v4855
      %v5514 = vunpack.c.l.b16 %v4856
      %v5515 = vunpack.c.l.b16 %v4857
      %v5516 = vunpack.c.l.b16 %v4858
      %v5517 = vunpack.c.l.b16 %v4859
      %v5518 = vunpack.c.l.b16 %v4860
      %v5519 = vunpack.c.h.b16 %v4854
      %v5520 = vunpack.c.h.b16 %v4855
      %v5521 = vunpack.c.h.b16 %v4856
      %v5522 = vunpack.c.h.b16 %v4857
      %v5523 = vunpack.c.h.b16 %v4858
      %v5524 = vunpack.c.h.b16 %v4859
      %v5525 = vunpack.c.h.b16 %v4860
      %v5526 = vunpack.c.l.b16 %v4861
      %v5527 = vunpack.c.l.b16 %v4862
      %v5528 = vunpack.c.l.b16 %v4863
      %v5529 = vunpack.c.l.b16 %v4864
      %v5530 = vunpack.c.l.b16 %v4865
      %v5531 = vunpack.c.l.b16 %v4866
      %v5532 = vunpack.c.l.b16 %v4867
      %v5533 = vunpack.c.h.b16 %v4861
      %v5534 = vunpack.c.h.b16 %v4862
      %v5535 = vunpack.c.h.b16 %v4863
      %v5536 = vunpack.c.h.b16 %v4864
      %v5537 = vunpack.c.h.b16 %v4865
      %v5538 = vunpack.c.h.b16 %v4866
      %v5539 = vunpack.c.h.b16 %v4867
      %v5540 = vpack.c.b16 %v5093, %v5092
      %v5541 = vpack.c.b16 %v5095, %v5094
      %v5542 = vpack.c.b16 %v5097, %v5096
      %v5543 = vpack.c.b16 %v5098, %v5098
      %v5544 = vpack.c.b16 %v5100, %v5099
      %v5545 = vpack.c.b16 %v5102, %v5101
      %v5546 = vpack.c.b16 %v5104, %v5103
      %v5547 = vpack.c.b16 %v5105, %v5105
      %v5548 = vpack.c.b16 %v5107, %v5106
      %v5549 = vpack.c.b16 %v5109, %v5108
      %v5550 = vpack.c.b16 %v5111, %v5110
      %v5551 = vpack.c.b16 %v5112, %v5112
      %v5552 = vpack.c.b16 %v5114, %v5113
      %v5553 = vpack.c.b16 %v5116, %v5115
      %v5554 = vpack.c.b16 %v5118, %v5117
      %v5555 = vpack.c.b16 %v5119, %v5119
      %v5556 = vpack.c.b16 %v5121, %v5120
      %v5557 = vpack.c.b16 %v5123, %v5122
      %v5558 = vpack.c.b16 %v5125, %v5124
      %v5559 = vpack.c.b16 %v5126, %v5126
      %v5560 = vpack.c.b16 %v5128, %v5127
      %v5561 = vpack.c.b16 %v5130, %v5129
      %v5562 = vpack.c.b16 %v5132, %v5131
      %v5563 = vpack.c.b16 %v5133, %v5133
      %v5564 = vpack.c.b16 %v5135, %v5134
      %v5565 = vpack.c.b16 %v5137, %v5136
      %v5566 = vpack.c.b16 %v5139, %v5138
      %v5567 = vpack.c.b16 %v5140, %v5140
      %v5568 = vpack.c.b16 %v5142, %v5141
      %v5569 = vpack.c.b16 %v5144, %v5143
      %v5570 = vpack.c.b16 %v5146, %v5145
      %v5571 = vpack.c.b16 %v5147, %v5147
      %v5572 = vpack.c.b16 %v5149, %v5148
      %v5573 = vpack.c.b16 %v5151, %v5150
      %v5574 = vpack.c.b16 %v5153, %v5152
      %v5575 = vpack.c.b16 %v5154, %v5154
      %v5576 = vpack.c.b16 %v5156, %v5155
      %v5577 = vpack.c.b16 %v5158, %v5157
      %v5578 = vpack.c.b16 %v5160, %v5159
      %v5579 = vpack.c.b16 %v5161, %v5161
      %v5580 = vpack.c.b16 %v5163, %v5162
      %v5581 = vpack.c.b16 %v5165, %v5164
      %v5582 = vpack.c.b16 %v5167, %v5166
      %v5583 = vpack.c.b16 %v5168, %v5168
      %v5584 = vpack.c.b16 %v5170, %v5169
      %v5585 = vpack.c.b16 %v5172, %v5171
      %v5586 = vpack.c.b16 %v5174, %v5173
      %v5587 = vpack.c.b16 %v5175, %v5175
      %v5588 = vpack.c.b16 %v5177, %v5176
      %v5589 = vpack.c.b16 %v5179, %v5178
      %v5590 = vpack.c.b16 %v5181, %v5180
      %v5591 = vpack.c.b16 %v5182, %v5182
      %v5592 = vpack.c.b16 %v5184, %v5183
      %v5593 = vpack.c.b16 %v5186, %v5185
      %v5594 = vpack.c.b16 %v5188, %v5187
      %v5595 = vpack.c.b16 %v5189, %v5189
      %v5596 = vpack.c.b16 %v5191, %v5190
      %v5597 = vpack.c.b16 %v5193, %v5192
      %v5598 = vpack.c.b16 %v5195, %v5194
      %v5599 = vpack.c.b16 %v5196, %v5196
      %v5600 = vpack.c.b16 %v5198, %v5197
      %v5601 = vpack.c.b16 %v5200, %v5199
      %v5602 = vpack.c.b16 %v5202, %v5201
      %v5603 = vpack.c.b16 %v5203, %v5203
      %v5604 = vpack.c.b16 %v5205, %v5204
      %v5605 = vpack.c.b16 %v5207, %v5206
      %v5606 = vpack.c.b16 %v5209, %v5208
      %v5607 = vpack.c.b16 %v5210, %v5210
      %v5608 = vpack.c.b16 %v5212, %v5211
      %v5609 = vpack.c.b16 %v5214, %v5213
      %v5610 = vpack.c.b16 %v5216, %v5215
      %v5611 = vpack.c.b16 %v5217, %v5217
      %v5612 = vpack.c.b16 %v5219, %v5218
      %v5613 = vpack.c.b16 %v5221, %v5220
      %v5614 = vpack.c.b16 %v5223, %v5222
      %v5615 = vpack.c.b16 %v5224, %v5224
      %v5616 = vpack.c.b16 %v5226, %v5225
      %v5617 = vpack.c.b16 %v5228, %v5227
      %v5618 = vpack.c.b16 %v5230, %v5229
      %v5619 = vpack.c.b16 %v5231, %v5231
      %v5620 = vpack.c.b16 %v5233, %v5232
      %v5621 = vpack.c.b16 %v5235, %v5234
      %v5622 = vpack.c.b16 %v5237, %v5236
      %v5623 = vpack.c.b16 %v5238, %v5238
      %v5624 = vpack.c.b16 %v5240, %v5239
      %v5625 = vpack.c.b16 %v5242, %v5241
      %v5626 = vpack.c.b16 %v5244, %v5243
      %v5627 = vpack.c.b16 %v5245, %v5245
      %v5628 = vpack.c.b16 %v5247, %v5246
      %v5629 = vpack.c.b16 %v5249, %v5248
      %v5630 = vpack.c.b16 %v5251, %v5250
      %v5631 = vpack.c.b16 %v5252, %v5252
      %v5632 = vpack.c.b16 %v5254, %v5253
      %v5633 = vpack.c.b16 %v5256, %v5255
      %v5634 = vpack.c.b16 %v5258, %v5257
      %v5635 = vpack.c.b16 %v5259, %v5259
      %v5636 = vpack.c.b16 %v5261, %v5260
      %v5637 = vpack.c.b16 %v5263, %v5262
      %v5638 = vpack.c.b16 %v5265, %v5264
      %v5639 = vpack.c.b16 %v5266, %v5266
      %v5640 = vpack.c.b16 %v5268, %v5267
      %v5641 = vpack.c.b16 %v5270, %v5269
      %v5642 = vpack.c.b16 %v5272, %v5271
      %v5643 = vpack.c.b16 %v5273, %v5273
      %v5644 = vpack.c.b16 %v5275, %v5274
      %v5645 = vpack.c.b16 %v5277, %v5276
      %v5646 = vpack.c.b16 %v5279, %v5278
      %v5647 = vpack.c.b16 %v5280, %v5280
      %v5648 = vpack.c.b16 %v5282, %v5281
      %v5649 = vpack.c.b16 %v5284, %v5283
      %v5650 = vpack.c.b16 %v5286, %v5285
      %v5651 = vpack.c.b16 %v5287, %v5287
      %v5652 = vpack.c.b16 %v5289, %v5288
      %v5653 = vpack.c.b16 %v5291, %v5290
      %v5654 = vpack.c.b16 %v5293, %v5292
      %v5655 = vpack.c.b16 %v5294, %v5294
      %v5656 = vpack.c.b16 %v5296, %v5295
      %v5657 = vpack.c.b16 %v5298, %v5297
      %v5658 = vpack.c.b16 %v5300, %v5299
      %v5659 = vpack.c.b16 %v5301, %v5301
      %v5660 = vpack.c.b16 %v5303, %v5302
      %v5661 = vpack.c.b16 %v5305, %v5304
      %v5662 = vpack.c.b16 %v5307, %v5306
      %v5663 = vpack.c.b16 %v5308, %v5308
      %v5664 = vpack.c.b16 %v5310, %v5309
      %v5665 = vpack.c.b16 %v5312, %v5311
      %v5666 = vpack.c.b16 %v5314, %v5313
      %v5667 = vpack.c.b16 %v5315, %v5315
      %v5668 = vpack.c.b16 %v5317, %v5316
      %v5669 = vpack.c.b16 %v5319, %v5318
      %v5670 = vpack.c.b16 %v5321, %v5320
      %v5671 = vpack.c.b16 %v5322, %v5322
      %v5672 = vpack.c.b16 %v5324, %v5323
      %v5673 = vpack.c.b16 %v5326, %v5325
      %v5674 = vpack.c.b16 %v5328, %v5327
      %v5675 = vpack.c.b16 %v5329, %v5329
      %v5676 = vpack.c.b16 %v5331, %v5330
      %v5677 = vpack.c.b16 %v5333, %v5332
      %v5678 = vpack.c.b16 %v5335, %v5334
      %v5679 = vpack.c.b16 %v5336, %v5336
      %v5680 = vpack.c.b16 %v5338, %v5337
      %v5681 = vpack.c.b16 %v5340, %v5339
      %v5682 = vpack.c.b16 %v5342, %v5341
      %v5683 = vpack.c.b16 %v5343, %v5343
      %v5684 = vpack.c.b16 %v5345, %v5344
      %v5685 = vpack.c.b16 %v5347, %v5346
      %v5686 = vpack.c.b16 %v5349, %v5348
      %v5687 = vpack.c.b16 %v5350, %v5350
      %v5688 = vpack.c.b16 %v5352, %v5351
      %v5689 = vpack.c.b16 %v5354, %v5353
      %v5690 = vpack.c.b16 %v5356, %v5355
      %v5691 = vpack.c.b16 %v5357, %v5357
      %v5692 = vpack.c.b16 %v5359, %v5358
      %v5693 = vpack.c.b16 %v5361, %v5360
      %v5694 = vpack.c.b16 %v5363, %v5362
      %v5695 = vpack.c.b16 %v5364, %v5364
      %v5696 = vpack.c.b16 %v5366, %v5365
      %v5697 = vpack.c.b16 %v5368, %v5367
      %v5698 = vpack.c.b16 %v5370, %v5369
      %v5699 = vpack.c.b16 %v5371, %v5371
      %v5700 = vpack.c.b16 %v5373, %v5372
      %v5701 = vpack.c.b16 %v5375, %v5374
      %v5702 = vpack.c.b16 %v5377, %v5376
      %v5703 = vpack.c.b16 %v5378, %v5378
      %v5704 = vpack.c.b16 %v5380, %v5379
      %v5705 = vpack.c.b16 %v5382, %v5381
      %v5706 = vpack.c.b16 %v5384, %v5383
      %v5707 = vpack.c.b16 %v5385, %v5385
      %v5708 = vpack.c.b16 %v5387, %v5386
      %v5709 = vpack.c.b16 %v5389, %v5388
      %v5710 = vpack.c.b16 %v5391, %v5390
      %v5711 = vpack.c.b16 %v5392, %v5392
      %v5712 = vpack.c.b16 %v5394, %v5393
      %v5713 = vpack.c.b16 %v5396, %v5395
      %v5714 = vpack.c.b16 %v5398, %v5397
      %v5715 = vpack.c.b16 %v5399, %v5399
      %v5716 = vpack.c.b16 %v5401, %v5400
      %v5717 = vpack.c.b16 %v5403, %v5402
      %v5718 = vpack.c.b16 %v5405, %v5404
      %v5719 = vpack.c.b16 %v5406, %v5406
      %v5720 = vpack.c.b16 %v5408, %v5407
      %v5721 = vpack.c.b16 %v5410, %v5409
      %v5722 = vpack.c.b16 %v5412, %v5411
      %v5723 = vpack.c.b16 %v5413, %v5413
      %v5724 = vpack.c.b16 %v5415, %v5414
      %v5725 = vpack.c.b16 %v5417, %v5416
      %v5726 = vpack.c.b16 %v5419, %v5418
      %v5727 = vpack.c.b16 %v5420, %v5420
      %v5728 = vpack.c.b16 %v5422, %v5421
      %v5729 = vpack.c.b16 %v5424, %v5423
      %v5730 = vpack.c.b16 %v5426, %v5425
      %v5731 = vpack.c.b16 %v5427, %v5427
      %v5732 = vpack.c.b16 %v5429, %v5428
      %v5733 = vpack.c.b16 %v5431, %v5430
      %v5734 = vpack.c.b16 %v5433, %v5432
      %v5735 = vpack.c.b16 %v5434, %v5434
      %v5736 = vpack.c.b16 %v5436, %v5435
      %v5737 = vpack.c.b16 %v5438, %v5437
      %v5738 = vpack.c.b16 %v5440, %v5439
      %v5739 = vpack.c.b16 %v5441, %v5441
      %v5740 = vpack.c.b16 %v5443, %v5442
      %v5741 = vpack.c.b16 %v5445, %v5444
      %v5742 = vpack.c.b16 %v5447, %v5446
      %v5743 = vpack.c.b16 %v5448, %v5448
      %v5744 = vpack.c.b16 %v5450, %v5449
      %v5745 = vpack.c.b16 %v5452, %v5451
      %v5746 = vpack.c.b16 %v5454, %v5453
      %v5747 = vpack.c.b16 %v5455, %v5455
      %v5748 = vpack.c.b16 %v5457, %v5456
      %v5749 = vpack.c.b16 %v5459, %v5458
      %v5750 = vpack.c.b16 %v5461, %v5460
      %v5751 = vpack.c.b16 %v5462, %v5462
      %v5752 = vpack.c.b16 %v5464, %v5463
      %v5753 = vpack.c.b16 %v5466, %v5465
      %v5754 = vpack.c.b16 %v5468, %v5467
      %v5755 = vpack.c.b16 %v5469, %v5469
      %v5756 = vpack.c.b16 %v5471, %v5470
      %v5757 = vpack.c.b16 %v5473, %v5472
      %v5758 = vpack.c.b16 %v5475, %v5474
      %v5759 = vpack.c.b16 %v5476, %v5476
      %v5760 = vpack.c.b16 %v5478, %v5477
      %v5761 = vpack.c.b16 %v5480, %v5479
      %v5762 = vpack.c.b16 %v5482, %v5481
      %v5763 = vpack.c.b16 %v5483, %v5483
      %v5764 = vpack.c.b16 %v5485, %v5484
      %v5765 = vpack.c.b16 %v5487, %v5486
      %v5766 = vpack.c.b16 %v5489, %v5488
      %v5767 = vpack.c.b16 %v5490, %v5490
      %v5768 = vpack.c.b16 %v5492, %v5491
      %v5769 = vpack.c.b16 %v5494, %v5493
      %v5770 = vpack.c.b16 %v5496, %v5495
      %v5771 = vpack.c.b16 %v5497, %v5497
      %v5772 = vpack.c.b16 %v5499, %v5498
      %v5773 = vpack.c.b16 %v5501, %v5500
      %v5774 = vpack.c.b16 %v5503, %v5502
      %v5775 = vpack.c.b16 %v5504, %v5504
      %v5776 = vpack.c.b16 %v5506, %v5505
      %v5777 = vpack.c.b16 %v5508, %v5507
      %v5778 = vpack.c.b16 %v5510, %v5509
      %v5779 = vpack.c.b16 %v5511, %v5511
      %v5780 = vpack.c.b16 %v5513, %v5512
      %v5781 = vpack.c.b16 %v5515, %v5514
      %v5782 = vpack.c.b16 %v5517, %v5516
      %v5783 = vpack.c.b16 %v5518, %v5518
      %v5784 = vpack.c.b16 %v5520, %v5519
      %v5785 = vpack.c.b16 %v5522, %v5521
      %v5786 = vpack.c.b16 %v5524, %v5523
      %v5787 = vpack.c.b16 %v5525, %v5525
      %v5788 = vpack.c.b16 %v5527, %v5526
      %v5789 = vpack.c.b16 %v5529, %v5528
      %v5790 = vpack.c.b16 %v5531, %v5530
      %v5791 = vpack.c.b16 %v5532, %v5532
      %v5792 = vpack.c.b16 %v5534, %v5533
      %v5793 = vpack.c.b16 %v5536, %v5535
      %v5794 = vpack.c.b16 %v5538, %v5537
      %v5795 = vpack.c.b16 %v5539, %v5539
      %6052 = vst [vmem:[%s204] sm:$0xff] %v5540
      %6053 = vst [vmem:[%s204 + $0x8] sm:$0xff] %v5541
      %6054 = vst [vmem:[%s204 + $0x10] sm:$0xff] %v5542
      %vm6055 = vcmask 125952
      %6056 = vst.msk [vmem:[%s204 + $0x18] sm:$0xf] %vm6055, %v5543
      %6057 = vst [vmem:[%s204 + $0x1c] sm:$0xff] %v5544
      %6058 = vst [vmem:[%s204 + $0x24] sm:$0xff] %v5545
      %6059 = vst [vmem:[%s204 + $0x2c] sm:$0xff] %v5546
      %6060 = vst.msk [vmem:[%s204 + $0x34] sm:$0xf] %vm6055, %v5547
      %6061 = vst [vmem:[%s204 + $0x38] sm:$0xff] %v5548
      %6062 = vst [vmem:[%s204 + $0x40] sm:$0xff] %v5549
      %6063 = vst [vmem:[%s204 + $0x48] sm:$0xff] %v5550
      %6064 = vst.msk [vmem:[%s204 + $0x50] sm:$0xf] %vm6055, %v5551
      %6065 = vst [vmem:[%s204 + $0x54] sm:$0xff] %v5552
      %6066 = vst [vmem:[%s204 + $0x5c] sm:$0xff] %v5553
      %6067 = vst [vmem:[%s204 + $0x64] sm:$0xff] %v5554
      %6068 = vst.msk [vmem:[%s204 + $0x6c] sm:$0xf] %vm6055, %v5555
      %6069 = vst [vmem:[%s204 + $0x70] sm:$0xff] %v5556
      %6070 = vst [vmem:[%s204 + $0x78] sm:$0xff] %v5557
      %6071 = vst [vmem:[%s204 + $0x80] sm:$0xff] %v5558
      %6072 = vst.msk [vmem:[%s204 + $0x88] sm:$0xf] %vm6055, %v5559
      %6073 = vst [vmem:[%s204 + $0x8c] sm:$0xff] %v5560
      %6074 = vst [vmem:[%s204 + $0x94] sm:$0xff] %v5561
      %6075 = vst [vmem:[%s204 + $0x9c] sm:$0xff] %v5562
      %6076 = vst.msk [vmem:[%s204 + $0xa4] sm:$0xf] %vm6055, %v5563
      %6077 = vst [vmem:[%s204 + $0xa8] sm:$0xff] %v5564
      %6078 = vst [vmem:[%s204 + $0xb0] sm:$0xff] %v5565
      %6079 = vst [vmem:[%s204 + $0xb8] sm:$0xff] %v5566
      %6080 = vst.msk [vmem:[%s204 + $0xc0] sm:$0xf] %vm6055, %v5567
      %6081 = vst [vmem:[%s204 + $0xc4] sm:$0xff] %v5568
      %6082 = vst [vmem:[%s204 + $0xcc] sm:$0xff] %v5569
      %6083 = vst [vmem:[%s204 + $0xd4] sm:$0xff] %v5570
      %6084 = vst.msk [vmem:[%s204 + $0xdc] sm:$0xf] %vm6055, %v5571
      %6085 = vst [vmem:[%s204 + $0xe0] sm:$0xff] %v5572
      %6086 = vst [vmem:[%s204 + $0xe8] sm:$0xff] %v5573
      %6087 = vst [vmem:[%s204 + $0xf0] sm:$0xff] %v5574
      %6088 = vst.msk [vmem:[%s204 + $0xf8] sm:$0xf] %vm6055, %v5575
      %6089 = vst [vmem:[%s204 + $0xfc] sm:$0xff] %v5576
      %6090 = vst [vmem:[%s204 + $0x104] sm:$0xff] %v5577
      %6091 = vst [vmem:[%s204 + $0x10c] sm:$0xff] %v5578
      %6092 = vst.msk [vmem:[%s204 + $0x114] sm:$0xf] %vm6055, %v5579
      %6093 = vst [vmem:[%s204 + $0x118] sm:$0xff] %v5580
      %6094 = vst [vmem:[%s204 + $0x120] sm:$0xff] %v5581
      %6095 = vst [vmem:[%s204 + $0x128] sm:$0xff] %v5582
      %6096 = vst.msk [vmem:[%s204 + $0x130] sm:$0xf] %vm6055, %v5583
      %6097 = vst [vmem:[%s204 + $0x134] sm:$0xff] %v5584
      %6098 = vst [vmem:[%s204 + $0x13c] sm:$0xff] %v5585
      %6099 = vst [vmem:[%s204 + $0x144] sm:$0xff] %v5586
      %6100 = vst.msk [vmem:[%s204 + $0x14c] sm:$0xf] %vm6055, %v5587
      %6101 = vst [vmem:[%s204 + $0x150] sm:$0xff] %v5588
      %6102 = vst [vmem:[%s204 + $0x158] sm:$0xff] %v5589
      %6103 = vst [vmem:[%s204 + $0x160] sm:$0xff] %v5590
      %6104 = vst.msk [vmem:[%s204 + $0x168] sm:$0xf] %vm6055, %v5591
      %6105 = vst [vmem:[%s204 + $0x16c] sm:$0xff] %v5592
      %6106 = vst [vmem:[%s204 + $0x174] sm:$0xff] %v5593
      %6107 = vst [vmem:[%s204 + $0x17c] sm:$0xff] %v5594
      %6108 = vst.msk [vmem:[%s204 + $0x184] sm:$0xf] %vm6055, %v5595
      %6109 = vst [vmem:[%s204 + $0x188] sm:$0xff] %v5596
      %6110 = vst [vmem:[%s204 + $0x190] sm:$0xff] %v5597
      %6111 = vst [vmem:[%s204 + $0x198] sm:$0xff] %v5598
      %6112 = vst.msk [vmem:[%s204 + $0x1a0] sm:$0xf] %vm6055, %v5599
      %6113 = vst [vmem:[%s204 + $0x1a4] sm:$0xff] %v5600
      %6114 = vst [vmem:[%s204 + $0x1ac] sm:$0xff] %v5601
      %6115 = vst [vmem:[%s204 + $0x1b4] sm:$0xff] %v5602
      %6116 = vst.msk [vmem:[%s204 + $0x1bc] sm:$0xf] %vm6055, %v5603
      %6117 = vst [vmem:[%s204 + $0x1c0] sm:$0xff] %v5604
      %6118 = vst [vmem:[%s204 + $0x1c8] sm:$0xff] %v5605
      %6119 = vst [vmem:[%s204 + $0x1d0] sm:$0xff] %v5606
      %6120 = vst.msk [vmem:[%s204 + $0x1d8] sm:$0xf] %vm6055, %v5607
      %6121 = vst [vmem:[%s204 + $0x1dc] sm:$0xff] %v5608
      %6122 = vst [vmem:[%s204 + $0x1e4] sm:$0xff] %v5609
      %6123 = vst [vmem:[%s204 + $0x1ec] sm:$0xff] %v5610
      %6124 = vst.msk [vmem:[%s204 + $0x1f4] sm:$0xf] %vm6055, %v5611
      %6125 = vst [vmem:[%s204 + $0x1f8] sm:$0xff] %v5612
      %6126 = vst [vmem:[%s204 + $0x200] sm:$0xff] %v5613
      %6127 = vst [vmem:[%s204 + $0x208] sm:$0xff] %v5614
      %6128 = vst.msk [vmem:[%s204 + $0x210] sm:$0xf] %vm6055, %v5615
      %6129 = vst [vmem:[%s204 + $0x214] sm:$0xff] %v5616
      %6130 = vst [vmem:[%s204 + $0x21c] sm:$0xff] %v5617
      %6131 = vst [vmem:[%s204 + $0x224] sm:$0xff] %v5618
      %6132 = vst.msk [vmem:[%s204 + $0x22c] sm:$0xf] %vm6055, %v5619
      %6133 = vst [vmem:[%s204 + $0x230] sm:$0xff] %v5620
      %6134 = vst [vmem:[%s204 + $0x238] sm:$0xff] %v5621
      %6135 = vst [vmem:[%s204 + $0x240] sm:$0xff] %v5622
      %6136 = vst.msk [vmem:[%s204 + $0x248] sm:$0xf] %vm6055, %v5623
      %6137 = vst [vmem:[%s204 + $0x24c] sm:$0xff] %v5624
      %6138 = vst [vmem:[%s204 + $0x254] sm:$0xff] %v5625
      %6139 = vst [vmem:[%s204 + $0x25c] sm:$0xff] %v5626
      %6140 = vst.msk [vmem:[%s204 + $0x264] sm:$0xf] %vm6055, %v5627
      %6141 = vst [vmem:[%s204 + $0x268] sm:$0xff] %v5628
      %6142 = vst [vmem:[%s204 + $0x270] sm:$0xff] %v5629
      %6143 = vst [vmem:[%s204 + $0x278] sm:$0xff] %v5630
      %6144 = vst.msk [vmem:[%s204 + $0x280] sm:$0xf] %vm6055, %v5631
      %6145 = vst [vmem:[%s204 + $0x284] sm:$0xff] %v5632
      %6146 = vst [vmem:[%s204 + $0x28c] sm:$0xff] %v5633
      %6147 = vst [vmem:[%s204 + $0x294] sm:$0xff] %v5634
      %6148 = vst.msk [vmem:[%s204 + $0x29c] sm:$0xf] %vm6055, %v5635
      %6149 = vst [vmem:[%s204 + $0x2a0] sm:$0xff] %v5636
      %6150 = vst [vmem:[%s204 + $0x2a8] sm:$0xff] %v5637
      %6151 = vst [vmem:[%s204 + $0x2b0] sm:$0xff] %v5638
      %6152 = vst.msk [vmem:[%s204 + $0x2b8] sm:$0xf] %vm6055, %v5639
      %6153 = vst [vmem:[%s204 + $0x2bc] sm:$0xff] %v5640
      %6154 = vst [vmem:[%s204 + $0x2c4] sm:$0xff] %v5641
      %6155 = vst [vmem:[%s204 + $0x2cc] sm:$0xff] %v5642
      %6156 = vst.msk [vmem:[%s204 + $0x2d4] sm:$0xf] %vm6055, %v5643
      %6157 = vst [vmem:[%s204 + $0x2d8] sm:$0xff] %v5644
      %6158 = vst [vmem:[%s204 + $0x2e0] sm:$0xff] %v5645
      %6159 = vst [vmem:[%s204 + $0x2e8] sm:$0xff] %v5646
      %6160 = vst.msk [vmem:[%s204 + $0x2f0] sm:$0xf] %vm6055, %v5647
      %6161 = vst [vmem:[%s204 + $0x2f4] sm:$0xff] %v5648
      %6162 = vst [vmem:[%s204 + $0x2fc] sm:$0xff] %v5649
      %6163 = vst [vmem:[%s204 + $0x304] sm:$0xff] %v5650
      %6164 = vst.msk [vmem:[%s204 + $0x30c] sm:$0xf] %vm6055, %v5651
      %6165 = vst [vmem:[%s204 + $0x310] sm:$0xff] %v5652
      %6166 = vst [vmem:[%s204 + $0x318] sm:$0xff] %v5653
      %6167 = vst [vmem:[%s204 + $0x320] sm:$0xff] %v5654
      %6168 = vst.msk [vmem:[%s204 + $0x328] sm:$0xf] %vm6055, %v5655
      %6169 = vst [vmem:[%s204 + $0x32c] sm:$0xff] %v5656
      %6170 = vst [vmem:[%s204 + $0x334] sm:$0xff] %v5657
      %6171 = vst [vmem:[%s204 + $0x33c] sm:$0xff] %v5658
      %6172 = vst.msk [vmem:[%s204 + $0x344] sm:$0xf] %vm6055, %v5659
      %6173 = vst [vmem:[%s204 + $0x348] sm:$0xff] %v5660
      %6174 = vst [vmem:[%s204 + $0x350] sm:$0xff] %v5661
      %6175 = vst [vmem:[%s204 + $0x358] sm:$0xff] %v5662
      %6176 = vst.msk [vmem:[%s204 + $0x360] sm:$0xf] %vm6055, %v5663
      %6177 = vst [vmem:[%s204 + $0x364] sm:$0xff] %v5664
      %6178 = vst [vmem:[%s204 + $0x36c] sm:$0xff] %v5665
      %6179 = vst [vmem:[%s204 + $0x374] sm:$0xff] %v5666
      %6180 = vst.msk [vmem:[%s204 + $0x37c] sm:$0xf] %vm6055, %v5667
      %6181 = vst [vmem:[%s204 + $0x380] sm:$0xff] %v5668
      %6182 = vst [vmem:[%s204 + $0x388] sm:$0xff] %v5669
      %6183 = vst [vmem:[%s204 + $0x390] sm:$0xff] %v5670
      %6184 = vst.msk [vmem:[%s204 + $0x398] sm:$0xf] %vm6055, %v5671
      %6185 = vst [vmem:[%s204 + $0x39c] sm:$0xff] %v5672
      %6186 = vst [vmem:[%s204 + $0x3a4] sm:$0xff] %v5673
      %6187 = vst [vmem:[%s204 + $0x3ac] sm:$0xff] %v5674
      %6188 = vst.msk [vmem:[%s204 + $0x3b4] sm:$0xf] %vm6055, %v5675
      %6189 = vst [vmem:[%s204 + $0x3b8] sm:$0xff] %v5676
      %6190 = vst [vmem:[%s204 + $0x3c0] sm:$0xff] %v5677
      %6191 = vst [vmem:[%s204 + $0x3c8] sm:$0xff] %v5678
      %6192 = vst.msk [vmem:[%s204 + $0x3d0] sm:$0xf] %vm6055, %v5679
      %6193 = vst [vmem:[%s204 + $0x3d4] sm:$0xff] %v5680
      %6194 = vst [vmem:[%s204 + $0x3dc] sm:$0xff] %v5681
      %6195 = vst [vmem:[%s204 + $0x3e4] sm:$0xff] %v5682
      %6196 = vst.msk [vmem:[%s204 + $0x3ec] sm:$0xf] %vm6055, %v5683
      %6197 = vst [vmem:[%s204 + $0x3f0] sm:$0xff] %v5684
      %6198 = vst [vmem:[%s204 + $0x3f8] sm:$0xff] %v5685
      %6199 = vst [vmem:[%s204 + $0x400] sm:$0xff] %v5686
      %6200 = vst.msk [vmem:[%s204 + $0x408] sm:$0xf] %vm6055, %v5687
      %6201 = vst [vmem:[%s204 + $0x40c] sm:$0xff] %v5688
      %6202 = vst [vmem:[%s204 + $0x414] sm:$0xff] %v5689
      %6203 = vst [vmem:[%s204 + $0x41c] sm:$0xff] %v5690
      %6204 = vst.msk [vmem:[%s204 + $0x424] sm:$0xf] %vm6055, %v5691
      %6205 = vst [vmem:[%s204 + $0x428] sm:$0xff] %v5692
      %6206 = vst [vmem:[%s204 + $0x430] sm:$0xff] %v5693
      %6207 = vst [vmem:[%s204 + $0x438] sm:$0xff] %v5694
      %6208 = vst.msk [vmem:[%s204 + $0x440] sm:$0xf] %vm6055, %v5695
      %6209 = vst [vmem:[%s204 + $0x444] sm:$0xff] %v5696
      %6210 = vst [vmem:[%s204 + $0x44c] sm:$0xff] %v5697
      %6211 = vst [vmem:[%s204 + $0x454] sm:$0xff] %v5698
      %6212 = vst.msk [vmem:[%s204 + $0x45c] sm:$0xf] %vm6055, %v5699
      %6213 = vst [vmem:[%s204 + $0x460] sm:$0xff] %v5700
      %6214 = vst [vmem:[%s204 + $0x468] sm:$0xff] %v5701
      %6215 = vst [vmem:[%s204 + $0x470] sm:$0xff] %v5702
      %6216 = vst.msk [vmem:[%s204 + $0x478] sm:$0xf] %vm6055, %v5703
      %6217 = vst [vmem:[%s204 + $0x47c] sm:$0xff] %v5704
      %6218 = vst [vmem:[%s204 + $0x484] sm:$0xff] %v5705
      %6219 = vst [vmem:[%s204 + $0x48c] sm:$0xff] %v5706
      %6220 = vst.msk [vmem:[%s204 + $0x494] sm:$0xf] %vm6055, %v5707
      %6221 = vst [vmem:[%s204 + $0x498] sm:$0xff] %v5708
      %6222 = vst [vmem:[%s204 + $0x4a0] sm:$0xff] %v5709
      %6223 = vst [vmem:[%s204 + $0x4a8] sm:$0xff] %v5710
      %6224 = vst.msk [vmem:[%s204 + $0x4b0] sm:$0xf] %vm6055, %v5711
      %6225 = vst [vmem:[%s204 + $0x4b4] sm:$0xff] %v5712
      %6226 = vst [vmem:[%s204 + $0x4bc] sm:$0xff] %v5713
      %6227 = vst [vmem:[%s204 + $0x4c4] sm:$0xff] %v5714
      %6228 = vst.msk [vmem:[%s204 + $0x4cc] sm:$0xf] %vm6055, %v5715
      %6229 = vst [vmem:[%s204 + $0x4d0] sm:$0xff] %v5716
      %6230 = vst [vmem:[%s204 + $0x4d8] sm:$0xff] %v5717
      %6231 = vst [vmem:[%s204 + $0x4e0] sm:$0xff] %v5718
      %6232 = vst.msk [vmem:[%s204 + $0x4e8] sm:$0xf] %vm6055, %v5719
      %6233 = vst [vmem:[%s204 + $0x4ec] sm:$0xff] %v5720
      %6234 = vst [vmem:[%s204 + $0x4f4] sm:$0xff] %v5721
      %6235 = vst [vmem:[%s204 + $0x4fc] sm:$0xff] %v5722
      %6236 = vst.msk [vmem:[%s204 + $0x504] sm:$0xf] %vm6055, %v5723
      %6237 = vst [vmem:[%s204 + $0x508] sm:$0xff] %v5724
      %6238 = vst [vmem:[%s204 + $0x510] sm:$0xff] %v5725
      %6239 = vst [vmem:[%s204 + $0x518] sm:$0xff] %v5726
      %6240 = vst.msk [vmem:[%s204 + $0x520] sm:$0xf] %vm6055, %v5727
      %6241 = vst [vmem:[%s204 + $0x524] sm:$0xff] %v5728
      %6242 = vst [vmem:[%s204 + $0x52c] sm:$0xff] %v5729
      %6243 = vst [vmem:[%s204 + $0x534] sm:$0xff] %v5730
      %6244 = vst.msk [vmem:[%s204 + $0x53c] sm:$0xf] %vm6055, %v5731
      %6245 = vst [vmem:[%s204 + $0x540] sm:$0xff] %v5732
      %6246 = vst [vmem:[%s204 + $0x548] sm:$0xff] %v5733
      %6247 = vst [vmem:[%s204 + $0x550] sm:$0xff] %v5734
      %6248 = vst.msk [vmem:[%s204 + $0x558] sm:$0xf] %vm6055, %v5735
      %6249 = vst [vmem:[%s204 + $0x55c] sm:$0xff] %v5736
      %6250 = vst [vmem:[%s204 + $0x564] sm:$0xff] %v5737
      %6251 = vst [vmem:[%s204 + $0x56c] sm:$0xff] %v5738
      %6252 = vst.msk [vmem:[%s204 + $0x574] sm:$0xf] %vm6055, %v5739
      %6253 = vst [vmem:[%s204 + $0x578] sm:$0xff] %v5740
      %6254 = vst [vmem:[%s204 + $0x580] sm:$0xff] %v5741
      %6255 = vst [vmem:[%s204 + $0x588] sm:$0xff] %v5742
      %6256 = vst.msk [vmem:[%s204 + $0x590] sm:$0xf] %vm6055, %v5743
      %6257 = vst [vmem:[%s204 + $0x594] sm:$0xff] %v5744
      %6258 = vst [vmem:[%s204 + $0x59c] sm:$0xff] %v5745
      %6259 = vst [vmem:[%s204 + $0x5a4] sm:$0xff] %v5746
      %6260 = vst.msk [vmem:[%s204 + $0x5ac] sm:$0xf] %vm6055, %v5747
      %6261 = vst [vmem:[%s204 + $0x5b0] sm:$0xff] %v5748
      %6262 = vst [vmem:[%s204 + $0x5b8] sm:$0xff] %v5749
      %6263 = vst [vmem:[%s204 + $0x5c0] sm:$0xff] %v5750
      %6264 = vst.msk [vmem:[%s204 + $0x5c8] sm:$0xf] %vm6055, %v5751
      %6265 = vst [vmem:[%s204 + $0x5cc] sm:$0xff] %v5752
      %6266 = vst [vmem:[%s204 + $0x5d4] sm:$0xff] %v5753
      %6267 = vst [vmem:[%s204 + $0x5dc] sm:$0xff] %v5754
      %6268 = vst.msk [vmem:[%s204 + $0x5e4] sm:$0xf] %vm6055, %v5755
      %6269 = vst [vmem:[%s204 + $0x5e8] sm:$0xff] %v5756
      %6270 = vst [vmem:[%s204 + $0x5f0] sm:$0xff] %v5757
      %6271 = vst [vmem:[%s204 + $0x5f8] sm:$0xff] %v5758
      %6272 = vst.msk [vmem:[%s204 + $0x600] sm:$0xf] %vm6055, %v5759
      %6273 = vst [vmem:[%s204 + $0x604] sm:$0xff] %v5760
      %6274 = vst [vmem:[%s204 + $0x60c] sm:$0xff] %v5761
      %6275 = vst [vmem:[%s204 + $0x614] sm:$0xff] %v5762
      %6276 = vst.msk [vmem:[%s204 + $0x61c] sm:$0xf] %vm6055, %v5763
      %6277 = vst [vmem:[%s204 + $0x620] sm:$0xff] %v5764
      %6278 = vst [vmem:[%s204 + $0x628] sm:$0xff] %v5765
      %6279 = vst [vmem:[%s204 + $0x630] sm:$0xff] %v5766
      %6280 = vst.msk [vmem:[%s204 + $0x638] sm:$0xf] %vm6055, %v5767
      %6281 = vst [vmem:[%s204 + $0x63c] sm:$0xff] %v5768
      %6282 = vst [vmem:[%s204 + $0x644] sm:$0xff] %v5769
      %6283 = vst [vmem:[%s204 + $0x64c] sm:$0xff] %v5770
      %6284 = vst.msk [vmem:[%s204 + $0x654] sm:$0xf] %vm6055, %v5771
      %6285 = vst [vmem:[%s204 + $0x658] sm:$0xff] %v5772
      %6286 = vst [vmem:[%s204 + $0x660] sm:$0xff] %v5773
      %6287 = vst [vmem:[%s204 + $0x668] sm:$0xff] %v5774
      %6288 = vst.msk [vmem:[%s204 + $0x670] sm:$0xf] %vm6055, %v5775
      %6289 = vst [vmem:[%s204 + $0x674] sm:$0xff] %v5776
      %6290 = vst [vmem:[%s204 + $0x67c] sm:$0xff] %v5777
      %6291 = vst [vmem:[%s204 + $0x684] sm:$0xff] %v5778
      %6292 = vst.msk [vmem:[%s204 + $0x68c] sm:$0xf] %vm6055, %v5779
      %6293 = vst [vmem:[%s204 + $0x690] sm:$0xff] %v5780
      %6294 = vst [vmem:[%s204 + $0x698] sm:$0xff] %v5781
      %6295 = vst [vmem:[%s204 + $0x6a0] sm:$0xff] %v5782
      %6296 = vst.msk [vmem:[%s204 + $0x6a8] sm:$0xf] %vm6055, %v5783
      %6297 = vst [vmem:[%s204 + $0x6ac] sm:$0xff] %v5784
      %6298 = vst [vmem:[%s204 + $0x6b4] sm:$0xff] %v5785
      %6299 = vst [vmem:[%s204 + $0x6bc] sm:$0xff] %v5786
      %6300 = vst.msk [vmem:[%s204 + $0x6c4] sm:$0xf] %vm6055, %v5787
      %6301 = vst [vmem:[%s204 + $0x6c8] sm:$0xff] %v5788
      %6302 = vst [vmem:[%s204 + $0x6d0] sm:$0xff] %v5789
      %6303 = vst [vmem:[%s204 + $0x6d8] sm:$0xff] %v5790
      %6304 = vst.msk [vmem:[%s204 + $0x6e0] sm:$0xf] %vm6055, %v5791
      %6305 = vst [vmem:[%s204 + $0x6e4] sm:$0xff] %v5792
      %6306 = vst [vmem:[%s204 + $0x6ec] sm:$0xff] %v5793
      %6307 = vst [vmem:[%s204 + $0x6f4] sm:$0xff] %v5794
      %6308 = vst.msk [vmem:[%s204 + $0x6fc] sm:$0xf] %vm6055, %v5795
      %s6309 = smul.u32 64, %s15
      %p6310 = scmp.lt.s32.totalorder %s6309, 127
      %s6311 = scalar_select %p6310, %s6309, 127
      %s6312 = smul.addr %s6311, 7
      %s6313 = smul.addr %s6312, 4
      %s6314 = scalar_lea.vmem %s4, %s6313
      // Predicated region
      $region37: #{bn_relu_conv1x1.1} parent=35 // pred_check
        %p6315 = pneg %p122
      $region38: #{bn_relu_conv1x1.1} parent=35 // pred_check_branch
        %6317 = sbr.rel (%p6315) target = $region40
      $region39: #{bn_relu_conv1x1.1} parent=35 // pred_region
        %s6318 = smul.u32 64, %s15
      $region40: #{bn_relu_conv1x1.1} parent=35 // pred_fallthru
        _
    $region36: #{bn_relu_conv1x1.1} parent=5 // pred_fallthru
      _
    %p6319 = scmp.le.s32.totalorder 2, %s10
    // Predicated region
    $region41: #{bn_relu_conv1x1.1} parent=5 // pred_check
      %p6320 = pneg %p6319
    $region42: #{bn_relu_conv1x1.1} parent=5 // pred_check_branch
      %6322 = sbr.rel (%p6320) target = $region44
    $region43: #{bn_relu_conv1x1.1} parent=5 // pred_region
      %s6323 = ssub.s32 %s10, 2
      // Predicated region
      $region45: #{bn_relu_conv1x1.1} parent=43 // pred_check
        %p6324 = pneg %p128
      $region46: #{bn_relu_conv1x1.1} parent=43 // pred_check_branch
        %6326 = sbr.rel (%p6324) target = $region48
      $region47: #{bn_relu_conv1x1.1} parent=43 // pred_region
        %s6327 = smul.u32 64, %s16
        %p6328 = scmp.lt.s32.totalorder %s6327, 127
        %s6329 = scalar_select %p6328, %s6327, 127
        %s6330 = smul.addr %s6329, 7
        %s6331 = smul.addr %s6330, 4
        %s6332 = scalar_lea.vmem %s4, %s6331
      $region48: #{bn_relu_conv1x1.1} parent=43 // pred_fallthru
        _
    $region44: #{bn_relu_conv1x1.1} parent=5 // pred_fallthru
      _
  $region6: #{bn_relu_conv1x1.1} parent=0 // loop_footer
    %s14 = sadd.s32 1, %s10
  $region7: #{bn_relu_conv1x1.1} parent=0 // loop_footer_branch
    %9 = sbr.rel target = $region3
  $region8: #{bn_relu_conv1x1.1} parent=0 // loop_exit
    _

</llo_original>
